<compile_context>
chip_gen: v7x
topology: tpu7x:2x2x1
jax: 0.10.0
libtpu: 0.0.40
codegen_flags: <defaults>
</compile_context>

<pallas_src>
import functools

import jax
import jax.numpy as jnp
from jax.experimental import pallas as pl
from jax.experimental.pallas import tpu as pltpu


def _vmem_limit_bytes(tokens, c):
    """Explicit VMEM budget: double-buffered resident weights + x/out blocks +
    fp32 working set with generous slack; clamped so it stays well inside
    v7x's 64 MiB physical VMEM while leaving headroom on v5e/v6e."""
    item = 4  # fp32
    weights = (c * 3 * c + c * c + c) * item
    io_blocks = 2 * (2 * tokens * c) * item
    working = (tokens * 3 * c + 4 * tokens * tokens + 2 * tokens * c) * item
    est = 2 * weights + io_blocks + 8 * working + (4 << 20)
    return int(min(max(est, 16 << 20), 48 << 20))


def _msa_fused_kernel(x_ref, wqkv_ref, wproj_ref, bproj_ref, o_ref, *,
                      num_heads, head_dim, n_valid, scale):
    """One grid step = one batch element. Everything stays in VMEM."""
    tokens = x_ref.shape[0]
    c = num_heads * head_dim

    x = x_ref[...]                                                   # (T, C)
    qkv = jnp.dot(x, wqkv_ref[...],
                  preferred_element_type=jnp.float32)                # (T, 3C)

    y = jnp.zeros((tokens, c), dtype=jnp.float32)
    for h in range(num_heads):   # static unroll: small hd matmuls pipeline on MXU
        lo = h * head_dim
        # Fold the softmax scale into q (N*hd mults instead of N*N).
        q_h = qkv[:, lo:lo + head_dim] * scale                       # (T, hd)
        k_h = qkv[:, c + lo:c + lo + head_dim]                       # (T, hd)
        v_h = qkv[:, 2 * c + lo:2 * c + lo + head_dim]               # (T, hd)

        s = jnp.einsum("qd,kd->qk", q_h, k_h,
                       preferred_element_type=jnp.float32)           # (T, T)
        if n_valid < tokens:  # static branch: mask zero-padded key positions
            key_ok = jax.lax.broadcasted_iota(jnp.int32, (tokens, tokens), 1) < n_valid
            s = jnp.where(key_ok, s, -1e30)
        s = s - jnp.max(s, axis=-1, keepdims=True)
        p = jnp.exp(s)
        p = p / jnp.sum(p, axis=-1, keepdims=True)   # attn_drop(p=0.0) == identity
        o_h = jnp.dot(p, v_h, preferred_element_type=jnp.float32)    # (T, hd)

        # Accumulate this head's contribution to the output projection directly:
        # concat_h(o_h) @ W == sum_h o_h @ W[h*hd:(h+1)*hd, :]  (no lane relayout).
        y = y + jnp.dot(o_h, wproj_ref[lo:lo + head_dim, :],
                        preferred_element_type=jnp.float32)

    y = y + bproj_ref[...]                           # proj_drop(p=0.0) == identity
    o_ref[...] = y.astype(o_ref.dtype)


@functools.partial(jax.jit, static_argnames=("num_heads",))
def msa_forward(x, w_qkv, w_proj, b_proj, *, num_heads):
    """x: (B, N, C). w_qkv: (C, 3C) no bias; w_proj: (C, C); b_proj: (C,)."""
    B, N, C = x.shape
    assert C % num_heads == 0, "dim should be divisible by num_heads"
    hd = C // num_heads
    scale = hd ** (-0.5)

    # Pad tokens per batch to a sublane multiple (8); padded key positions are
    # masked inside the kernel, padded query rows are sliced off below.
    Np = ((N + 7) // 8) * 8
    if Np != N:
        x = jnp.pad(x, ((0, 0), (0, Np - N), (0, 0)))
    x2d = x.reshape(B * Np, C)

    kernel = functools.partial(_msa_fused_kernel, num_heads=num_heads,
                               head_dim=hd, n_valid=N, scale=scale)

    out = pl.pallas_call(
        kernel,
        out_shape=jax.ShapeDtypeStruct((B * Np, C), x.dtype),
        grid_spec=pltpu.PrefetchScalarGridSpec(
            num_scalar_prefetch=0,
            grid=(B,),
            in_specs=[
                pl.BlockSpec((Np, C), lambda b: (b, 0)),        # x tile (streams)
                pl.BlockSpec((C, 3 * C), lambda b: (0, 0)),     # w_qkv (resident)
                pl.BlockSpec((C, C), lambda b: (0, 0)),         # w_proj (resident)
                pl.BlockSpec((1, C), lambda b: (0, 0)),         # b_proj (resident)
            ],
            out_specs=pl.BlockSpec((Np, C), lambda b: (b, 0)),  # lane-dense (C>=128)
        ),
        compiler_params=pltpu.CompilerParams(
            dimension_semantics=("parallel",),   # batches shard across v7x's 2 TCs
            vmem_limit_bytes=_vmem_limit_bytes(Np, C),
        ),
    )(x2d, w_qkv, w_proj, b_proj.reshape(1, C))

    return out.reshape(B, Np, C)[:, :N, :]


# ------------------------------- reference ------------------------------------

def msa_reference(x, w_qkv, w_proj, b_proj, num_heads):
    B, N, C = x.shape
    hd = C // num_heads
    scale = hd ** (-0.5)
    hp = jax.lax.Precision.HIGHEST
    qkv = jnp.einsum("bnc,cd->bnd", x, w_qkv, precision=hp)
    qkv = qkv.reshape(B, N, 3, num_heads, hd).transpose(2, 0, 3, 1, 4)
    q, k, v = qkv[0], qkv[1], qkv[2]
    attn = jnp.einsum("bhqd,bhkd->bhqk", q, k, precision=hp) * scale
    attn = jax.nn.softmax(attn, axis=-1)
    o = jnp.einsum("bhqk,bhkd->bhqd", attn, v, precision=hp)
    o = o.transpose(0, 2, 1, 3).reshape(B, N, C)
    return jnp.einsum("bnc,cd->bnd", o, w_proj, precision=hp) + b_proj


if __name__ == "__main__":
    # Small shapes consistent with the module defaults: dim=192, num_heads=12.
    B, N, C, H = 2, 8, 192, 12

    key = jax.random.PRNGKey(0)
    kx, kq, kp, kb = jax.random.split(key, 4)

    x = jax.random.normal(kx, (B, N, C), dtype=jnp.float32)
    # Parameters stored as (in, out); rough kaiming-uniform-like init.
    w_qkv = jax.random.uniform(kq, (C, 3 * C), jnp.float32, -1.0, 1.0) / jnp.sqrt(C)
    w_proj = jax.random.uniform(kp, (C, C), jnp.float32, -1.0, 1.0) / jnp.sqrt(C)
    b_proj = jax.random.uniform(kb, (C,), jnp.float32, -1.0, 1.0) / jnp.sqrt(C)

    y = msa_forward(x, w_qkv, w_proj, b_proj, num_heads=H)
    jax.block_until_ready(y)

    y_ref = msa_reference(x, w_qkv, w_proj, b_proj, H)
    assert y.shape == (B, N, C)
    assert jnp.allclose(y, y_ref, atol=1e-4, rtol=1e-4), "mismatch vs reference"

    print("KERNEL_OK")
</pallas_src>

<mosaic_0001>
module attributes {stable_mosaic.version = 11 : i64} {
  func.func @_msa_fused_kernel(%arg0: i32, %arg1: memref<8x192xf32, #tpu.memory_space<vmem>>, %arg2: memref<192x576xf32, #tpu.memory_space<vmem>>, %arg3: memref<192x192xf32, #tpu.memory_space<vmem>>, %arg4: memref<1x192xf32, #tpu.memory_space<vmem>>, %arg5: memref<8x192xf32, #tpu.memory_space<vmem>>) attributes {dimension_semantics = [#tpu.dimension_semantics<parallel>], iteration_bounds = array<i64: 2>, scalar_prefetch = 0 : i64, scratch_operands = 0 : i64, tpu.core_type = #tpu.core_type<tc>, window_params = [{transform_indices = @transform_0, window_bounds = array<i64: 8, 192>}, {pipeline_mode = #tpu.pipeline_mode<synchronous>, transform_indices = @transform_1, window_bounds = array<i64: 192, 576>}, {pipeline_mode = #tpu.pipeline_mode<synchronous>, transform_indices = @transform_2, window_bounds = array<i64: 192, 192>}, {pipeline_mode = #tpu.pipeline_mode<synchronous>, transform_indices = @transform_3, window_bounds = array<i64: 1, 192>}, {transform_indices = @transform_4, window_bounds = array<i64: 8, 192>}]} {
    %c0 = arith.constant 0 : index
    %c0_0 = arith.constant 0 : index
    %0 = vector.load %arg1[%c0, %c0_0] : memref<8x192xf32, #tpu.memory_space<vmem>>, vector<8x192xf32>
    %c0_1 = arith.constant 0 : index
    %c0_2 = arith.constant 0 : index
    %1 = vector.load %arg2[%c0_1, %c0_2] : memref<192x576xf32, #tpu.memory_space<vmem>>, vector<192x576xf32>
    %cst = arith.constant dense<0.000000e+00> : vector<8x576xf32>
    %2 = tpu.matmul %0, %1, %cst {dimension_numbers = #tpu.dot_dimension_numbers<[1], [0], [0], [1], [0, 0, 1, 1], [], []>} : vector<8x192xf32>, vector<192x576xf32>, vector<8x576xf32> -> vector<8x576xf32>
    %cst_3 = arith.constant 0.000000e+00 : f32
    %3 = vector.broadcast %cst_3 : f32 to vector<8x192xf32>
    %4 = vector.extract_strided_slice %2 {offsets = [0, 0], sizes = [8, 16], strides = [1, 1]} : vector<8x576xf32> to vector<8x16xf32>
    %cst_4 = arith.constant 2.500000e-01 : f32
    %5 = vector.broadcast %cst_4 : f32 to vector<8x16xf32>
    %6 = arith.mulf %4, %5 : vector<8x16xf32>
    %7 = vector.extract_strided_slice %2 {offsets = [0, 192], sizes = [8, 16], strides = [1, 1]} : vector<8x576xf32> to vector<8x16xf32>
    %8 = vector.extract_strided_slice %2 {offsets = [0, 384], sizes = [8, 16], strides = [1, 1]} : vector<8x576xf32> to vector<8x16xf32>
    "tpu.trace_start"() <{level = 10 : i32, message = "qd,kd->qk"}> : () -> ()
    %cst_5 = arith.constant dense<0.000000e+00> : vector<8x8xf32>
    %9 = tpu.matmul %6, %7, %cst_5 {dimension_numbers = #tpu.dot_dimension_numbers<[1], [1], [0], [0], [0, 0, 1, 0], [], []>} : vector<8x16xf32>, vector<8x16xf32>, vector<8x8xf32> -> vector<8x8xf32>
    "tpu.trace_stop"() : () -> ()
    %cst_6 = arith.constant dense<0xFF800000> : vector<8xf32>
    %10 = vector.multi_reduction <maximumf>, %9, %cst_6 [1] : vector<8x8xf32> to vector<8xf32>
    %11 = vector.shape_cast %10 : vector<8xf32> to vector<8x1xf32>
    %12 = vector.broadcast %11 : vector<8x1xf32> to vector<8x8xf32>
    %13 = arith.subf %9, %12 : vector<8x8xf32>
    %14 = math.exp %13 : vector<8x8xf32>
    %cst_7 = arith.constant dense<0.000000e+00> : vector<8xf32>
    %15 = vector.multi_reduction <add>, %14, %cst_7 [1] : vector<8x8xf32> to vector<8xf32>
    %16 = vector.shape_cast %15 : vector<8xf32> to vector<8x1xf32>
    %17 = vector.broadcast %16 : vector<8x1xf32> to vector<8x8xf32>
    %18 = arith.divf %14, %17 : vector<8x8xf32>
    %cst_8 = arith.constant dense<0.000000e+00> : vector<8x16xf32>
    %19 = tpu.matmul %18, %8, %cst_8 {dimension_numbers = #tpu.dot_dimension_numbers<[1], [0], [0], [1], [0, 0, 1, 1], [], []>} : vector<8x8xf32>, vector<8x16xf32>, vector<8x16xf32> -> vector<8x16xf32>
    %c0_9 = arith.constant 0 : index
    %c0_10 = arith.constant 0 : index
    %20 = vector.load %arg3[%c0_9, %c0_10] : memref<192x192xf32, #tpu.memory_space<vmem>>, vector<16x192xf32>
    %cst_11 = arith.constant dense<0.000000e+00> : vector<8x192xf32>
    %21 = tpu.matmul %19, %20, %cst_11 {dimension_numbers = #tpu.dot_dimension_numbers<[1], [0], [0], [1], [0, 0, 1, 1], [], []>} : vector<8x16xf32>, vector<16x192xf32>, vector<8x192xf32> -> vector<8x192xf32>
    %22 = arith.addf %3, %21 : vector<8x192xf32>
    %23 = vector.extract_strided_slice %2 {offsets = [0, 16], sizes = [8, 16], strides = [1, 1]} : vector<8x576xf32> to vector<8x16xf32>
    %cst_12 = arith.constant 2.500000e-01 : f32
    %24 = vector.broadcast %cst_12 : f32 to vector<8x16xf32>
    %25 = arith.mulf %23, %24 : vector<8x16xf32>
    %26 = vector.extract_strided_slice %2 {offsets = [0, 208], sizes = [8, 16], strides = [1, 1]} : vector<8x576xf32> to vector<8x16xf32>
    %27 = vector.extract_strided_slice %2 {offsets = [0, 400], sizes = [8, 16], strides = [1, 1]} : vector<8x576xf32> to vector<8x16xf32>
    "tpu.trace_start"() <{level = 10 : i32, message = "qd,kd->qk"}> : () -> ()
    %cst_13 = arith.constant dense<0.000000e+00> : vector<8x8xf32>
    %28 = tpu.matmul %25, %26, %cst_13 {dimension_numbers = #tpu.dot_dimension_numbers<[1], [1], [0], [0], [0, 0, 1, 0], [], []>} : vector<8x16xf32>, vector<8x16xf32>, vector<8x8xf32> -> vector<8x8xf32>
    "tpu.trace_stop"() : () -> ()
    %cst_14 = arith.constant dense<0xFF800000> : vector<8xf32>
    %29 = vector.multi_reduction <maximumf>, %28, %cst_14 [1] : vector<8x8xf32> to vector<8xf32>
    %30 = vector.shape_cast %29 : vector<8xf32> to vector<8x1xf32>
    %31 = vector.broadcast %30 : vector<8x1xf32> to vector<8x8xf32>
    %32 = arith.subf %28, %31 : vector<8x8xf32>
    %33 = math.exp %32 : vector<8x8xf32>
    %cst_15 = arith.constant dense<0.000000e+00> : vector<8xf32>
    %34 = vector.multi_reduction <add>, %33, %cst_15 [1] : vector<8x8xf32> to vector<8xf32>
    %35 = vector.shape_cast %34 : vector<8xf32> to vector<8x1xf32>
    %36 = vector.broadcast %35 : vector<8x1xf32> to vector<8x8xf32>
    %37 = arith.divf %33, %36 : vector<8x8xf32>
    %cst_16 = arith.constant dense<0.000000e+00> : vector<8x16xf32>
    %38 = tpu.matmul %37, %27, %cst_16 {dimension_numbers = #tpu.dot_dimension_numbers<[1], [0], [0], [1], [0, 0, 1, 1], [], []>} : vector<8x8xf32>, vector<8x16xf32>, vector<8x16xf32> -> vector<8x16xf32>
    %c16 = arith.constant 16 : index
    %c0_17 = arith.constant 0 : index
    %39 = vector.load %arg3[%c16, %c0_17] : memref<192x192xf32, #tpu.memory_space<vmem>>, vector<16x192xf32>
    %cst_18 = arith.constant dense<0.000000e+00> : vector<8x192xf32>
    %40 = tpu.matmul %38, %39, %cst_18 {dimension_numbers = #tpu.dot_dimension_numbers<[1], [0], [0], [1], [0, 0, 1, 1], [], []>} : vector<8x16xf32>, vector<16x192xf32>, vector<8x192xf32> -> vector<8x192xf32>
    %41 = arith.addf %22, %40 : vector<8x192xf32>
    %42 = vector.extract_strided_slice %2 {offsets = [0, 32], sizes = [8, 16], strides = [1, 1]} : vector<8x576xf32> to vector<8x16xf32>
    %cst_19 = arith.constant 2.500000e-01 : f32
    %43 = vector.broadcast %cst_19 : f32 to vector<8x16xf32>
    %44 = arith.mulf %42, %43 : vector<8x16xf32>
    %45 = vector.extract_strided_slice %2 {offsets = [0, 224], sizes = [8, 16], strides = [1, 1]} : vector<8x576xf32> to vector<8x16xf32>
    %46 = vector.extract_strided_slice %2 {offsets = [0, 416], sizes = [8, 16], strides = [1, 1]} : vector<8x576xf32> to vector<8x16xf32>
    "tpu.trace_start"() <{level = 10 : i32, message = "qd,kd->qk"}> : () -> ()
    %cst_20 = arith.constant dense<0.000000e+00> : vector<8x8xf32>
    %47 = tpu.matmul %44, %45, %cst_20 {dimension_numbers = #tpu.dot_dimension_numbers<[1], [1], [0], [0], [0, 0, 1, 0], [], []>} : vector<8x16xf32>, vector<8x16xf32>, vector<8x8xf32> -> vector<8x8xf32>
    "tpu.trace_stop"() : () -> ()
    %cst_21 = arith.constant dense<0xFF800000> : vector<8xf32>
    %48 = vector.multi_reduction <maximumf>, %47, %cst_21 [1] : vector<8x8xf32> to vector<8xf32>
    %49 = vector.shape_cast %48 : vector<8xf32> to vector<8x1xf32>
    %50 = vector.broadcast %49 : vector<8x1xf32> to vector<8x8xf32>
    %51 = arith.subf %47, %50 : vector<8x8xf32>
    %52 = math.exp %51 : vector<8x8xf32>
    %cst_22 = arith.constant dense<0.000000e+00> : vector<8xf32>
    %53 = vector.multi_reduction <add>, %52, %cst_22 [1] : vector<8x8xf32> to vector<8xf32>
    %54 = vector.shape_cast %53 : vector<8xf32> to vector<8x1xf32>
    %55 = vector.broadcast %54 : vector<8x1xf32> to vector<8x8xf32>
    %56 = arith.divf %52, %55 : vector<8x8xf32>
    %cst_23 = arith.constant dense<0.000000e+00> : vector<8x16xf32>
    %57 = tpu.matmul %56, %46, %cst_23 {dimension_numbers = #tpu.dot_dimension_numbers<[1], [0], [0], [1], [0, 0, 1, 1], [], []>} : vector<8x8xf32>, vector<8x16xf32>, vector<8x16xf32> -> vector<8x16xf32>
    %c32 = arith.constant 32 : index
    %c0_24 = arith.constant 0 : index
    %58 = vector.load %arg3[%c32, %c0_24] : memref<192x192xf32, #tpu.memory_space<vmem>>, vector<16x192xf32>
    %cst_25 = arith.constant dense<0.000000e+00> : vector<8x192xf32>
    %59 = tpu.matmul %57, %58, %cst_25 {dimension_numbers = #tpu.dot_dimension_numbers<[1], [0], [0], [1], [0, 0, 1, 1], [], []>} : vector<8x16xf32>, vector<16x192xf32>, vector<8x192xf32> -> vector<8x192xf32>
    %60 = arith.addf %41, %59 : vector<8x192xf32>
    %61 = vector.extract_strided_slice %2 {offsets = [0, 48], sizes = [8, 16], strides = [1, 1]} : vector<8x576xf32> to vector<8x16xf32>
    %cst_26 = arith.constant 2.500000e-01 : f32
    %62 = vector.broadcast %cst_26 : f32 to vector<8x16xf32>
    %63 = arith.mulf %61, %62 : vector<8x16xf32>
    %64 = vector.extract_strided_slice %2 {offsets = [0, 240], sizes = [8, 16], strides = [1, 1]} : vector<8x576xf32> to vector<8x16xf32>
    %65 = vector.extract_strided_slice %2 {offsets = [0, 432], sizes = [8, 16], strides = [1, 1]} : vector<8x576xf32> to vector<8x16xf32>
    "tpu.trace_start"() <{level = 10 : i32, message = "qd,kd->qk"}> : () -> ()
    %cst_27 = arith.constant dense<0.000000e+00> : vector<8x8xf32>
    %66 = tpu.matmul %63, %64, %cst_27 {dimension_numbers = #tpu.dot_dimension_numbers<[1], [1], [0], [0], [0, 0, 1, 0], [], []>} : vector<8x16xf32>, vector<8x16xf32>, vector<8x8xf32> -> vector<8x8xf32>
    "tpu.trace_stop"() : () -> ()
    %cst_28 = arith.constant dense<0xFF800000> : vector<8xf32>
    %67 = vector.multi_reduction <maximumf>, %66, %cst_28 [1] : vector<8x8xf32> to vector<8xf32>
    %68 = vector.shape_cast %67 : vector<8xf32> to vector<8x1xf32>
    %69 = vector.broadcast %68 : vector<8x1xf32> to vector<8x8xf32>
    %70 = arith.subf %66, %69 : vector<8x8xf32>
    %71 = math.exp %70 : vector<8x8xf32>
    %cst_29 = arith.constant dense<0.000000e+00> : vector<8xf32>
    %72 = vector.multi_reduction <add>, %71, %cst_29 [1] : vector<8x8xf32> to vector<8xf32>
    %73 = vector.shape_cast %72 : vector<8xf32> to vector<8x1xf32>
    %74 = vector.broadcast %73 : vector<8x1xf32> to vector<8x8xf32>
    %75 = arith.divf %71, %74 : vector<8x8xf32>
    %cst_30 = arith.constant dense<0.000000e+00> : vector<8x16xf32>
    %76 = tpu.matmul %75, %65, %cst_30 {dimension_numbers = #tpu.dot_dimension_numbers<[1], [0], [0], [1], [0, 0, 1, 1], [], []>} : vector<8x8xf32>, vector<8x16xf32>, vector<8x16xf32> -> vector<8x16xf32>
    %c48 = arith.constant 48 : index
    %c0_31 = arith.constant 0 : index
    %77 = vector.load %arg3[%c48, %c0_31] : memref<192x192xf32, #tpu.memory_space<vmem>>, vector<16x192xf32>
    %cst_32 = arith.constant dense<0.000000e+00> : vector<8x192xf32>
    %78 = tpu.matmul %76, %77, %cst_32 {dimension_numbers = #tpu.dot_dimension_numbers<[1], [0], [0], [1], [0, 0, 1, 1], [], []>} : vector<8x16xf32>, vector<16x192xf32>, vector<8x192xf32> -> vector<8x192xf32>
    %79 = arith.addf %60, %78 : vector<8x192xf32>
    %80 = vector.extract_strided_slice %2 {offsets = [0, 64], sizes = [8, 16], strides = [1, 1]} : vector<8x576xf32> to vector<8x16xf32>
    %cst_33 = arith.constant 2.500000e-01 : f32
    %81 = vector.broadcast %cst_33 : f32 to vector<8x16xf32>
    %82 = arith.mulf %80, %81 : vector<8x16xf32>
    %83 = vector.extract_strided_slice %2 {offsets = [0, 256], sizes = [8, 16], strides = [1, 1]} : vector<8x576xf32> to vector<8x16xf32>
    %84 = vector.extract_strided_slice %2 {offsets = [0, 448], sizes = [8, 16], strides = [1, 1]} : vector<8x576xf32> to vector<8x16xf32>
    "tpu.trace_start"() <{level = 10 : i32, message = "qd,kd->qk"}> : () -> ()
    %cst_34 = arith.constant dense<0.000000e+00> : vector<8x8xf32>
    %85 = tpu.matmul %82, %83, %cst_34 {dimension_numbers = #tpu.dot_dimension_numbers<[1], [1], [0], [0], [0, 0, 1, 0], [], []>} : vector<8x16xf32>, vector<8x16xf32>, vector<8x8xf32> -> vector<8x8xf32>
    "tpu.trace_stop"() : () -> ()
    %cst_35 = arith.constant dense<0xFF800000> : vector<8xf32>
    %86 = vector.multi_reduction <maximumf>, %85, %cst_35 [1] : vector<8x8xf32> to vector<8xf32>
    %87 = vector.shape_cast %86 : vector<8xf32> to vector<8x1xf32>
    %88 = vector.broadcast %87 : vector<8x1xf32> to vector<8x8xf32>
    %89 = arith.subf %85, %88 : vector<8x8xf32>
    %90 = math.exp %89 : vector<8x8xf32>
    %cst_36 = arith.constant dense<0.000000e+00> : vector<8xf32>
    %91 = vector.multi_reduction <add>, %90, %cst_36 [1] : vector<8x8xf32> to vector<8xf32>
    %92 = vector.shape_cast %91 : vector<8xf32> to vector<8x1xf32>
    %93 = vector.broadcast %92 : vector<8x1xf32> to vector<8x8xf32>
    %94 = arith.divf %90, %93 : vector<8x8xf32>
    %cst_37 = arith.constant dense<0.000000e+00> : vector<8x16xf32>
    %95 = tpu.matmul %94, %84, %cst_37 {dimension_numbers = #tpu.dot_dimension_numbers<[1], [0], [0], [1], [0, 0, 1, 1], [], []>} : vector<8x8xf32>, vector<8x16xf32>, vector<8x16xf32> -> vector<8x16xf32>
    %c64 = arith.constant 64 : index
    %c0_38 = arith.constant 0 : index
    %96 = vector.load %arg3[%c64, %c0_38] : memref<192x192xf32, #tpu.memory_space<vmem>>, vector<16x192xf32>
    %cst_39 = arith.constant dense<0.000000e+00> : vector<8x192xf32>
    %97 = tpu.matmul %95, %96, %cst_39 {dimension_numbers = #tpu.dot_dimension_numbers<[1], [0], [0], [1], [0, 0, 1, 1], [], []>} : vector<8x16xf32>, vector<16x192xf32>, vector<8x192xf32> -> vector<8x192xf32>
    %98 = arith.addf %79, %97 : vector<8x192xf32>
    %99 = vector.extract_strided_slice %2 {offsets = [0, 80], sizes = [8, 16], strides = [1, 1]} : vector<8x576xf32> to vector<8x16xf32>
    %cst_40 = arith.constant 2.500000e-01 : f32
    %100 = vector.broadcast %cst_40 : f32 to vector<8x16xf32>
    %101 = arith.mulf %99, %100 : vector<8x16xf32>
    %102 = vector.extract_strided_slice %2 {offsets = [0, 272], sizes = [8, 16], strides = [1, 1]} : vector<8x576xf32> to vector<8x16xf32>
    %103 = vector.extract_strided_slice %2 {offsets = [0, 464], sizes = [8, 16], strides = [1, 1]} : vector<8x576xf32> to vector<8x16xf32>
    "tpu.trace_start"() <{level = 10 : i32, message = "qd,kd->qk"}> : () -> ()
    %cst_41 = arith.constant dense<0.000000e+00> : vector<8x8xf32>
    %104 = tpu.matmul %101, %102, %cst_41 {dimension_numbers = #tpu.dot_dimension_numbers<[1], [1], [0], [0], [0, 0, 1, 0], [], []>} : vector<8x16xf32>, vector<8x16xf32>, vector<8x8xf32> -> vector<8x8xf32>
    "tpu.trace_stop"() : () -> ()
    %cst_42 = arith.constant dense<0xFF800000> : vector<8xf32>
    %105 = vector.multi_reduction <maximumf>, %104, %cst_42 [1] : vector<8x8xf32> to vector<8xf32>
    %106 = vector.shape_cast %105 : vector<8xf32> to vector<8x1xf32>
    %107 = vector.broadcast %106 : vector<8x1xf32> to vector<8x8xf32>
    %108 = arith.subf %104, %107 : vector<8x8xf32>
    %109 = math.exp %108 : vector<8x8xf32>
    %cst_43 = arith.constant dense<0.000000e+00> : vector<8xf32>
    %110 = vector.multi_reduction <add>, %109, %cst_43 [1] : vector<8x8xf32> to vector<8xf32>
    %111 = vector.shape_cast %110 : vector<8xf32> to vector<8x1xf32>
    %112 = vector.broadcast %111 : vector<8x1xf32> to vector<8x8xf32>
    %113 = arith.divf %109, %112 : vector<8x8xf32>
    %cst_44 = arith.constant dense<0.000000e+00> : vector<8x16xf32>
    %114 = tpu.matmul %113, %103, %cst_44 {dimension_numbers = #tpu.dot_dimension_numbers<[1], [0], [0], [1], [0, 0, 1, 1], [], []>} : vector<8x8xf32>, vector<8x16xf32>, vector<8x16xf32> -> vector<8x16xf32>
    %c80 = arith.constant 80 : index
    %c0_45 = arith.constant 0 : index
    %115 = vector.load %arg3[%c80, %c0_45] : memref<192x192xf32, #tpu.memory_space<vmem>>, vector<16x192xf32>
    %cst_46 = arith.constant dense<0.000000e+00> : vector<8x192xf32>
    %116 = tpu.matmul %114, %115, %cst_46 {dimension_numbers = #tpu.dot_dimension_numbers<[1], [0], [0], [1], [0, 0, 1, 1], [], []>} : vector<8x16xf32>, vector<16x192xf32>, vector<8x192xf32> -> vector<8x192xf32>
    %117 = arith.addf %98, %116 : vector<8x192xf32>
    %118 = vector.extract_strided_slice %2 {offsets = [0, 96], sizes = [8, 16], strides = [1, 1]} : vector<8x576xf32> to vector<8x16xf32>
    %cst_47 = arith.constant 2.500000e-01 : f32
    %119 = vector.broadcast %cst_47 : f32 to vector<8x16xf32>
    %120 = arith.mulf %118, %119 : vector<8x16xf32>
    %121 = vector.extract_strided_slice %2 {offsets = [0, 288], sizes = [8, 16], strides = [1, 1]} : vector<8x576xf32> to vector<8x16xf32>
    %122 = vector.extract_strided_slice %2 {offsets = [0, 480], sizes = [8, 16], strides = [1, 1]} : vector<8x576xf32> to vector<8x16xf32>
    "tpu.trace_start"() <{level = 10 : i32, message = "qd,kd->qk"}> : () -> ()
    %cst_48 = arith.constant dense<0.000000e+00> : vector<8x8xf32>
    %123 = tpu.matmul %120, %121, %cst_48 {dimension_numbers = #tpu.dot_dimension_numbers<[1], [1], [0], [0], [0, 0, 1, 0], [], []>} : vector<8x16xf32>, vector<8x16xf32>, vector<8x8xf32> -> vector<8x8xf32>
    "tpu.trace_stop"() : () -> ()
    %cst_49 = arith.constant dense<0xFF800000> : vector<8xf32>
    %124 = vector.multi_reduction <maximumf>, %123, %cst_49 [1] : vector<8x8xf32> to vector<8xf32>
    %125 = vector.shape_cast %124 : vector<8xf32> to vector<8x1xf32>
    %126 = vector.broadcast %125 : vector<8x1xf32> to vector<8x8xf32>
    %127 = arith.subf %123, %126 : vector<8x8xf32>
    %128 = math.exp %127 : vector<8x8xf32>
    %cst_50 = arith.constant dense<0.000000e+00> : vector<8xf32>
    %129 = vector.multi_reduction <add>, %128, %cst_50 [1] : vector<8x8xf32> to vector<8xf32>
    %130 = vector.shape_cast %129 : vector<8xf32> to vector<8x1xf32>
    %131 = vector.broadcast %130 : vector<8x1xf32> to vector<8x8xf32>
    %132 = arith.divf %128, %131 : vector<8x8xf32>
    %cst_51 = arith.constant dense<0.000000e+00> : vector<8x16xf32>
    %133 = tpu.matmul %132, %122, %cst_51 {dimension_numbers = #tpu.dot_dimension_numbers<[1], [0], [0], [1], [0, 0, 1, 1], [], []>} : vector<8x8xf32>, vector<8x16xf32>, vector<8x16xf32> -> vector<8x16xf32>
    %c96 = arith.constant 96 : index
    %c0_52 = arith.constant 0 : index
    %134 = vector.load %arg3[%c96, %c0_52] : memref<192x192xf32, #tpu.memory_space<vmem>>, vector<16x192xf32>
    %cst_53 = arith.constant dense<0.000000e+00> : vector<8x192xf32>
    %135 = tpu.matmul %133, %134, %cst_53 {dimension_numbers = #tpu.dot_dimension_numbers<[1], [0], [0], [1], [0, 0, 1, 1], [], []>} : vector<8x16xf32>, vector<16x192xf32>, vector<8x192xf32> -> vector<8x192xf32>
    %136 = arith.addf %117, %135 : vector<8x192xf32>
    %137 = vector.extract_strided_slice %2 {offsets = [0, 112], sizes = [8, 16], strides = [1, 1]} : vector<8x576xf32> to vector<8x16xf32>
    %cst_54 = arith.constant 2.500000e-01 : f32
    %138 = vector.broadcast %cst_54 : f32 to vector<8x16xf32>
    %139 = arith.mulf %137, %138 : vector<8x16xf32>
    %140 = vector.extract_strided_slice %2 {offsets = [0, 304], sizes = [8, 16], strides = [1, 1]} : vector<8x576xf32> to vector<8x16xf32>
    %141 = vector.extract_strided_slice %2 {offsets = [0, 496], sizes = [8, 16], strides = [1, 1]} : vector<8x576xf32> to vector<8x16xf32>
    "tpu.trace_start"() <{level = 10 : i32, message = "qd,kd->qk"}> : () -> ()
    %cst_55 = arith.constant dense<0.000000e+00> : vector<8x8xf32>
    %142 = tpu.matmul %139, %140, %cst_55 {dimension_numbers = #tpu.dot_dimension_numbers<[1], [1], [0], [0], [0, 0, 1, 0], [], []>} : vector<8x16xf32>, vector<8x16xf32>, vector<8x8xf32> -> vector<8x8xf32>
    "tpu.trace_stop"() : () -> ()
    %cst_56 = arith.constant dense<0xFF800000> : vector<8xf32>
    %143 = vector.multi_reduction <maximumf>, %142, %cst_56 [1] : vector<8x8xf32> to vector<8xf32>
    %144 = vector.shape_cast %143 : vector<8xf32> to vector<8x1xf32>
    %145 = vector.broadcast %144 : vector<8x1xf32> to vector<8x8xf32>
    %146 = arith.subf %142, %145 : vector<8x8xf32>
    %147 = math.exp %146 : vector<8x8xf32>
    %cst_57 = arith.constant dense<0.000000e+00> : vector<8xf32>
    %148 = vector.multi_reduction <add>, %147, %cst_57 [1] : vector<8x8xf32> to vector<8xf32>
    %149 = vector.shape_cast %148 : vector<8xf32> to vector<8x1xf32>
    %150 = vector.broadcast %149 : vector<8x1xf32> to vector<8x8xf32>
    %151 = arith.divf %147, %150 : vector<8x8xf32>
    %cst_58 = arith.constant dense<0.000000e+00> : vector<8x16xf32>
    %152 = tpu.matmul %151, %141, %cst_58 {dimension_numbers = #tpu.dot_dimension_numbers<[1], [0], [0], [1], [0, 0, 1, 1], [], []>} : vector<8x8xf32>, vector<8x16xf32>, vector<8x16xf32> -> vector<8x16xf32>
    %c112 = arith.constant 112 : index
    %c0_59 = arith.constant 0 : index
    %153 = vector.load %arg3[%c112, %c0_59] : memref<192x192xf32, #tpu.memory_space<vmem>>, vector<16x192xf32>
    %cst_60 = arith.constant dense<0.000000e+00> : vector<8x192xf32>
    %154 = tpu.matmul %152, %153, %cst_60 {dimension_numbers = #tpu.dot_dimension_numbers<[1], [0], [0], [1], [0, 0, 1, 1], [], []>} : vector<8x16xf32>, vector<16x192xf32>, vector<8x192xf32> -> vector<8x192xf32>
    %155 = arith.addf %136, %154 : vector<8x192xf32>
    %156 = vector.extract_strided_slice %2 {offsets = [0, 128], sizes = [8, 16], strides = [1, 1]} : vector<8x576xf32> to vector<8x16xf32>
    %cst_61 = arith.constant 2.500000e-01 : f32
    %157 = vector.broadcast %cst_61 : f32 to vector<8x16xf32>
    %158 = arith.mulf %156, %157 : vector<8x16xf32>
    %159 = vector.extract_strided_slice %2 {offsets = [0, 320], sizes = [8, 16], strides = [1, 1]} : vector<8x576xf32> to vector<8x16xf32>
    %160 = vector.extract_strided_slice %2 {offsets = [0, 512], sizes = [8, 16], strides = [1, 1]} : vector<8x576xf32> to vector<8x16xf32>
    "tpu.trace_start"() <{level = 10 : i32, message = "qd,kd->qk"}> : () -> ()
    %cst_62 = arith.constant dense<0.000000e+00> : vector<8x8xf32>
    %161 = tpu.matmul %158, %159, %cst_62 {dimension_numbers = #tpu.dot_dimension_numbers<[1], [1], [0], [0], [0, 0, 1, 0], [], []>} : vector<8x16xf32>, vector<8x16xf32>, vector<8x8xf32> -> vector<8x8xf32>
    "tpu.trace_stop"() : () -> ()
    %cst_63 = arith.constant dense<0xFF800000> : vector<8xf32>
    %162 = vector.multi_reduction <maximumf>, %161, %cst_63 [1] : vector<8x8xf32> to vector<8xf32>
    %163 = vector.shape_cast %162 : vector<8xf32> to vector<8x1xf32>
    %164 = vector.broadcast %163 : vector<8x1xf32> to vector<8x8xf32>
    %165 = arith.subf %161, %164 : vector<8x8xf32>
    %166 = math.exp %165 : vector<8x8xf32>
    %cst_64 = arith.constant dense<0.000000e+00> : vector<8xf32>
    %167 = vector.multi_reduction <add>, %166, %cst_64 [1] : vector<8x8xf32> to vector<8xf32>
    %168 = vector.shape_cast %167 : vector<8xf32> to vector<8x1xf32>
    %169 = vector.broadcast %168 : vector<8x1xf32> to vector<8x8xf32>
    %170 = arith.divf %166, %169 : vector<8x8xf32>
    %cst_65 = arith.constant dense<0.000000e+00> : vector<8x16xf32>
    %171 = tpu.matmul %170, %160, %cst_65 {dimension_numbers = #tpu.dot_dimension_numbers<[1], [0], [0], [1], [0, 0, 1, 1], [], []>} : vector<8x8xf32>, vector<8x16xf32>, vector<8x16xf32> -> vector<8x16xf32>
    %c128 = arith.constant 128 : index
    %c0_66 = arith.constant 0 : index
    %172 = vector.load %arg3[%c128, %c0_66] : memref<192x192xf32, #tpu.memory_space<vmem>>, vector<16x192xf32>
    %cst_67 = arith.constant dense<0.000000e+00> : vector<8x192xf32>
    %173 = tpu.matmul %171, %172, %cst_67 {dimension_numbers = #tpu.dot_dimension_numbers<[1], [0], [0], [1], [0, 0, 1, 1], [], []>} : vector<8x16xf32>, vector<16x192xf32>, vector<8x192xf32> -> vector<8x192xf32>
    %174 = arith.addf %155, %173 : vector<8x192xf32>
    %175 = vector.extract_strided_slice %2 {offsets = [0, 144], sizes = [8, 16], strides = [1, 1]} : vector<8x576xf32> to vector<8x16xf32>
    %cst_68 = arith.constant 2.500000e-01 : f32
    %176 = vector.broadcast %cst_68 : f32 to vector<8x16xf32>
    %177 = arith.mulf %175, %176 : vector<8x16xf32>
    %178 = vector.extract_strided_slice %2 {offsets = [0, 336], sizes = [8, 16], strides = [1, 1]} : vector<8x576xf32> to vector<8x16xf32>
    %179 = vector.extract_strided_slice %2 {offsets = [0, 528], sizes = [8, 16], strides = [1, 1]} : vector<8x576xf32> to vector<8x16xf32>
    "tpu.trace_start"() <{level = 10 : i32, message = "qd,kd->qk"}> : () -> ()
    %cst_69 = arith.constant dense<0.000000e+00> : vector<8x8xf32>
    %180 = tpu.matmul %177, %178, %cst_69 {dimension_numbers = #tpu.dot_dimension_numbers<[1], [1], [0], [0], [0, 0, 1, 0], [], []>} : vector<8x16xf32>, vector<8x16xf32>, vector<8x8xf32> -> vector<8x8xf32>
    "tpu.trace_stop"() : () -> ()
    %cst_70 = arith.constant dense<0xFF800000> : vector<8xf32>
    %181 = vector.multi_reduction <maximumf>, %180, %cst_70 [1] : vector<8x8xf32> to vector<8xf32>
    %182 = vector.shape_cast %181 : vector<8xf32> to vector<8x1xf32>
    %183 = vector.broadcast %182 : vector<8x1xf32> to vector<8x8xf32>
    %184 = arith.subf %180, %183 : vector<8x8xf32>
    %185 = math.exp %184 : vector<8x8xf32>
    %cst_71 = arith.constant dense<0.000000e+00> : vector<8xf32>
    %186 = vector.multi_reduction <add>, %185, %cst_71 [1] : vector<8x8xf32> to vector<8xf32>
    %187 = vector.shape_cast %186 : vector<8xf32> to vector<8x1xf32>
    %188 = vector.broadcast %187 : vector<8x1xf32> to vector<8x8xf32>
    %189 = arith.divf %185, %188 : vector<8x8xf32>
    %cst_72 = arith.constant dense<0.000000e+00> : vector<8x16xf32>
    %190 = tpu.matmul %189, %179, %cst_72 {dimension_numbers = #tpu.dot_dimension_numbers<[1], [0], [0], [1], [0, 0, 1, 1], [], []>} : vector<8x8xf32>, vector<8x16xf32>, vector<8x16xf32> -> vector<8x16xf32>
    %c144 = arith.constant 144 : index
    %c0_73 = arith.constant 0 : index
    %191 = vector.load %arg3[%c144, %c0_73] : memref<192x192xf32, #tpu.memory_space<vmem>>, vector<16x192xf32>
    %cst_74 = arith.constant dense<0.000000e+00> : vector<8x192xf32>
    %192 = tpu.matmul %190, %191, %cst_74 {dimension_numbers = #tpu.dot_dimension_numbers<[1], [0], [0], [1], [0, 0, 1, 1], [], []>} : vector<8x16xf32>, vector<16x192xf32>, vector<8x192xf32> -> vector<8x192xf32>
    %193 = arith.addf %174, %192 : vector<8x192xf32>
    %194 = vector.extract_strided_slice %2 {offsets = [0, 160], sizes = [8, 16], strides = [1, 1]} : vector<8x576xf32> to vector<8x16xf32>
    %cst_75 = arith.constant 2.500000e-01 : f32
    %195 = vector.broadcast %cst_75 : f32 to vector<8x16xf32>
    %196 = arith.mulf %194, %195 : vector<8x16xf32>
    %197 = vector.extract_strided_slice %2 {offsets = [0, 352], sizes = [8, 16], strides = [1, 1]} : vector<8x576xf32> to vector<8x16xf32>
    %198 = vector.extract_strided_slice %2 {offsets = [0, 544], sizes = [8, 16], strides = [1, 1]} : vector<8x576xf32> to vector<8x16xf32>
    "tpu.trace_start"() <{level = 10 : i32, message = "qd,kd->qk"}> : () -> ()
    %cst_76 = arith.constant dense<0.000000e+00> : vector<8x8xf32>
    %199 = tpu.matmul %196, %197, %cst_76 {dimension_numbers = #tpu.dot_dimension_numbers<[1], [1], [0], [0], [0, 0, 1, 0], [], []>} : vector<8x16xf32>, vector<8x16xf32>, vector<8x8xf32> -> vector<8x8xf32>
    "tpu.trace_stop"() : () -> ()
    %cst_77 = arith.constant dense<0xFF800000> : vector<8xf32>
    %200 = vector.multi_reduction <maximumf>, %199, %cst_77 [1] : vector<8x8xf32> to vector<8xf32>
    %201 = vector.shape_cast %200 : vector<8xf32> to vector<8x1xf32>
    %202 = vector.broadcast %201 : vector<8x1xf32> to vector<8x8xf32>
    %203 = arith.subf %199, %202 : vector<8x8xf32>
    %204 = math.exp %203 : vector<8x8xf32>
    %cst_78 = arith.constant dense<0.000000e+00> : vector<8xf32>
    %205 = vector.multi_reduction <add>, %204, %cst_78 [1] : vector<8x8xf32> to vector<8xf32>
    %206 = vector.shape_cast %205 : vector<8xf32> to vector<8x1xf32>
    %207 = vector.broadcast %206 : vector<8x1xf32> to vector<8x8xf32>
    %208 = arith.divf %204, %207 : vector<8x8xf32>
    %cst_79 = arith.constant dense<0.000000e+00> : vector<8x16xf32>
    %209 = tpu.matmul %208, %198, %cst_79 {dimension_numbers = #tpu.dot_dimension_numbers<[1], [0], [0], [1], [0, 0, 1, 1], [], []>} : vector<8x8xf32>, vector<8x16xf32>, vector<8x16xf32> -> vector<8x16xf32>
    %c160 = arith.constant 160 : index
    %c0_80 = arith.constant 0 : index
    %210 = vector.load %arg3[%c160, %c0_80] : memref<192x192xf32, #tpu.memory_space<vmem>>, vector<16x192xf32>
    %cst_81 = arith.constant dense<0.000000e+00> : vector<8x192xf32>
    %211 = tpu.matmul %209, %210, %cst_81 {dimension_numbers = #tpu.dot_dimension_numbers<[1], [0], [0], [1], [0, 0, 1, 1], [], []>} : vector<8x16xf32>, vector<16x192xf32>, vector<8x192xf32> -> vector<8x192xf32>
    %212 = arith.addf %193, %211 : vector<8x192xf32>
    %213 = vector.extract_strided_slice %2 {offsets = [0, 176], sizes = [8, 16], strides = [1, 1]} : vector<8x576xf32> to vector<8x16xf32>
    %cst_82 = arith.constant 2.500000e-01 : f32
    %214 = vector.broadcast %cst_82 : f32 to vector<8x16xf32>
    %215 = arith.mulf %213, %214 : vector<8x16xf32>
    %216 = vector.extract_strided_slice %2 {offsets = [0, 368], sizes = [8, 16], strides = [1, 1]} : vector<8x576xf32> to vector<8x16xf32>
    %217 = vector.extract_strided_slice %2 {offsets = [0, 560], sizes = [8, 16], strides = [1, 1]} : vector<8x576xf32> to vector<8x16xf32>
    "tpu.trace_start"() <{level = 10 : i32, message = "qd,kd->qk"}> : () -> ()
    %cst_83 = arith.constant dense<0.000000e+00> : vector<8x8xf32>
    %218 = tpu.matmul %215, %216, %cst_83 {dimension_numbers = #tpu.dot_dimension_numbers<[1], [1], [0], [0], [0, 0, 1, 0], [], []>} : vector<8x16xf32>, vector<8x16xf32>, vector<8x8xf32> -> vector<8x8xf32>
    "tpu.trace_stop"() : () -> ()
    %cst_84 = arith.constant dense<0xFF800000> : vector<8xf32>
    %219 = vector.multi_reduction <maximumf>, %218, %cst_84 [1] : vector<8x8xf32> to vector<8xf32>
    %220 = vector.shape_cast %219 : vector<8xf32> to vector<8x1xf32>
    %221 = vector.broadcast %220 : vector<8x1xf32> to vector<8x8xf32>
    %222 = arith.subf %218, %221 : vector<8x8xf32>
    %223 = math.exp %222 : vector<8x8xf32>
    %cst_85 = arith.constant dense<0.000000e+00> : vector<8xf32>
    %224 = vector.multi_reduction <add>, %223, %cst_85 [1] : vector<8x8xf32> to vector<8xf32>
    %225 = vector.shape_cast %224 : vector<8xf32> to vector<8x1xf32>
    %226 = vector.broadcast %225 : vector<8x1xf32> to vector<8x8xf32>
    %227 = arith.divf %223, %226 : vector<8x8xf32>
    %cst_86 = arith.constant dense<0.000000e+00> : vector<8x16xf32>
    %228 = tpu.matmul %227, %217, %cst_86 {dimension_numbers = #tpu.dot_dimension_numbers<[1], [0], [0], [1], [0, 0, 1, 1], [], []>} : vector<8x8xf32>, vector<8x16xf32>, vector<8x16xf32> -> vector<8x16xf32>
    %c176 = arith.constant 176 : index
    %c0_87 = arith.constant 0 : index
    %229 = vector.load %arg3[%c176, %c0_87] : memref<192x192xf32, #tpu.memory_space<vmem>>, vector<16x192xf32>
    %cst_88 = arith.constant dense<0.000000e+00> : vector<8x192xf32>
    %230 = tpu.matmul %228, %229, %cst_88 {dimension_numbers = #tpu.dot_dimension_numbers<[1], [0], [0], [1], [0, 0, 1, 1], [], []>} : vector<8x16xf32>, vector<16x192xf32>, vector<8x192xf32> -> vector<8x192xf32>
    %231 = arith.addf %212, %230 : vector<8x192xf32>
    %c0_89 = arith.constant 0 : index
    %c0_90 = arith.constant 0 : index
    %232 = vector.load %arg4[%c0_89, %c0_90] : memref<1x192xf32, #tpu.memory_space<vmem>>, vector<1x192xf32>
    %233 = vector.broadcast %232 : vector<1x192xf32> to vector<8x192xf32>
    %234 = arith.addf %231, %233 : vector<8x192xf32>
    %c0_91 = arith.constant 0 : index
    %c0_92 = arith.constant 0 : index
    %235 = vector.load %arg5[%c0_91, %c0_92] : memref<8x192xf32, #tpu.memory_space<vmem>>, vector<8x192xf32>
    tpu.vector_store %arg5[%c0_91, %c0_92], %234 {strides = array<i32>} : memref<8x192xf32, #tpu.memory_space<vmem>>, vector<8x192xf32>,
    return
  }
  func.func @transform_0(%arg0: i32) -> (i32, i32) {
    %c0_i32 = arith.constant 0 : i32
    %c0_i32_0 = arith.constant 0 : i32
    return %arg0, %c0_i32 : i32, i32
  }
  func.func @transform_1(%arg0: i32) -> (i32, i32) {
    %c0_i32 = arith.constant 0 : i32
    %c0_i32_0 = arith.constant 0 : i32
    %c0_i32_1 = arith.constant 0 : i32
    return %c0_i32, %c0_i32_0 : i32, i32
  }
  func.func @transform_2(%arg0: i32) -> (i32, i32) {
    %c0_i32 = arith.constant 0 : i32
    %c0_i32_0 = arith.constant 0 : i32
    %c0_i32_1 = arith.constant 0 : i32
    return %c0_i32, %c0_i32_0 : i32, i32
  }
  func.func @transform_3(%arg0: i32) -> (i32, i32) {
    %c0_i32 = arith.constant 0 : i32
    %c0_i32_0 = arith.constant 0 : i32
    %c0_i32_1 = arith.constant 0 : i32
    return %c0_i32, %c0_i32_0 : i32, i32
  }
  func.func @transform_4(%arg0: i32) -> (i32, i32) {
    %c0_i32 = arith.constant 0 : i32
    %c0_i32_0 = arith.constant 0 : i32
    return %arg0, %c0_i32 : i32, i32
  }
}

</mosaic_0001>

<llo_original>
// kernel: msa_forward.1
$region0: #{msa_forward.1}
  #allocation0 [shape = 'u32[]', space=smem, size = 0x4, offset = 0x4, fixed_abs, tag = 'smem constant byte address 0x4 - core index']
  #allocation1 [shape = 'u32[144,128]{1,0:T(1,128)}', space=vmem, size = 0x12000, scoped, tag = 'internal scratch']
  %s0 = inlined_call_operand.hbm [shape: f32[16,192], index: 0, kind: input, shape index: {}]
  %s1 = inlined_call_operand.hbm [shape: f32[192,576], index: 1, kind: input, shape index: {}]
  %s2 = inlined_call_operand.hbm [shape: f32[192,192], index: 2, kind: input, shape index: {}]
  %s3 = inlined_call_operand.vmem [shape: f32[1,192], index: 3, kind: input, shape index: {}]
  %s4 = inlined_call_operand.hbm [shape: f32[16,192], index: 4, kind: output, shape index: {}]
  %s5 = sld [smem:[#allocation0]]
  $region61: #{msa_forward.1} parent=0
    _
  %s7 = ssub.s32 1, %s5
  %s8 = scalar_select 0, %s7, %s5
  $region1: #{msa_forward.1} parent=0
    #allocation2 [shape = 'u8[16384]{0}', space=vmem, size = 0x4000, scoped, tag = 'input window, operand 0']
    #allocation3 [shape = 's32[2]{0}', space=sflag, size = 0x8, scoped, tag = 'scoped memory for msa_forward.1']
    #allocation4 [shape = 's32[2]{0}', space=sflag, size = 0x8, scoped, tag = 'scoped memory for msa_forward.1']
    #allocation5 [shape = 'u8[491520]{0}', space=vmem, size = 0x78000, scoped, tag = 'input window, operand 1, single buffered']
    #allocation6 [shape = 's32[1]{0}', space=sflag, size = 0x4, scoped, tag = 'scoped memory for msa_forward.1']
    #allocation7 [shape = 'u8[196608]{0}', space=vmem, size = 0x30000, scoped, tag = 'input window, operand 2, single buffered']
    #allocation8 [shape = 'u8[16384]{0}', space=vmem, size = 0x4000, scoped, tag = 'output window, operand 0']
    %9 = vsyncpa [#allocation3], 0
    %s10 = scalar_lea.sflag [#allocation3], 1
    %11 = vsyncpa %s10, 0
    %12 = vsyncpa [#allocation6], 0
    %13 = vsyncpa [#allocation4], 0
    %s14 = scalar_lea.sflag [#allocation4], 1
    %15 = vsyncpa %s14, 0
    loop: start=0, step=1, limit=4
    $region2: #{msa_forward.1} parent=1 // loop_pre_header
      _
    $region3: #{msa_forward.1} parent=1 // loop_header
      %s17 = sphi 0, %s21
      %p18 = scmp.ge.s32.totalorder %s17, 4
      %s27 = sphi 0, %s29
      %s30 = sphi 0, %s27
      %s31 = sphi 0, %s30
      %s47 = sphi 0, %s31
      %s51 = sphi 0, %s51
      %s53 = sphi 0, %s51
      %s54 = sphi 0, %s53
      %s68 = sphi 0, %s54
      %s72 = sphi 0, %s72
      %s74 = sphi 0, %s72
      %s75 = sphi 0, %s74
      %s89 = sphi 0, %s75
      %s93 = sphi 0, %s93
      %s95 = sphi 0, %s93
      %s96 = sphi 0, %s95
      %s110 = sphi 0, %s96
      %s116 = sphi 0, %s118
      %s119 = sphi 0, %s116
      %s120 = sphi 0, %s119
      %s136 = sphi 0, %s120
    $region4: #{msa_forward.1} parent=1 // loop_header_branch
      %20 = sbr.rel (%p18) target = $region8
    $region5: #{msa_forward.1} parent=1 // loop_body
      %s22 = ssub.s32 %s17, 1
      %s23 = ssub.s32 %s17, 2
      %s24 = sadd.s32 %s17, 1
      %s25 = ssub.s32 %s17, %s24
      %p26 = scmp.eq.s32.totalorder %s25, 0
      %s28 = sadd.s32 %s27, 1
      %s29 = scalar_select %p26, %s27, %s28
      %p32 = pneg %p26
      %p33 = scmp.eq.s32.totalorder %s17, 1
      %p34 = por %p32, %p33
      %p35 = scmp.ne.s32.totalorder %s27, %s30
      %p36 = scmp.eq.s32.totalorder %s17, 0
      %p37 = por %p35, %p36
      %p38 = scmp.ne.s32.totalorder %s27, %s30
      %p39 = scmp.eq.s32.totalorder %s22, 1
      %p40 = por %p38, %p39
      %p41 = scmp.ne.s32.totalorder %s30, %s31
      %p42 = scmp.eq.s32.totalorder %s22, 0
      %p43 = por %p41, %p42
      %p44 = scmp.ne.s32.totalorder %s30, %s31
      %p45 = scmp.eq.s32.totalorder %s23, 1
      %p46 = por %p44, %p45
      %p48 = scmp.ne.s32.totalorder %s31, %s47
      %p49 = scmp.eq.s32.totalorder %s23, 0
      %p50 = por %p48, %p49
      %s52 = sadd.s32 %s51, 1
      %p55 = scmp.eq.s32.totalorder %s17, 1
      %p56 = scmp.ne.s32.totalorder %s51, %s53
      %p57 = scmp.eq.s32.totalorder %s17, 0
      %p58 = por %p56, %p57
      %p59 = scmp.ne.s32.totalorder %s51, %s53
      %p60 = scmp.eq.s32.totalorder %s22, 1
      %p61 = por %p59, %p60
      %p62 = scmp.ne.s32.totalorder %s53, %s54
      %p63 = scmp.eq.s32.totalorder %s22, 0
      %p64 = por %p62, %p63
      %p65 = scmp.ne.s32.totalorder %s53, %s54
      %p66 = scmp.eq.s32.totalorder %s23, 1
      %p67 = por %p65, %p66
      %p69 = scmp.ne.s32.totalorder %s54, %s68
      %p70 = scmp.eq.s32.totalorder %s23, 0
      %p71 = por %p69, %p70
      %s73 = sadd.s32 %s72, 1
      %p76 = scmp.eq.s32.totalorder %s17, 1
      %p77 = scmp.ne.s32.totalorder %s72, %s74
      %p78 = scmp.eq.s32.totalorder %s17, 0
      %p79 = por %p77, %p78
      %p80 = scmp.ne.s32.totalorder %s72, %s74
      %p81 = scmp.eq.s32.totalorder %s22, 1
      %p82 = por %p80, %p81
      %p83 = scmp.ne.s32.totalorder %s74, %s75
      %p84 = scmp.eq.s32.totalorder %s22, 0
      %p85 = por %p83, %p84
      %p86 = scmp.ne.s32.totalorder %s74, %s75
      %p87 = scmp.eq.s32.totalorder %s23, 1
      %p88 = por %p86, %p87
      %p90 = scmp.ne.s32.totalorder %s75, %s89
      %p91 = scmp.eq.s32.totalorder %s23, 0
      %p92 = por %p90, %p91
      %s94 = sadd.s32 %s93, 1
      %p97 = scmp.eq.s32.totalorder %s17, 1
      %p98 = scmp.ne.s32.totalorder %s93, %s95
      %p99 = scmp.eq.s32.totalorder %s17, 0
      %p100 = por %p98, %p99
      %p101 = scmp.ne.s32.totalorder %s93, %s95
      %p102 = scmp.eq.s32.totalorder %s22, 1
      %p103 = por %p101, %p102
      %p104 = scmp.ne.s32.totalorder %s95, %s96
      %p105 = scmp.eq.s32.totalorder %s22, 0
      %p106 = por %p104, %p105
      %p107 = scmp.ne.s32.totalorder %s95, %s96
      %p108 = scmp.eq.s32.totalorder %s23, 1
      %p109 = por %p107, %p108
      %p111 = scmp.ne.s32.totalorder %s96, %s110
      %p112 = scmp.eq.s32.totalorder %s23, 0
      %p113 = por %p111, %p112
      %s114 = ssub.s32 %s17, %s24
      %p115 = scmp.eq.s32.totalorder %s114, 0
      %s117 = sadd.s32 %s116, 1
      %s118 = scalar_select %p115, %s116, %s117
      %p121 = pneg %p115
      %p122 = scmp.eq.s32.totalorder %s17, 1
      %p123 = por %p121, %p122
      %p124 = scmp.ne.s32.totalorder %s116, %s119
      %p125 = scmp.eq.s32.totalorder %s17, 0
      %p126 = por %p124, %p125
      %p127 = scmp.ne.s32.totalorder %s116, %s119
      %p128 = scmp.eq.s32.totalorder %s22, 1
      %p129 = por %p127, %p128
      %p130 = scmp.ne.s32.totalorder %s119, %s120
      %p131 = scmp.eq.s32.totalorder %s22, 0
      %p132 = por %p130, %p131
      %p133 = scmp.ne.s32.totalorder %s119, %s120
      %p134 = scmp.eq.s32.totalorder %s23, 1
      %p135 = por %p133, %p134
      %p137 = scmp.ne.s32.totalorder %s120, %s136
      %p138 = scmp.eq.s32.totalorder %s23, 0
      %p139 = por %p137, %p138
      %p140 = scmp.le.s32.totalorder 1, %s17
      %p141 = scmp.lt.s32.totalorder %s17, 3
      %p142 = pnand %p140, %p141
      %p143 = pneg %p142
      // Predicated region
      $region9: #{msa_forward.1} parent=5 // pred_check
        _
      $region10: #{msa_forward.1} parent=5 // pred_check_branch
        %145 = sbr.rel (%p142) target = $region12
      $region11: #{msa_forward.1} parent=5 // pred_region
        %s146 = ssub.s32 %s17, 1
        // Predicated region
        $region13: #{msa_forward.1} parent=11 // pred_check
          %p147 = pneg %p64
        $region14: #{msa_forward.1} parent=11 // pred_check_branch
          %149 = sbr.rel (%p147) target = $region16
        $region15: #{msa_forward.1} parent=11 // pred_region
          %s151 = ssub.s32 15360, 15360
          %152 = vsyncadd [#allocation6], %s151
          %s153 = sshll.u32 [#allocation5], 4
          %s154 = int_to_ptr.vmem [resolvable:$true] %s153
          %159 = dma.hbm_to_vmem [thread:$0]  %s1, 15360, %s154, [#allocation6], 640, 640, 40
        $region16: #{msa_forward.1} parent=11 // pred_fallthru
          _
        // Predicated region
        $region17: #{msa_forward.1} parent=11 // pred_check
          %p160 = pneg %p85
        $region18: #{msa_forward.1} parent=11 // pred_check_branch
          %162 = sbr.rel (%p160) target = $region20
        $region19: #{msa_forward.1} parent=11 // pred_region
          %s164 = ssub.s32 6144, 6144
          %165 = vsyncadd [#allocation6], %s164
          %s166 = sshll.u32 [#allocation7], 4
          %s167 = int_to_ptr.vmem [resolvable:$true] %s166
          %172 = dma.hbm_to_vmem [thread:$0]  %s2, 6144, %s167, [#allocation6], 256, 256, 16
        $region20: #{msa_forward.1} parent=11 // pred_fallthru
          _
        // Predicated region
        $region21: #{msa_forward.1} parent=11 // pred_check
          %p173 = pneg %p106
        $region22: #{msa_forward.1} parent=11 // pred_check_branch
          %175 = sbr.rel (%p173) target = $region24
        $region23: #{msa_forward.1} parent=11 // pred_region
          _
        $region24: #{msa_forward.1} parent=11 // pred_fallthru
          _
      $region12: #{msa_forward.1} parent=5 // pred_fallthru
        _
      %p176 = scmp.lt.s32.totalorder %s17, 2
      // Predicated region
      $region25: #{msa_forward.1} parent=5 // pred_check
        %p177 = pneg %p176
      $region26: #{msa_forward.1} parent=5 // pred_check_branch
        %179 = sbr.rel (%p177) target = $region28
      $region27: #{msa_forward.1} parent=5 // pred_region
        // Predicated region
        $region29: #{msa_forward.1} parent=27 // pred_check
          %p180 = pneg %p37
        $region30: #{msa_forward.1} parent=27 // pred_check_branch
          %182 = sbr.rel (%p180) target = $region32
        $region31: #{msa_forward.1} parent=27 // pred_region
          %s183 = sand.u32 %s27, 1
          %s184 = scalar_lea.sflag [#allocation3], %s183
          %s185 = sand.u32 %s27, 1
          %s186 = smul.addr %s185, 16
          %s187 = scalar_lea.vmem [#allocation2], %s186
          %s189 = ssub.s32 256, 256
          %190 = vsyncadd %s184, %s189
          %s191 = smul.addr %s17, 2
          %s192 = smul.addr %s191, 128
          %s193 = scalar_lea.hbm %s0, %s192
          %s195 = sshll.u32 %s187, 4
          %s196 = int_to_ptr.vmem [resolvable:$true] %s195
          %198 = dma.hbm_to_vmem [thread:$0]  %s193, 256, %s196, %s184
        $region32: #{msa_forward.1} parent=27 // pred_fallthru
          _
      $region28: #{msa_forward.1} parent=5 // pred_fallthru
        _
      %p199 = scmp.le.s32.totalorder 1, %s17
      %p200 = scmp.lt.s32.totalorder %s17, 3
      %p201 = pnand %p199, %p200
      %p202 = pneg %p201
      // Predicated region
      $region33: #{msa_forward.1} parent=5 // pred_check
        _
      $region34: #{msa_forward.1} parent=5 // pred_check_branch
        %204 = sbr.rel (%p201) target = $region36
      $region35: #{msa_forward.1} parent=5 // pred_region
        %s205 = ssub.s32 %s17, 1
        %s206 = sand.u32 %s30, 1
        %s207 = scalar_lea.sflag [#allocation3], %s206
        %s208 = sand.u32 %s30, 1
        %s209 = smul.addr %s208, 16
        %s210 = scalar_lea.vmem [#allocation2], %s209
        // Predicated region
        $region37: #{msa_forward.1} parent=35 // pred_check
          %p211 = pneg %p43
        $region38: #{msa_forward.1} parent=35 // pred_check_branch
          %213 = sbr.rel (%p211) target = $region40
        $region39: #{msa_forward.1} parent=35 // pred_region
          %214 = dma.done %s207, 256
        $region40: #{msa_forward.1} parent=35 // pred_fallthru
          _
        // Predicated region
        $region41: #{msa_forward.1} parent=35 // pred_check
          %p215 = pneg %p64
        $region42: #{msa_forward.1} parent=35 // pred_check_branch
          %217 = sbr.rel (%p215) target = $region44
        $region43: #{msa_forward.1} parent=35 // pred_region
          %218 = dma.done [#allocation6], 15360
        $region44: #{msa_forward.1} parent=35 // pred_fallthru
          _
        // Predicated region
        $region45: #{msa_forward.1} parent=35 // pred_check
          %p219 = pneg %p85
        $region46: #{msa_forward.1} parent=35 // pred_check_branch
          %221 = sbr.rel (%p219) target = $region48
        $region47: #{msa_forward.1} parent=35 // pred_region
          %222 = dma.done [#allocation6], 6144
        $region48: #{msa_forward.1} parent=35 // pred_fallthru
          _
        %s223 = sand.u32 %s30, 1
        %s224 = scalar_lea.sflag [#allocation3], %s223
        %s225 = sand.u32 %s30, 1
        %s226 = smul.addr %s225, 16
        %s227 = scalar_lea.vmem [#allocation2], %s226
        %p228 = pneg %p43
        %p229 = pneg %p40
        %p230 = pneg %p64
        %p231 = pneg %p61
        %p232 = pneg %p85
        %p233 = pneg %p82
        %p234 = pneg %p106
        %p235 = pneg %p103
        %p236 = pneg %p132
        %p237 = pneg %p129
        %s238 = sand.u32 %s119, 1
        %s239 = scalar_lea.sflag [#allocation4], %s238
        %s240 = sand.u32 %s119, 1
        %s241 = smul.addr %s240, 16
        %s242 = scalar_lea.vmem [#allocation8], %s241
        %v243 = vld [vmem:[%s210] sm:$0xff]
        %v244 = vld [vmem:[%s210 + $0x8] sm:$0xff]
        %v245 = vld [vmem:[#allocation5] sm:$0xff]
        %v246 = vld [vmem:[#allocation5 + $0x8] sm:$0xff]
        %v247 = vld [vmem:[#allocation5 + $0x10] sm:$0xff]
        %v248 = vld [vmem:[#allocation5 + $0x18] sm:$0xff]
        %v249 = vld [vmem:[#allocation5 + $0x20] sm:$0xff]
        %v250 = vld [vmem:[#allocation5 + $0x28] sm:$0xff]
        %v251 = vld [vmem:[#allocation5 + $0x30] sm:$0xff]
        %v252 = vld [vmem:[#allocation5 + $0x38] sm:$0xff]
        %v253 = vld [vmem:[#allocation5 + $0x40] sm:$0xff]
        %v254 = vld [vmem:[#allocation5 + $0x48] sm:$0xff]
        %v255 = vld [vmem:[#allocation5 + $0x50] sm:$0xff]
        %v256 = vld [vmem:[#allocation5 + $0x58] sm:$0xff]
        %v257 = vld [vmem:[#allocation5 + $0x60] sm:$0xff]
        %v258 = vld [vmem:[#allocation5 + $0x68] sm:$0xff]
        %v259 = vld [vmem:[#allocation5 + $0x70] sm:$0xff]
        %v260 = vld [vmem:[#allocation5 + $0x78] sm:$0xff]
        %v261 = vld [vmem:[#allocation5 + $0x80] sm:$0xff]
        %v262 = vld [vmem:[#allocation5 + $0x88] sm:$0xff]
        %v263 = vld [vmem:[#allocation5 + $0x90] sm:$0xff]
        %v264 = vld [vmem:[#allocation5 + $0x98] sm:$0xff]
        %v265 = vld [vmem:[#allocation5 + $0xa0] sm:$0xff]
        %v266 = vld [vmem:[#allocation5 + $0xa8] sm:$0xff]
        %v267 = vld [vmem:[#allocation5 + $0xb0] sm:$0xff]
        %v268 = vld [vmem:[#allocation5 + $0xb8] sm:$0xff]
        %v269 = vld [vmem:[#allocation5 + $0xc0] sm:$0xff]
        %v270 = vld [vmem:[#allocation5 + $0xc8] sm:$0xff]
        %v271 = vld [vmem:[#allocation5 + $0xd0] sm:$0xff]
        %v272 = vld [vmem:[#allocation5 + $0xd8] sm:$0xff]
        %v273 = vld [vmem:[#allocation5 + $0xe0] sm:$0xff]
        %v274 = vld [vmem:[#allocation5 + $0xe8] sm:$0xff]
        %v275 = vld [vmem:[#allocation5 + $0xf0] sm:$0xff]
        %v276 = vld [vmem:[#allocation5 + $0xf8] sm:$0xff]
        %v277 = vld [vmem:[#allocation5 + $0x100] sm:$0xff]
        %v278 = vld [vmem:[#allocation5 + $0x108] sm:$0xff]
        %v279 = vld [vmem:[#allocation5 + $0x110] sm:$0xff]
        %v280 = vld [vmem:[#allocation5 + $0x118] sm:$0xff]
        %v281 = vld [vmem:[#allocation5 + $0x120] sm:$0xff]
        %v282 = vld [vmem:[#allocation5 + $0x128] sm:$0xff]
        %v283 = vld [vmem:[#allocation5 + $0x130] sm:$0xff]
        %v284 = vld [vmem:[#allocation5 + $0x138] sm:$0xff]
        %v285 = vld [vmem:[#allocation5 + $0x140] sm:$0xff]
        %v286 = vld [vmem:[#allocation5 + $0x148] sm:$0xff]
        %v287 = vld [vmem:[#allocation5 + $0x150] sm:$0xff]
        %v288 = vld [vmem:[#allocation5 + $0x158] sm:$0xff]
        %v289 = vld [vmem:[#allocation5 + $0x160] sm:$0xff]
        %v290 = vld [vmem:[#allocation5 + $0x168] sm:$0xff]
        %v291 = vld [vmem:[#allocation5 + $0x170] sm:$0xff]
        %v292 = vld [vmem:[#allocation5 + $0x178] sm:$0xff]
        %v293 = vld [vmem:[#allocation5 + $0x180] sm:$0xff]
        %v294 = vld [vmem:[#allocation5 + $0x188] sm:$0xff]
        %v295 = vld [vmem:[#allocation5 + $0x190] sm:$0xff]
        %v296 = vld [vmem:[#allocation5 + $0x198] sm:$0xff]
        %v297 = vld [vmem:[#allocation5 + $0x1a0] sm:$0xff]
        %v298 = vld [vmem:[#allocation5 + $0x1a8] sm:$0xff]
        %v299 = vld [vmem:[#allocation5 + $0x1b0] sm:$0xff]
        %v300 = vld [vmem:[#allocation5 + $0x1b8] sm:$0xff]
        %v301 = vld [vmem:[#allocation5 + $0x1c0] sm:$0xff]
        %v302 = vld [vmem:[#allocation5 + $0x1c8] sm:$0xff]
        %v303 = vld [vmem:[#allocation5 + $0x1d0] sm:$0xff]
        %v304 = vld [vmem:[#allocation5 + $0x1d8] sm:$0xff]
        %v305 = vld [vmem:[#allocation5 + $0x1e0] sm:$0xff]
        %v306 = vld [vmem:[#allocation5 + $0x1e8] sm:$0xff]
        %v307 = vld [vmem:[#allocation5 + $0x1f0] sm:$0xff]
        %v308 = vld [vmem:[#allocation5 + $0x1f8] sm:$0xff]
        %v309 = vld [vmem:[#allocation5 + $0x200] sm:$0xff]
        %v310 = vld [vmem:[#allocation5 + $0x208] sm:$0xff]
        %v311 = vld [vmem:[#allocation5 + $0x210] sm:$0xff]
        %v312 = vld [vmem:[#allocation5 + $0x218] sm:$0xff]
        %v313 = vld [vmem:[#allocation5 + $0x220] sm:$0xff]
        %v314 = vld [vmem:[#allocation5 + $0x228] sm:$0xff]
        %v315 = vld [vmem:[#allocation5 + $0x230] sm:$0xff]
        %v316 = vld [vmem:[#allocation5 + $0x238] sm:$0xff]
        %v317 = vld [vmem:[#allocation5 + $0x240] sm:$0xff]
        %v318 = vld [vmem:[#allocation5 + $0x248] sm:$0xff]
        %v319 = vld [vmem:[#allocation5 + $0x250] sm:$0xff]
        %v320 = vld [vmem:[#allocation5 + $0x258] sm:$0xff]
        %v321 = vld [vmem:[#allocation5 + $0x260] sm:$0xff]
        %v322 = vld [vmem:[#allocation5 + $0x268] sm:$0xff]
        %v323 = vld [vmem:[#allocation5 + $0x270] sm:$0xff]
        %v324 = vld [vmem:[#allocation5 + $0x278] sm:$0xff]
        %v325 = vld [vmem:[#allocation5 + $0x280] sm:$0xff]
        %v326 = vld [vmem:[#allocation5 + $0x288] sm:$0xff]
        %v327 = vld [vmem:[#allocation5 + $0x290] sm:$0xff]
        %v328 = vld [vmem:[#allocation5 + $0x298] sm:$0xff]
        %v329 = vld [vmem:[#allocation5 + $0x2a0] sm:$0xff]
        %v330 = vld [vmem:[#allocation5 + $0x2a8] sm:$0xff]
        %v331 = vld [vmem:[#allocation5 + $0x2b0] sm:$0xff]
        %v332 = vld [vmem:[#allocation5 + $0x2b8] sm:$0xff]
        %v333 = vld [vmem:[#allocation5 + $0x2c0] sm:$0xff]
        %v334 = vld [vmem:[#allocation5 + $0x2c8] sm:$0xff]
        %v335 = vld [vmem:[#allocation5 + $0x2d0] sm:$0xff]
        %v336 = vld [vmem:[#allocation5 + $0x2d8] sm:$0xff]
        %v337 = vld [vmem:[#allocation5 + $0x2e0] sm:$0xff]
        %v338 = vld [vmem:[#allocation5 + $0x2e8] sm:$0xff]
        %v339 = vld [vmem:[#allocation5 + $0x2f0] sm:$0xff]
        %v340 = vld [vmem:[#allocation5 + $0x2f8] sm:$0xff]
        %v341 = vld [vmem:[#allocation5 + $0x300] sm:$0xff]
        %v342 = vld [vmem:[#allocation5 + $0x308] sm:$0xff]
        %v343 = vld [vmem:[#allocation5 + $0x310] sm:$0xff]
        %v344 = vld [vmem:[#allocation5 + $0x318] sm:$0xff]
        %v345 = vld [vmem:[#allocation5 + $0x320] sm:$0xff]
        %v346 = vld [vmem:[#allocation5 + $0x328] sm:$0xff]
        %v347 = vld [vmem:[#allocation5 + $0x330] sm:$0xff]
        %v348 = vld [vmem:[#allocation5 + $0x338] sm:$0xff]
        %v349 = vld [vmem:[#allocation5 + $0x340] sm:$0xff]
        %v350 = vld [vmem:[#allocation5 + $0x348] sm:$0xff]
        %v351 = vld [vmem:[#allocation5 + $0x350] sm:$0xff]
        %v352 = vld [vmem:[#allocation5 + $0x358] sm:$0xff]
        %v353 = vld [vmem:[#allocation5 + $0x360] sm:$0xff]
        %v354 = vld [vmem:[#allocation5 + $0x368] sm:$0xff]
        %v355 = vld [vmem:[#allocation5 + $0x370] sm:$0xff]
        %v356 = vld [vmem:[#allocation5 + $0x378] sm:$0xff]
        %v357 = vld [vmem:[#allocation5 + $0x380] sm:$0xff]
        %v358 = vld [vmem:[#allocation5 + $0x388] sm:$0xff]
        %v359 = vld [vmem:[#allocation5 + $0x390] sm:$0xff]
        %v360 = vld [vmem:[#allocation5 + $0x398] sm:$0xff]
        %v361 = vld [vmem:[#allocation5 + $0x3a0] sm:$0xff]
        %v362 = vld [vmem:[#allocation5 + $0x3a8] sm:$0xff]
        %v363 = vld [vmem:[#allocation5 + $0x3b0] sm:$0xff]
        %v364 = vld [vmem:[#allocation5 + $0x3b8] sm:$0xff]
        %vm365 = vcmask 523264
        %v367 = vsel %vm365, %v244, 0
        %369 = vmatprep.subr.mxu0 %v246
        %370 = vmatpush1.msra.mxu0 %v245
        %371 = vmatprep.subr.mxu0 %v251
        %372 = vmatpush1.msra.mxu0 %v250
        %373 = vmatprep.subr.mxu0 %v256
        %374 = vmatpush1.msra.mxu0 %v255
        %375 = vmatprep.subr.mxu0 %v261
        %376 = vmatpush1.msra.mxu0 %v260
        %377 = vmatprep.subr.mxu0 %v266
        %378 = vmatpush1.msra.mxu0 %v265
        %379 = vmatprep.subr.mxu0 %v271
        %380 = vmatpush1.msra.mxu0 %v270
        %381 = vmatprep.subr.mxu0 %v276
        %382 = vmatpush1.msra.mxu0 %v275
        %383 = vmatprep.subr.mxu0 %v281
        %384 = vmatpush1.msra.mxu0 %v280
        %385 = vmatprep.subr.mxu0 %v286
        %386 = vmatpush1.msra.mxu0 %v285
        %387 = vmatprep.subr.mxu0 %v291
        %388 = vmatpush1.msra.mxu0 %v290
        %389 = vmatprep.subr.mxu0 %v296
        %390 = vmatpush1.msra.mxu0 %v295
        %391 = vmatprep.subr.mxu0 %v301
        %392 = vmatpush1.msra.mxu0 %v300
        %393 = vmatprep.subr.mxu0 %v306
        %394 = vmatpush1.msra.mxu0 %v305
        %395 = vmatprep.subr.mxu0 %v311
        %396 = vmatpush1.msra.mxu0 %v310
        %397 = vmatprep.subr.mxu0 %v316
        %398 = vmatpush1.msra.mxu0 %v315
        %399 = vmatprep.subr.mxu0 %v321
        %400 = vmatpush1.msra.mxu0 %v320
        %401 = vmatprep.subr.mxu0 %v326
        %402 = vmatpush1.msra.mxu0 %v325
        %403 = vmatprep.subr.mxu0 %v331
        %404 = vmatpush1.msra.mxu0 %v330
        %405 = vmatprep.subr.mxu0 %v336
        %406 = vmatpush1.msra.mxu0 %v335
        %407 = vmatprep.subr.mxu0 %v341
        %408 = vmatpush1.msra.mxu0 %v340
        %409 = vmatprep.subr.mxu0 %v346
        %410 = vmatpush1.msra.mxu0 %v345
        %411 = vmatprep.subr.mxu0 %v351
        %412 = vmatpush1.msra.mxu0 %v350
        %413 = vmatprep.subr.mxu0 %v356
        %414 = vmatpush1.msra.mxu0 %v355
        %415 = vmatprep.subr.mxu0 %v361
        %416 = vmatpush1.msra.mxu0 %v360
        %417 = vmatprep.subr.mxu0 0.0
        %418 = vmatpush1.msra.mxu0 0.0
        %419 = vmatprep.subr.mxu0 0.0
        %420 = vmatpush1.msra.mxu0 0.0
        %421 = vmatprep.subr.mxu0 0.0
        %422 = vmatpush1.msra.mxu0 0.0
        %423 = vmatprep.subr.mxu0 0.0
        %424 = vmatpush1.msra.mxu0 0.0
        %425 = vmatprep.subr.mxu0 0.0
        %426 = vmatpush1.msra.mxu0 0.0
        %427 = vmatprep.subr.mxu0 0.0
        %428 = vmatpush1.msra.mxu0 0.0
        %429 = vmatprep.subr.mxu0 0.0
        %430 = vmatpush1.msra.mxu0 0.0
        %431 = vmatprep.subr.mxu0 0.0
        %432 = vmatpush1.msra.mxu0 0.0
        %433 = vmatprep.mubr.f32.mxu0 %v367
        %434 = vmatmul.mubr.f32.gmra.mrb[0].mxu0 %v243
        %v435 = vpop.f32.mrb[0].mxu0
        %v436 = vadd.f32 0.0, %v435
        %v437 = vpop.f32.mrb[0].mxu0
        %v438 = vadd.f32 0.0, %v437
        %439 = vdwg.mxu0
        %440 = vmatprep.subr.mxu0 %v248
        %441 = vmatpush1.msra.mxu0 %v247
        %442 = vmatprep.subr.mxu0 %v253
        %443 = vmatpush1.msra.mxu0 %v252
        %444 = vmatprep.subr.mxu0 %v258
        %445 = vmatpush1.msra.mxu0 %v257
        %446 = vmatprep.subr.mxu0 %v263
        %447 = vmatpush1.msra.mxu0 %v262
        %448 = vmatprep.subr.mxu0 %v268
        %449 = vmatpush1.msra.mxu0 %v267
        %450 = vmatprep.subr.mxu0 %v273
        %451 = vmatpush1.msra.mxu0 %v272
        %452 = vmatprep.subr.mxu0 %v278
        %453 = vmatpush1.msra.mxu0 %v277
        %454 = vmatprep.subr.mxu0 %v283
        %455 = vmatpush1.msra.mxu0 %v282
        %456 = vmatprep.subr.mxu0 %v288
        %457 = vmatpush1.msra.mxu0 %v287
        %458 = vmatprep.subr.mxu0 %v293
        %459 = vmatpush1.msra.mxu0 %v292
        %460 = vmatprep.subr.mxu0 %v298
        %461 = vmatpush1.msra.mxu0 %v297
        %462 = vmatprep.subr.mxu0 %v303
        %463 = vmatpush1.msra.mxu0 %v302
        %464 = vmatprep.subr.mxu0 %v308
        %465 = vmatpush1.msra.mxu0 %v307
        %466 = vmatprep.subr.mxu0 %v313
        %467 = vmatpush1.msra.mxu0 %v312
        %468 = vmatprep.subr.mxu0 %v318
        %469 = vmatpush1.msra.mxu0 %v317
        %470 = vmatprep.subr.mxu0 %v323
        %471 = vmatpush1.msra.mxu0 %v322
        %472 = vmatprep.subr.mxu0 %v328
        %473 = vmatpush1.msra.mxu0 %v327
        %474 = vmatprep.subr.mxu0 %v333
        %475 = vmatpush1.msra.mxu0 %v332
        %476 = vmatprep.subr.mxu0 %v338
        %477 = vmatpush1.msra.mxu0 %v337
        %478 = vmatprep.subr.mxu0 %v343
        %479 = vmatpush1.msra.mxu0 %v342
        %480 = vmatprep.subr.mxu0 %v348
        %481 = vmatpush1.msra.mxu0 %v347
        %482 = vmatprep.subr.mxu0 %v353
        %483 = vmatpush1.msra.mxu0 %v352
        %484 = vmatprep.subr.mxu0 %v358
        %485 = vmatpush1.msra.mxu0 %v357
        %486 = vmatprep.subr.mxu0 %v363
        %487 = vmatpush1.msra.mxu0 %v362
        %488 = vmatprep.subr.mxu0 0.0
        %489 = vmatpush1.msra.mxu0 0.0
        %490 = vmatprep.subr.mxu0 0.0
        %491 = vmatpush1.msra.mxu0 0.0
        %492 = vmatprep.subr.mxu0 0.0
        %493 = vmatpush1.msra.mxu0 0.0
        %494 = vmatprep.subr.mxu0 0.0
        %495 = vmatpush1.msra.mxu0 0.0
        %496 = vmatprep.subr.mxu0 0.0
        %497 = vmatpush1.msra.mxu0 0.0
        %498 = vmatprep.subr.mxu0 0.0
        %499 = vmatpush1.msra.mxu0 0.0
        %500 = vmatprep.subr.mxu0 0.0
        %501 = vmatpush1.msra.mxu0 0.0
        %502 = vmatprep.subr.mxu0 0.0
        %503 = vmatpush1.msra.mxu0 0.0
        %504 = vmatprep.mubr.f32.mxu0 %v367
        %505 = vmatmul.mubr.f32.gmra.mrb[0].mxu0 %v243
        %v506 = vpop.f32.mrb[0].mxu0
        %v507 = vadd.f32 0.0, %v506
        %v508 = vpop.f32.mrb[0].mxu0
        %v509 = vadd.f32 0.0, %v508
        %510 = vdwg.mxu0
        %511 = vmatprep.subr.mxu0 0.0
        %512 = vmatpush1.msra.mxu0 %v249
        %513 = vmatprep.subr.mxu0 0.0
        %514 = vmatpush1.msra.mxu0 %v254
        %515 = vmatprep.subr.mxu0 0.0
        %516 = vmatpush1.msra.mxu0 %v259
        %517 = vmatprep.subr.mxu0 0.0
        %518 = vmatpush1.msra.mxu0 %v264
        %519 = vmatprep.subr.mxu0 0.0
        %520 = vmatpush1.msra.mxu0 %v269
        %521 = vmatprep.subr.mxu0 0.0
        %522 = vmatpush1.msra.mxu0 %v274
        %523 = vmatprep.subr.mxu0 0.0
        %524 = vmatpush1.msra.mxu0 %v279
        %525 = vmatprep.subr.mxu0 0.0
        %526 = vmatpush1.msra.mxu0 %v284
        %527 = vmatprep.subr.mxu0 0.0
        %528 = vmatpush1.msra.mxu0 %v289
        %529 = vmatprep.subr.mxu0 0.0
        %530 = vmatpush1.msra.mxu0 %v294
        %531 = vmatprep.subr.mxu0 0.0
        %532 = vmatpush1.msra.mxu0 %v299
        %533 = vmatprep.subr.mxu0 0.0
        %534 = vmatpush1.msra.mxu0 %v304
        %535 = vmatprep.subr.mxu0 0.0
        %536 = vmatpush1.msra.mxu0 %v309
        %537 = vmatprep.subr.mxu0 0.0
        %538 = vmatpush1.msra.mxu0 %v314
        %539 = vmatprep.subr.mxu0 0.0
        %540 = vmatpush1.msra.mxu0 %v319
        %541 = vmatprep.subr.mxu0 0.0
        %542 = vmatpush1.msra.mxu0 %v324
        %543 = vmatprep.subr.mxu0 0.0
        %544 = vmatpush1.msra.mxu0 %v329
        %545 = vmatprep.subr.mxu0 0.0
        %546 = vmatpush1.msra.mxu0 %v334
        %547 = vmatprep.subr.mxu0 0.0
        %548 = vmatpush1.msra.mxu0 %v339
        %549 = vmatprep.subr.mxu0 0.0
        %550 = vmatpush1.msra.mxu0 %v344
        %551 = vmatprep.subr.mxu0 0.0
        %552 = vmatpush1.msra.mxu0 %v349
        %553 = vmatprep.subr.mxu0 0.0
        %554 = vmatpush1.msra.mxu0 %v354
        %555 = vmatprep.subr.mxu0 0.0
        %556 = vmatpush1.msra.mxu0 %v359
        %557 = vmatprep.subr.mxu0 0.0
        %558 = vmatpush1.msra.mxu0 %v364
        %559 = vmatprep.subr.mxu0 0.0
        %560 = vmatpush1.msra.mxu0 0.0
        %561 = vmatprep.subr.mxu0 0.0
        %562 = vmatpush1.msra.mxu0 0.0
        %563 = vmatprep.subr.mxu0 0.0
        %564 = vmatpush1.msra.mxu0 0.0
        %565 = vmatprep.subr.mxu0 0.0
        %566 = vmatpush1.msra.mxu0 0.0
        %567 = vmatprep.subr.mxu0 0.0
        %568 = vmatpush1.msra.mxu0 0.0
        %569 = vmatprep.subr.mxu0 0.0
        %570 = vmatpush1.msra.mxu0 0.0
        %571 = vmatprep.subr.mxu0 0.0
        %572 = vmatpush1.msra.mxu0 0.0
        %573 = vmatprep.subr.mxu0 0.0
        %574 = vmatpush1.msra.mxu0 0.0
        %575 = vmatprep.mubr.f32.mxu0 %v367
        %576 = vmatmul.mubr.f32.gmra.mrb[0].mxu0 %v243
        %v577 = vpop.f32.mrb[0].mxu0
        %v578 = vadd.f32 0.0, %v577
        %v579 = vpop.f32.mrb[0].mxu0
        %580 = vdwg.mxu0
        %v581 = vmul.f32 %v436, 0.25
        %583 = vrot.lane.b32.xlu0 %v438, 64
        %v584 = vpop.permute.xlu0 %583
        %vm585 = vcmask 130048
        %v587 = vsel %vm585, %v581, 0
        %v589 = vsel %vm585, %v584, 0
        %591 = vmatprep.subr.mxu0 0.0
        %592 = vmatpush1.xpose.msra.mxu0 %v589
        %593 = vmatprep.subr.mxu0 0.0
        %594 = vmatpush1.xpose.msra.mxu0 0.0
        %595 = vmatprep.subr.mxu0 0.0
        %596 = vmatpush1.xpose.msra.mxu0 0.0
        %597 = vmatprep.subr.mxu0 0.0
        %598 = vmatpush1.xpose.msra.mxu0 0.0
        %599 = vmatprep.subr.mxu0 0.0
        %600 = vmatpush1.xpose.msra.mxu0 0.0
        %601 = vmatprep.subr.mxu0 0.0
        %602 = vmatpush1.xpose.msra.mxu0 0.0
        %603 = vmatprep.subr.mxu0 0.0
        %604 = vmatpush1.xpose.msra.mxu0 0.0
        %605 = vmatprep.subr.mxu0 0.0
        %606 = vmatpush1.xpose.msra.mxu0 0.0
        %607 = vmatprep.subr.mxu0 0.0
        %608 = vmatpush1.xpose.msra.mxu0 0.0
        %609 = vmatprep.subr.mxu0 0.0
        %610 = vmatpush1.xpose.msra.mxu0 0.0
        %611 = vmatprep.subr.mxu0 0.0
        %612 = vmatpush1.xpose.msra.mxu0 0.0
        %613 = vmatprep.subr.mxu0 0.0
        %614 = vmatpush1.xpose.msra.mxu0 0.0
        %615 = vmatprep.subr.mxu0 0.0
        %616 = vmatpush1.xpose.msra.mxu0 0.0
        %617 = vmatprep.subr.mxu0 0.0
        %618 = vmatpush1.xpose.msra.mxu0 0.0
        %619 = vmatprep.subr.mxu0 0.0
        %620 = vmatpush1.xpose.msra.mxu0 0.0
        %621 = vmatprep.subr.mxu0 0.0
        %622 = vmatpush1.xpose.msra.mxu0 0.0
        %623 = vmatprep.subr.mxu0 0.0
        %624 = vmatpush1.xpose.msra.mxu0 0.0
        %625 = vmatprep.subr.mxu0 0.0
        %626 = vmatpush1.xpose.msra.mxu0 0.0
        %627 = vmatprep.subr.mxu0 0.0
        %628 = vmatpush1.xpose.msra.mxu0 0.0
        %629 = vmatprep.subr.mxu0 0.0
        %630 = vmatpush1.xpose.msra.mxu0 0.0
        %631 = vmatprep.subr.mxu0 0.0
        %632 = vmatpush1.xpose.msra.mxu0 0.0
        %633 = vmatprep.subr.mxu0 0.0
        %634 = vmatpush1.xpose.msra.mxu0 0.0
        %635 = vmatprep.subr.mxu0 0.0
        %636 = vmatpush1.xpose.msra.mxu0 0.0
        %637 = vmatprep.subr.mxu0 0.0
        %638 = vmatpush1.xpose.msra.mxu0 0.0
        %639 = vmatprep.subr.mxu0 0.0
        %640 = vmatpush1.xpose.msra.mxu0 0.0
        %641 = vmatprep.subr.mxu0 0.0
        %642 = vmatpush1.xpose.msra.mxu0 0.0
        %643 = vmatprep.subr.mxu0 0.0
        %644 = vmatpush1.xpose.msra.mxu0 0.0
        %645 = vmatprep.subr.mxu0 0.0
        %646 = vmatpush1.xpose.msra.mxu0 0.0
        %647 = vmatprep.subr.mxu0 0.0
        %648 = vmatpush1.xpose.msra.mxu0 0.0
        %649 = vmatprep.subr.mxu0 0.0
        %650 = vmatpush1.xpose.msra.mxu0 0.0
        %651 = vmatprep.subr.mxu0 0.0
        %652 = vmatpush1.xpose.msra.mxu0 0.0
        %653 = vmatprep.subr.mxu0 0.0
        %654 = vmatpush1.xpose.msra.mxu0 0.0
        %655 = vmatprep.mubr.f32.mxu0 0.0
        %656 = vmatmul.mubr.f32.gmra.mrb[0].mxu0 %v587
        %v657 = vpop.f32.mrb[0].mxu0
        %v658 = vadd.f32 0.0, %v657
        %v659 = vpop.f32.mrb[0].mxu0
        %660 = vdwg.mxu0
        %vm661 = vcmask 64512
        %v662 = vsel %vm661, %v658, -inf
        %663 = vmax.xlane.f32.xlu0 %v662
        %v664 = vpop.xlane.xlu0 %663
        %v665 = vsub.f32 %v658, %v664
        %v666 = vmul.f32 %v665, 1.442695
        %v667 = vpow.pop %v666
        %v668 = vsel %vm661, %v667, 0.0
        %669 = vadd.xlane.f32.xlu0 %v668
        %v670 = vpop.xlane.xlu0 %669
        %v671 = vrcp.pop %v670
        %v672 = vmul.f32 %v667, %v671
        %v674 = vsel %vm661, %v672, 0
        %676 = vmatprep.subr.mxu0 0.0
        %677 = vmatpush1.msra.mxu0 %v509
        %678 = vmatprep.subr.mxu0 0.0
        %679 = vmatpush1.msra.mxu0 0.0
        %680 = vmatprep.subr.mxu0 0.0
        %681 = vmatpush1.msra.mxu0 0.0
        %682 = vmatprep.subr.mxu0 0.0
        %683 = vmatpush1.msra.mxu0 0.0
        %684 = vmatprep.subr.mxu0 0.0
        %685 = vmatpush1.msra.mxu0 0.0
        %686 = vmatprep.subr.mxu0 0.0
        %687 = vmatpush1.msra.mxu0 0.0
        %688 = vmatprep.subr.mxu0 0.0
        %689 = vmatpush1.msra.mxu0 0.0
        %690 = vmatprep.subr.mxu0 0.0
        %691 = vmatpush1.msra.mxu0 0.0
        %692 = vmatprep.subr.mxu0 0.0
        %693 = vmatpush1.msra.mxu0 0.0
        %694 = vmatprep.subr.mxu0 0.0
        %695 = vmatpush1.msra.mxu0 0.0
        %696 = vmatprep.subr.mxu0 0.0
        %697 = vmatpush1.msra.mxu0 0.0
        %698 = vmatprep.subr.mxu0 0.0
        %699 = vmatpush1.msra.mxu0 0.0
        %700 = vmatprep.subr.mxu0 0.0
        %701 = vmatpush1.msra.mxu0 0.0
        %702 = vmatprep.subr.mxu0 0.0
        %703 = vmatpush1.msra.mxu0 0.0
        %704 = vmatprep.subr.mxu0 0.0
        %705 = vmatpush1.msra.mxu0 0.0
        %706 = vmatprep.subr.mxu0 0.0
        %707 = vmatpush1.msra.mxu0 0.0
        %708 = vmatprep.subr.mxu0 0.0
        %709 = vmatpush1.msra.mxu0 0.0
        %710 = vmatprep.subr.mxu0 0.0
        %711 = vmatpush1.msra.mxu0 0.0
        %712 = vmatprep.subr.mxu0 0.0
        %713 = vmatpush1.msra.mxu0 0.0
        %714 = vmatprep.subr.mxu0 0.0
        %715 = vmatpush1.msra.mxu0 0.0
        %716 = vmatprep.subr.mxu0 0.0
        %717 = vmatpush1.msra.mxu0 0.0
        %718 = vmatprep.subr.mxu0 0.0
        %719 = vmatpush1.msra.mxu0 0.0
        %720 = vmatprep.subr.mxu0 0.0
        %721 = vmatpush1.msra.mxu0 0.0
        %722 = vmatprep.subr.mxu0 0.0
        %723 = vmatpush1.msra.mxu0 0.0
        %724 = vmatprep.subr.mxu0 0.0
        %725 = vmatpush1.msra.mxu0 0.0
        %726 = vmatprep.subr.mxu0 0.0
        %727 = vmatpush1.msra.mxu0 0.0
        %728 = vmatprep.subr.mxu0 0.0
        %729 = vmatpush1.msra.mxu0 0.0
        %730 = vmatprep.subr.mxu0 0.0
        %731 = vmatpush1.msra.mxu0 0.0
        %732 = vmatprep.subr.mxu0 0.0
        %733 = vmatpush1.msra.mxu0 0.0
        %734 = vmatprep.subr.mxu0 0.0
        %735 = vmatpush1.msra.mxu0 0.0
        %736 = vmatprep.subr.mxu0 0.0
        %737 = vmatpush1.msra.mxu0 0.0
        %738 = vmatprep.subr.mxu0 0.0
        %739 = vmatpush1.msra.mxu0 0.0
        %740 = vmatprep.mubr.f32.mxu0 0.0
        %741 = vmatmul.mubr.f32.gmra.mrb[0].mxu0 %v674
        %v742 = vpop.f32.mrb[0].mxu0
        %v743 = vadd.f32 0.0, %v742
        %v744 = vpop.f32.mrb[0].mxu0
        %745 = vdwg.mxu0
        %v746 = vld [vmem:[#allocation7] sm:$0xff]
        %v747 = vld [vmem:[#allocation7 + $0x8] sm:$0xff]
        %v748 = vld [vmem:[#allocation7 + $0x10] sm:$0xff]
        %v749 = vld [vmem:[#allocation7 + $0x18] sm:$0xff]
        %750 = vrot.lane.b32.xlu0 %v581, 112
        %v751 = vpop.permute.xlu0 %750
        %752 = vrot.lane.b32.xlu0 %v438, 48
        %v753 = vpop.permute.xlu0 %752
        %v754 = vsel %vm585, %v751, 0
        %v756 = vsel %vm585, %v753, 0
        %758 = vmatprep.subr.mxu0 0.0
        %759 = vmatpush1.xpose.msra.mxu0 %v756
        %760 = vmatprep.subr.mxu0 0.0
        %761 = vmatpush1.xpose.msra.mxu0 0.0
        %762 = vmatprep.subr.mxu0 0.0
        %763 = vmatpush1.xpose.msra.mxu0 0.0
        %764 = vmatprep.subr.mxu0 0.0
        %765 = vmatpush1.xpose.msra.mxu0 0.0
        %766 = vmatprep.subr.mxu0 0.0
        %767 = vmatpush1.xpose.msra.mxu0 0.0
        %768 = vmatprep.subr.mxu0 0.0
        %769 = vmatpush1.xpose.msra.mxu0 0.0
        %770 = vmatprep.subr.mxu0 0.0
        %771 = vmatpush1.xpose.msra.mxu0 0.0
        %772 = vmatprep.subr.mxu0 0.0
        %773 = vmatpush1.xpose.msra.mxu0 0.0
        %774 = vmatprep.subr.mxu0 0.0
        %775 = vmatpush1.xpose.msra.mxu0 0.0
        %776 = vmatprep.subr.mxu0 0.0
        %777 = vmatpush1.xpose.msra.mxu0 0.0
        %778 = vmatprep.subr.mxu0 0.0
        %779 = vmatpush1.xpose.msra.mxu0 0.0
        %780 = vmatprep.subr.mxu0 0.0
        %781 = vmatpush1.xpose.msra.mxu0 0.0
        %782 = vmatprep.subr.mxu0 0.0
        %783 = vmatpush1.xpose.msra.mxu0 0.0
        %784 = vmatprep.subr.mxu0 0.0
        %785 = vmatpush1.xpose.msra.mxu0 0.0
        %786 = vmatprep.subr.mxu0 0.0
        %787 = vmatpush1.xpose.msra.mxu0 0.0
        %788 = vmatprep.subr.mxu0 0.0
        %789 = vmatpush1.xpose.msra.mxu0 0.0
        %790 = vmatprep.subr.mxu0 0.0
        %791 = vmatpush1.xpose.msra.mxu0 0.0
        %792 = vmatprep.subr.mxu0 0.0
        %793 = vmatpush1.xpose.msra.mxu0 0.0
        %794 = vmatprep.subr.mxu0 0.0
        %795 = vmatpush1.xpose.msra.mxu0 0.0
        %796 = vmatprep.subr.mxu0 0.0
        %797 = vmatpush1.xpose.msra.mxu0 0.0
        %798 = vmatprep.subr.mxu0 0.0
        %799 = vmatpush1.xpose.msra.mxu0 0.0
        %800 = vmatprep.subr.mxu0 0.0
        %801 = vmatpush1.xpose.msra.mxu0 0.0
        %802 = vmatprep.subr.mxu0 0.0
        %803 = vmatpush1.xpose.msra.mxu0 0.0
        %804 = vmatprep.subr.mxu0 0.0
        %805 = vmatpush1.xpose.msra.mxu0 0.0
        %806 = vmatprep.subr.mxu0 0.0
        %807 = vmatpush1.xpose.msra.mxu0 0.0
        %808 = vmatprep.subr.mxu0 0.0
        %809 = vmatpush1.xpose.msra.mxu0 0.0
        %810 = vmatprep.subr.mxu0 0.0
        %811 = vmatpush1.xpose.msra.mxu0 0.0
        %812 = vmatprep.subr.mxu0 0.0
        %813 = vmatpush1.xpose.msra.mxu0 0.0
        %814 = vmatprep.subr.mxu0 0.0
        %815 = vmatpush1.xpose.msra.mxu0 0.0
        %816 = vmatprep.subr.mxu0 0.0
        %817 = vmatpush1.xpose.msra.mxu0 0.0
        %818 = vmatprep.subr.mxu0 0.0
        %819 = vmatpush1.xpose.msra.mxu0 0.0
        %820 = vmatprep.subr.mxu0 0.0
        %821 = vmatpush1.xpose.msra.mxu0 0.0
        %822 = vmatprep.mubr.f32.mxu0 0.0
        %823 = vmatmul.mubr.f32.gmra.mrb[0].mxu0 %v754
        %v824 = vpop.f32.mrb[0].mxu0
        %v825 = vadd.f32 0.0, %v824
        %v826 = vpop.f32.mrb[0].mxu0
        %827 = vdwg.mxu0
        %v828 = vsel %vm661, %v825, -inf
        %829 = vmax.xlane.f32.xlu0 %v828
        %v830 = vpop.xlane.xlu0 %829
        %v831 = vsub.f32 %v825, %v830
        %v832 = vmul.f32 %v831, 1.442695
        %v833 = vpow.pop %v832
        %v834 = vsel %vm661, %v833, 0.0
        %835 = vadd.xlane.f32.xlu0 %v834
        %v836 = vpop.xlane.xlu0 %835
        %v837 = vrcp.pop %v836
        %v838 = vmul.f32 %v833, %v837
        %840 = vrot.lane.b32.xlu0 %v509, 112
        %v841 = vpop.permute.xlu0 %840
        %v844 = vsel %vm661, %v838, 0
        %846 = vmatprep.subr.mxu0 0.0
        %847 = vmatpush1.msra.mxu0 %v841
        %848 = vmatprep.subr.mxu0 0.0
        %849 = vmatpush1.msra.mxu0 0.0
        %850 = vmatprep.subr.mxu0 0.0
        %851 = vmatpush1.msra.mxu0 0.0
        %852 = vmatprep.subr.mxu0 0.0
        %853 = vmatpush1.msra.mxu0 0.0
        %854 = vmatprep.subr.mxu0 0.0
        %855 = vmatpush1.msra.mxu0 0.0
        %856 = vmatprep.subr.mxu0 0.0
        %857 = vmatpush1.msra.mxu0 0.0
        %858 = vmatprep.subr.mxu0 0.0
        %859 = vmatpush1.msra.mxu0 0.0
        %860 = vmatprep.subr.mxu0 0.0
        %861 = vmatpush1.msra.mxu0 0.0
        %862 = vmatprep.subr.mxu0 0.0
        %863 = vmatpush1.msra.mxu0 0.0
        %864 = vmatprep.subr.mxu0 0.0
        %865 = vmatpush1.msra.mxu0 0.0
        %866 = vmatprep.subr.mxu0 0.0
        %867 = vmatpush1.msra.mxu0 0.0
        %868 = vmatprep.subr.mxu0 0.0
        %869 = vmatpush1.msra.mxu0 0.0
        %870 = vmatprep.subr.mxu0 0.0
        %871 = vmatpush1.msra.mxu0 0.0
        %872 = vmatprep.subr.mxu0 0.0
        %873 = vmatpush1.msra.mxu0 0.0
        %874 = vmatprep.subr.mxu0 0.0
        %875 = vmatpush1.msra.mxu0 0.0
        %876 = vmatprep.subr.mxu0 0.0
        %877 = vmatpush1.msra.mxu0 0.0
        %878 = vmatprep.subr.mxu0 0.0
        %879 = vmatpush1.msra.mxu0 0.0
        %880 = vmatprep.subr.mxu0 0.0
        %881 = vmatpush1.msra.mxu0 0.0
        %882 = vmatprep.subr.mxu0 0.0
        %883 = vmatpush1.msra.mxu0 0.0
        %884 = vmatprep.subr.mxu0 0.0
        %885 = vmatpush1.msra.mxu0 0.0
        %886 = vmatprep.subr.mxu0 0.0
        %887 = vmatpush1.msra.mxu0 0.0
        %888 = vmatprep.subr.mxu0 0.0
        %889 = vmatpush1.msra.mxu0 0.0
        %890 = vmatprep.subr.mxu0 0.0
        %891 = vmatpush1.msra.mxu0 0.0
        %892 = vmatprep.subr.mxu0 0.0
        %893 = vmatpush1.msra.mxu0 0.0
        %894 = vmatprep.subr.mxu0 0.0
        %895 = vmatpush1.msra.mxu0 0.0
        %896 = vmatprep.subr.mxu0 0.0
        %897 = vmatpush1.msra.mxu0 0.0
        %898 = vmatprep.subr.mxu0 0.0
        %899 = vmatpush1.msra.mxu0 0.0
        %900 = vmatprep.subr.mxu0 0.0
        %901 = vmatpush1.msra.mxu0 0.0
        %902 = vmatprep.subr.mxu0 0.0
        %903 = vmatpush1.msra.mxu0 0.0
        %904 = vmatprep.subr.mxu0 0.0
        %905 = vmatpush1.msra.mxu0 0.0
        %906 = vmatprep.subr.mxu0 0.0
        %907 = vmatpush1.msra.mxu0 0.0
        %908 = vmatprep.subr.mxu0 0.0
        %909 = vmatpush1.msra.mxu0 0.0
        %910 = vmatprep.mubr.f32.mxu0 0.0
        %911 = vmatmul.mubr.f32.gmra.mrb[0].mxu0 %v844
        %v912 = vpop.f32.mrb[0].mxu0
        %v913 = vadd.f32 0.0, %v912
        %v914 = vpop.f32.mrb[0].mxu0
        %915 = vdwg.mxu0
        %v916 = vld [vmem:[#allocation7 + $0x20] sm:$0xff]
        %v917 = vld [vmem:[#allocation7 + $0x28] sm:$0xff]
        %v918 = vld [vmem:[#allocation7 + $0x30] sm:$0xff]
        %v919 = vld [vmem:[#allocation7 + $0x38] sm:$0xff]
        %v921 = vsel %vm585, %v913, 0
        %923 = vmatprep.subr.mxu0 %v917
        %924 = vmatpush1.msra.mxu0 %v916
        %925 = vmatprep.subr.mxu0 %v919
        %926 = vmatpush1.msra.mxu0 %v918
        %927 = vmatprep.subr.mxu0 0.0
        %928 = vmatpush1.msra.mxu0 0.0
        %929 = vmatprep.subr.mxu0 0.0
        %930 = vmatpush1.msra.mxu0 0.0
        %931 = vmatprep.subr.mxu0 0.0
        %932 = vmatpush1.msra.mxu0 0.0
        %933 = vmatprep.subr.mxu0 0.0
        %934 = vmatpush1.msra.mxu0 0.0
        %935 = vmatprep.subr.mxu0 0.0
        %936 = vmatpush1.msra.mxu0 0.0
        %937 = vmatprep.subr.mxu0 0.0
        %938 = vmatpush1.msra.mxu0 0.0
        %939 = vmatprep.subr.mxu0 0.0
        %940 = vmatpush1.msra.mxu0 0.0
        %941 = vmatprep.subr.mxu0 0.0
        %942 = vmatpush1.msra.mxu0 0.0
        %943 = vmatprep.subr.mxu0 0.0
        %944 = vmatpush1.msra.mxu0 0.0
        %945 = vmatprep.subr.mxu0 0.0
        %946 = vmatpush1.msra.mxu0 0.0
        %947 = vmatprep.subr.mxu0 0.0
        %948 = vmatpush1.msra.mxu0 0.0
        %949 = vmatprep.subr.mxu0 0.0
        %950 = vmatpush1.msra.mxu0 0.0
        %951 = vmatprep.subr.mxu0 0.0
        %952 = vmatpush1.msra.mxu0 0.0
        %953 = vmatprep.subr.mxu0 0.0
        %954 = vmatpush1.msra.mxu0 0.0
        %955 = vmatprep.subr.mxu0 0.0
        %956 = vmatpush1.msra.mxu0 0.0
        %957 = vmatprep.subr.mxu0 0.0
        %958 = vmatpush1.msra.mxu0 0.0
        %959 = vmatprep.subr.mxu0 0.0
        %960 = vmatpush1.msra.mxu0 0.0
        %961 = vmatprep.subr.mxu0 0.0
        %962 = vmatpush1.msra.mxu0 0.0
        %963 = vmatprep.subr.mxu0 0.0
        %964 = vmatpush1.msra.mxu0 0.0
        %965 = vmatprep.subr.mxu0 0.0
        %966 = vmatpush1.msra.mxu0 0.0
        %967 = vmatprep.subr.mxu0 0.0
        %968 = vmatpush1.msra.mxu0 0.0
        %969 = vmatprep.subr.mxu0 0.0
        %970 = vmatpush1.msra.mxu0 0.0
        %971 = vmatprep.subr.mxu0 0.0
        %972 = vmatpush1.msra.mxu0 0.0
        %973 = vmatprep.subr.mxu0 0.0
        %974 = vmatpush1.msra.mxu0 0.0
        %975 = vmatprep.subr.mxu0 0.0
        %976 = vmatpush1.msra.mxu0 0.0
        %977 = vmatprep.subr.mxu0 0.0
        %978 = vmatpush1.msra.mxu0 0.0
        %979 = vmatprep.subr.mxu0 0.0
        %980 = vmatpush1.msra.mxu0 0.0
        %981 = vmatprep.subr.mxu0 0.0
        %982 = vmatpush1.msra.mxu0 0.0
        %983 = vmatprep.subr.mxu0 0.0
        %984 = vmatpush1.msra.mxu0 0.0
        %985 = vmatprep.subr.mxu0 0.0
        %986 = vmatpush1.msra.mxu0 0.0
        %987 = vmatprep.mubr.f32.mxu0 0.0
        %988 = vmatmul.mubr.f32.gmra.mrb[0].mxu0 %v921
        %v989 = vpop.f32.mrb[0].mxu0
        %v990 = vadd.f32 0.0, %v989
        %v991 = vpop.f32.mrb[0].mxu0
        %v992 = vadd.f32 0.0, %v991
        %993 = vdwg.mxu0
        %v995 = vsel %vm585, %v743, 0
        %997 = vmatprep.subr.mxu0 %v747
        %998 = vmatpush1.msra.mxu0 %v746
        %999 = vmatprep.subr.mxu0 %v749
        %1000 = vmatpush1.msra.mxu0 %v748
        %1001 = vmatprep.subr.mxu0 0.0
        %1002 = vmatpush1.msra.mxu0 0.0
        %1003 = vmatprep.subr.mxu0 0.0
        %1004 = vmatpush1.msra.mxu0 0.0
        %1005 = vmatprep.subr.mxu0 0.0
        %1006 = vmatpush1.msra.mxu0 0.0
        %1007 = vmatprep.subr.mxu0 0.0
        %1008 = vmatpush1.msra.mxu0 0.0
        %1009 = vmatprep.subr.mxu0 0.0
        %1010 = vmatpush1.msra.mxu0 0.0
        %1011 = vmatprep.subr.mxu0 0.0
        %1012 = vmatpush1.msra.mxu0 0.0
        %1013 = vmatprep.subr.mxu0 0.0
        %1014 = vmatpush1.msra.mxu0 0.0
        %1015 = vmatprep.subr.mxu0 0.0
        %1016 = vmatpush1.msra.mxu0 0.0
        %1017 = vmatprep.subr.mxu0 0.0
        %1018 = vmatpush1.msra.mxu0 0.0
        %1019 = vmatprep.subr.mxu0 0.0
        %1020 = vmatpush1.msra.mxu0 0.0
        %1021 = vmatprep.subr.mxu0 0.0
        %1022 = vmatpush1.msra.mxu0 0.0
        %1023 = vmatprep.subr.mxu0 0.0
        %1024 = vmatpush1.msra.mxu0 0.0
        %1025 = vmatprep.subr.mxu0 0.0
        %1026 = vmatpush1.msra.mxu0 0.0
        %1027 = vmatprep.subr.mxu0 0.0
        %1028 = vmatpush1.msra.mxu0 0.0
        %1029 = vmatprep.subr.mxu0 0.0
        %1030 = vmatpush1.msra.mxu0 0.0
        %1031 = vmatprep.subr.mxu0 0.0
        %1032 = vmatpush1.msra.mxu0 0.0
        %1033 = vmatprep.subr.mxu0 0.0
        %1034 = vmatpush1.msra.mxu0 0.0
        %1035 = vmatprep.subr.mxu0 0.0
        %1036 = vmatpush1.msra.mxu0 0.0
        %1037 = vmatprep.subr.mxu0 0.0
        %1038 = vmatpush1.msra.mxu0 0.0
        %1039 = vmatprep.subr.mxu0 0.0
        %1040 = vmatpush1.msra.mxu0 0.0
        %1041 = vmatprep.subr.mxu0 0.0
        %1042 = vmatpush1.msra.mxu0 0.0
        %1043 = vmatprep.subr.mxu0 0.0
        %1044 = vmatpush1.msra.mxu0 0.0
        %1045 = vmatprep.subr.mxu0 0.0
        %1046 = vmatpush1.msra.mxu0 0.0
        %1047 = vmatprep.subr.mxu0 0.0
        %1048 = vmatpush1.msra.mxu0 0.0
        %1049 = vmatprep.subr.mxu0 0.0
        %1050 = vmatpush1.msra.mxu0 0.0
        %1051 = vmatprep.subr.mxu0 0.0
        %1052 = vmatpush1.msra.mxu0 0.0
        %1053 = vmatprep.subr.mxu0 0.0
        %1054 = vmatpush1.msra.mxu0 0.0
        %1055 = vmatprep.subr.mxu0 0.0
        %1056 = vmatpush1.msra.mxu0 0.0
        %1057 = vmatprep.subr.mxu0 0.0
        %1058 = vmatpush1.msra.mxu0 0.0
        %1059 = vmatprep.subr.mxu0 0.0
        %1060 = vmatpush1.msra.mxu0 0.0
        %1061 = vmatprep.mubr.f32.mxu0 0.0
        %1062 = vmatmul.mubr.f32.gmra.mrb[0].mxu0 %v995
        %v1063 = vpop.f32.mrb[0].mxu0
        %v1064 = vadd.f32 %v990, %v1063
        %v1065 = vpop.f32.mrb[0].mxu0
        %v1066 = vadd.f32 %v992, %v1065
        %1067 = vdwg.mxu0
        %1068 = vrot.lane.b32.xlu0 %v581, 96
        %v1069 = vpop.permute.xlu0 %1068
        %1070 = vrot.lane.b32.xlu0 %v438, 32
        %v1071 = vpop.permute.xlu0 %1070
        %v1072 = vsel %vm585, %v1069, 0
        %v1074 = vsel %vm585, %v1071, 0
        %1076 = vmatprep.subr.mxu0 0.0
        %1077 = vmatpush1.xpose.msra.mxu0 %v1074
        %1078 = vmatprep.subr.mxu0 0.0
        %1079 = vmatpush1.xpose.msra.mxu0 0.0
        %1080 = vmatprep.subr.mxu0 0.0
        %1081 = vmatpush1.xpose.msra.mxu0 0.0
        %1082 = vmatprep.subr.mxu0 0.0
        %1083 = vmatpush1.xpose.msra.mxu0 0.0
        %1084 = vmatprep.subr.mxu0 0.0
        %1085 = vmatpush1.xpose.msra.mxu0 0.0
        %1086 = vmatprep.subr.mxu0 0.0
        %1087 = vmatpush1.xpose.msra.mxu0 0.0
        %1088 = vmatprep.subr.mxu0 0.0
        %1089 = vmatpush1.xpose.msra.mxu0 0.0
        %1090 = vmatprep.subr.mxu0 0.0
        %1091 = vmatpush1.xpose.msra.mxu0 0.0
        %1092 = vmatprep.subr.mxu0 0.0
        %1093 = vmatpush1.xpose.msra.mxu0 0.0
        %1094 = vmatprep.subr.mxu0 0.0
        %1095 = vmatpush1.xpose.msra.mxu0 0.0
        %1096 = vmatprep.subr.mxu0 0.0
        %1097 = vmatpush1.xpose.msra.mxu0 0.0
        %1098 = vmatprep.subr.mxu0 0.0
        %1099 = vmatpush1.xpose.msra.mxu0 0.0
        %1100 = vmatprep.subr.mxu0 0.0
        %1101 = vmatpush1.xpose.msra.mxu0 0.0
        %1102 = vmatprep.subr.mxu0 0.0
        %1103 = vmatpush1.xpose.msra.mxu0 0.0
        %1104 = vmatprep.subr.mxu0 0.0
        %1105 = vmatpush1.xpose.msra.mxu0 0.0
        %1106 = vmatprep.subr.mxu0 0.0
        %1107 = vmatpush1.xpose.msra.mxu0 0.0
        %1108 = vmatprep.subr.mxu0 0.0
        %1109 = vmatpush1.xpose.msra.mxu0 0.0
        %1110 = vmatprep.subr.mxu0 0.0
        %1111 = vmatpush1.xpose.msra.mxu0 0.0
        %1112 = vmatprep.subr.mxu0 0.0
        %1113 = vmatpush1.xpose.msra.mxu0 0.0
        %1114 = vmatprep.subr.mxu0 0.0
        %1115 = vmatpush1.xpose.msra.mxu0 0.0
        %1116 = vmatprep.subr.mxu0 0.0
        %1117 = vmatpush1.xpose.msra.mxu0 0.0
        %1118 = vmatprep.subr.mxu0 0.0
        %1119 = vmatpush1.xpose.msra.mxu0 0.0
        %1120 = vmatprep.subr.mxu0 0.0
        %1121 = vmatpush1.xpose.msra.mxu0 0.0
        %1122 = vmatprep.subr.mxu0 0.0
        %1123 = vmatpush1.xpose.msra.mxu0 0.0
        %1124 = vmatprep.subr.mxu0 0.0
        %1125 = vmatpush1.xpose.msra.mxu0 0.0
        %1126 = vmatprep.subr.mxu0 0.0
        %1127 = vmatpush1.xpose.msra.mxu0 0.0
        %1128 = vmatprep.subr.mxu0 0.0
        %1129 = vmatpush1.xpose.msra.mxu0 0.0
        %1130 = vmatprep.subr.mxu0 0.0
        %1131 = vmatpush1.xpose.msra.mxu0 0.0
        %1132 = vmatprep.subr.mxu0 0.0
        %1133 = vmatpush1.xpose.msra.mxu0 0.0
        %1134 = vmatprep.subr.mxu0 0.0
        %1135 = vmatpush1.xpose.msra.mxu0 0.0
        %1136 = vmatprep.subr.mxu0 0.0
        %1137 = vmatpush1.xpose.msra.mxu0 0.0
        %1138 = vmatprep.subr.mxu0 0.0
        %1139 = vmatpush1.xpose.msra.mxu0 0.0
        %1140 = vmatprep.mubr.f32.mxu0 0.0
        %1141 = vmatmul.mubr.f32.gmra.mrb[0].mxu0 %v1072
        %v1142 = vpop.f32.mrb[0].mxu0
        %v1143 = vadd.f32 0.0, %v1142
        %v1144 = vpop.f32.mrb[0].mxu0
        %1145 = vdwg.mxu0
        %v1146 = vsel %vm661, %v1143, -inf
        %1147 = vmax.xlane.f32.xlu0 %v1146
        %v1148 = vpop.xlane.xlu0 %1147
        %v1149 = vsub.f32 %v1143, %v1148
        %v1150 = vmul.f32 %v1149, 1.442695
        %v1151 = vpow.pop %v1150
        %v1152 = vsel %vm661, %v1151, 0.0
        %1153 = vadd.xlane.f32.xlu0 %v1152
        %v1154 = vpop.xlane.xlu0 %1153
        %v1155 = vrcp.pop %v1154
        %v1156 = vmul.f32 %v1151, %v1155
        %1157 = vrot.lane.b32.xlu0 %v509, 96
        %v1158 = vpop.permute.xlu0 %1157
        %v1161 = vsel %vm661, %v1156, 0
        %1163 = vmatprep.subr.mxu0 0.0
        %1164 = vmatpush1.msra.mxu0 %v1158
        %1165 = vmatprep.subr.mxu0 0.0
        %1166 = vmatpush1.msra.mxu0 0.0
        %1167 = vmatprep.subr.mxu0 0.0
        %1168 = vmatpush1.msra.mxu0 0.0
        %1169 = vmatprep.subr.mxu0 0.0
        %1170 = vmatpush1.msra.mxu0 0.0
        %1171 = vmatprep.subr.mxu0 0.0
        %1172 = vmatpush1.msra.mxu0 0.0
        %1173 = vmatprep.subr.mxu0 0.0
        %1174 = vmatpush1.msra.mxu0 0.0
        %1175 = vmatprep.subr.mxu0 0.0
        %1176 = vmatpush1.msra.mxu0 0.0
        %1177 = vmatprep.subr.mxu0 0.0
        %1178 = vmatpush1.msra.mxu0 0.0
        %1179 = vmatprep.subr.mxu0 0.0
        %1180 = vmatpush1.msra.mxu0 0.0
        %1181 = vmatprep.subr.mxu0 0.0
        %1182 = vmatpush1.msra.mxu0 0.0
        %1183 = vmatprep.subr.mxu0 0.0
        %1184 = vmatpush1.msra.mxu0 0.0
        %1185 = vmatprep.subr.mxu0 0.0
        %1186 = vmatpush1.msra.mxu0 0.0
        %1187 = vmatprep.subr.mxu0 0.0
        %1188 = vmatpush1.msra.mxu0 0.0
        %1189 = vmatprep.subr.mxu0 0.0
        %1190 = vmatpush1.msra.mxu0 0.0
        %1191 = vmatprep.subr.mxu0 0.0
        %1192 = vmatpush1.msra.mxu0 0.0
        %1193 = vmatprep.subr.mxu0 0.0
        %1194 = vmatpush1.msra.mxu0 0.0
        %1195 = vmatprep.subr.mxu0 0.0
        %1196 = vmatpush1.msra.mxu0 0.0
        %1197 = vmatprep.subr.mxu0 0.0
        %1198 = vmatpush1.msra.mxu0 0.0
        %1199 = vmatprep.subr.mxu0 0.0
        %1200 = vmatpush1.msra.mxu0 0.0
        %1201 = vmatprep.subr.mxu0 0.0
        %1202 = vmatpush1.msra.mxu0 0.0
        %1203 = vmatprep.subr.mxu0 0.0
        %1204 = vmatpush1.msra.mxu0 0.0
        %1205 = vmatprep.subr.mxu0 0.0
        %1206 = vmatpush1.msra.mxu0 0.0
        %1207 = vmatprep.subr.mxu0 0.0
        %1208 = vmatpush1.msra.mxu0 0.0
        %1209 = vmatprep.subr.mxu0 0.0
        %1210 = vmatpush1.msra.mxu0 0.0
        %1211 = vmatprep.subr.mxu0 0.0
        %1212 = vmatpush1.msra.mxu0 0.0
        %1213 = vmatprep.subr.mxu0 0.0
        %1214 = vmatpush1.msra.mxu0 0.0
        %1215 = vmatprep.subr.mxu0 0.0
        %1216 = vmatpush1.msra.mxu0 0.0
        %1217 = vmatprep.subr.mxu0 0.0
        %1218 = vmatpush1.msra.mxu0 0.0
        %1219 = vmatprep.subr.mxu0 0.0
        %1220 = vmatpush1.msra.mxu0 0.0
        %1221 = vmatprep.subr.mxu0 0.0
        %1222 = vmatpush1.msra.mxu0 0.0
        %1223 = vmatprep.subr.mxu0 0.0
        %1224 = vmatpush1.msra.mxu0 0.0
        %1225 = vmatprep.subr.mxu0 0.0
        %1226 = vmatpush1.msra.mxu0 0.0
        %1227 = vmatprep.mubr.f32.mxu0 0.0
        %1228 = vmatmul.mubr.f32.gmra.mrb[0].mxu0 %v1161
        %v1229 = vpop.f32.mrb[0].mxu0
        %v1230 = vadd.f32 0.0, %v1229
        %v1231 = vpop.f32.mrb[0].mxu0
        %1232 = vdwg.mxu0
        %v1233 = vld [vmem:[#allocation7 + $0x40] sm:$0xff]
        %v1234 = vld [vmem:[#allocation7 + $0x48] sm:$0xff]
        %v1235 = vld [vmem:[#allocation7 + $0x50] sm:$0xff]
        %v1236 = vld [vmem:[#allocation7 + $0x58] sm:$0xff]
        %v1238 = vsel %vm585, %v1230, 0
        %1240 = vmatprep.subr.mxu0 %v1234
        %1241 = vmatpush1.msra.mxu0 %v1233
        %1242 = vmatprep.subr.mxu0 %v1236
        %1243 = vmatpush1.msra.mxu0 %v1235
        %1244 = vmatprep.subr.mxu0 0.0
        %1245 = vmatpush1.msra.mxu0 0.0
        %1246 = vmatprep.subr.mxu0 0.0
        %1247 = vmatpush1.msra.mxu0 0.0
        %1248 = vmatprep.subr.mxu0 0.0
        %1249 = vmatpush1.msra.mxu0 0.0
        %1250 = vmatprep.subr.mxu0 0.0
        %1251 = vmatpush1.msra.mxu0 0.0
        %1252 = vmatprep.subr.mxu0 0.0
        %1253 = vmatpush1.msra.mxu0 0.0
        %1254 = vmatprep.subr.mxu0 0.0
        %1255 = vmatpush1.msra.mxu0 0.0
        %1256 = vmatprep.subr.mxu0 0.0
        %1257 = vmatpush1.msra.mxu0 0.0
        %1258 = vmatprep.subr.mxu0 0.0
        %1259 = vmatpush1.msra.mxu0 0.0
        %1260 = vmatprep.subr.mxu0 0.0
        %1261 = vmatpush1.msra.mxu0 0.0
        %1262 = vmatprep.subr.mxu0 0.0
        %1263 = vmatpush1.msra.mxu0 0.0
        %1264 = vmatprep.subr.mxu0 0.0
        %1265 = vmatpush1.msra.mxu0 0.0
        %1266 = vmatprep.subr.mxu0 0.0
        %1267 = vmatpush1.msra.mxu0 0.0
        %1268 = vmatprep.subr.mxu0 0.0
        %1269 = vmatpush1.msra.mxu0 0.0
        %1270 = vmatprep.subr.mxu0 0.0
        %1271 = vmatpush1.msra.mxu0 0.0
        %1272 = vmatprep.subr.mxu0 0.0
        %1273 = vmatpush1.msra.mxu0 0.0
        %1274 = vmatprep.subr.mxu0 0.0
        %1275 = vmatpush1.msra.mxu0 0.0
        %1276 = vmatprep.subr.mxu0 0.0
        %1277 = vmatpush1.msra.mxu0 0.0
        %1278 = vmatprep.subr.mxu0 0.0
        %1279 = vmatpush1.msra.mxu0 0.0
        %1280 = vmatprep.subr.mxu0 0.0
        %1281 = vmatpush1.msra.mxu0 0.0
        %1282 = vmatprep.subr.mxu0 0.0
        %1283 = vmatpush1.msra.mxu0 0.0
        %1284 = vmatprep.subr.mxu0 0.0
        %1285 = vmatpush1.msra.mxu0 0.0
        %1286 = vmatprep.subr.mxu0 0.0
        %1287 = vmatpush1.msra.mxu0 0.0
        %1288 = vmatprep.subr.mxu0 0.0
        %1289 = vmatpush1.msra.mxu0 0.0
        %1290 = vmatprep.subr.mxu0 0.0
        %1291 = vmatpush1.msra.mxu0 0.0
        %1292 = vmatprep.subr.mxu0 0.0
        %1293 = vmatpush1.msra.mxu0 0.0
        %1294 = vmatprep.subr.mxu0 0.0
        %1295 = vmatpush1.msra.mxu0 0.0
        %1296 = vmatprep.subr.mxu0 0.0
        %1297 = vmatpush1.msra.mxu0 0.0
        %1298 = vmatprep.subr.mxu0 0.0
        %1299 = vmatpush1.msra.mxu0 0.0
        %1300 = vmatprep.subr.mxu0 0.0
        %1301 = vmatpush1.msra.mxu0 0.0
        %1302 = vmatprep.subr.mxu0 0.0
        %1303 = vmatpush1.msra.mxu0 0.0
        %1304 = vmatprep.mubr.f32.mxu0 0.0
        %1305 = vmatmul.mubr.f32.gmra.mrb[0].mxu0 %v1238
        %v1306 = vpop.f32.mrb[0].mxu0
        %v1307 = vadd.f32 0.0, %v1306
        %v1308 = vpop.f32.mrb[0].mxu0
        %v1309 = vadd.f32 0.0, %v1308
        %1310 = vdwg.mxu0
        %v1311 = vadd.f32 %v1064, %v1307
        %v1312 = vadd.f32 %v1066, %v1309
        %1313 = vrot.lane.b32.xlu0 %v581, 80
        %v1314 = vpop.permute.xlu0 %1313
        %1315 = vrot.lane.b32.xlu0 %v438, 16
        %v1316 = vpop.permute.xlu0 %1315
        %v1317 = vsel %vm585, %v1314, 0
        %v1319 = vsel %vm585, %v1316, 0
        %1321 = vmatprep.subr.mxu0 0.0
        %1322 = vmatpush1.xpose.msra.mxu0 %v1319
        %1323 = vmatprep.subr.mxu0 0.0
        %1324 = vmatpush1.xpose.msra.mxu0 0.0
        %1325 = vmatprep.subr.mxu0 0.0
        %1326 = vmatpush1.xpose.msra.mxu0 0.0
        %1327 = vmatprep.subr.mxu0 0.0
        %1328 = vmatpush1.xpose.msra.mxu0 0.0
        %1329 = vmatprep.subr.mxu0 0.0
        %1330 = vmatpush1.xpose.msra.mxu0 0.0
        %1331 = vmatprep.subr.mxu0 0.0
        %1332 = vmatpush1.xpose.msra.mxu0 0.0
        %1333 = vmatprep.subr.mxu0 0.0
        %1334 = vmatpush1.xpose.msra.mxu0 0.0
        %1335 = vmatprep.subr.mxu0 0.0
        %1336 = vmatpush1.xpose.msra.mxu0 0.0
        %1337 = vmatprep.subr.mxu0 0.0
        %1338 = vmatpush1.xpose.msra.mxu0 0.0
        %1339 = vmatprep.subr.mxu0 0.0
        %1340 = vmatpush1.xpose.msra.mxu0 0.0
        %1341 = vmatprep.subr.mxu0 0.0
        %1342 = vmatpush1.xpose.msra.mxu0 0.0
        %1343 = vmatprep.subr.mxu0 0.0
        %1344 = vmatpush1.xpose.msra.mxu0 0.0
        %1345 = vmatprep.subr.mxu0 0.0
        %1346 = vmatpush1.xpose.msra.mxu0 0.0
        %1347 = vmatprep.subr.mxu0 0.0
        %1348 = vmatpush1.xpose.msra.mxu0 0.0
        %1349 = vmatprep.subr.mxu0 0.0
        %1350 = vmatpush1.xpose.msra.mxu0 0.0
        %1351 = vmatprep.subr.mxu0 0.0
        %1352 = vmatpush1.xpose.msra.mxu0 0.0
        %1353 = vmatprep.subr.mxu0 0.0
        %1354 = vmatpush1.xpose.msra.mxu0 0.0
        %1355 = vmatprep.subr.mxu0 0.0
        %1356 = vmatpush1.xpose.msra.mxu0 0.0
        %1357 = vmatprep.subr.mxu0 0.0
        %1358 = vmatpush1.xpose.msra.mxu0 0.0
        %1359 = vmatprep.subr.mxu0 0.0
        %1360 = vmatpush1.xpose.msra.mxu0 0.0
        %1361 = vmatprep.subr.mxu0 0.0
        %1362 = vmatpush1.xpose.msra.mxu0 0.0
        %1363 = vmatprep.subr.mxu0 0.0
        %1364 = vmatpush1.xpose.msra.mxu0 0.0
        %1365 = vmatprep.subr.mxu0 0.0
        %1366 = vmatpush1.xpose.msra.mxu0 0.0
        %1367 = vmatprep.subr.mxu0 0.0
        %1368 = vmatpush1.xpose.msra.mxu0 0.0
        %1369 = vmatprep.subr.mxu0 0.0
        %1370 = vmatpush1.xpose.msra.mxu0 0.0
        %1371 = vmatprep.subr.mxu0 0.0
        %1372 = vmatpush1.xpose.msra.mxu0 0.0
        %1373 = vmatprep.subr.mxu0 0.0
        %1374 = vmatpush1.xpose.msra.mxu0 0.0
        %1375 = vmatprep.subr.mxu0 0.0
        %1376 = vmatpush1.xpose.msra.mxu0 0.0
        %1377 = vmatprep.subr.mxu0 0.0
        %1378 = vmatpush1.xpose.msra.mxu0 0.0
        %1379 = vmatprep.subr.mxu0 0.0
        %1380 = vmatpush1.xpose.msra.mxu0 0.0
        %1381 = vmatprep.subr.mxu0 0.0
        %1382 = vmatpush1.xpose.msra.mxu0 0.0
        %1383 = vmatprep.subr.mxu0 0.0
        %1384 = vmatpush1.xpose.msra.mxu0 0.0
        %1385 = vmatprep.mubr.f32.mxu0 0.0
        %1386 = vmatmul.mubr.f32.gmra.mrb[0].mxu0 %v1317
        %v1387 = vpop.f32.mrb[0].mxu0
        %v1388 = vadd.f32 0.0, %v1387
        %v1389 = vpop.f32.mrb[0].mxu0
        %1390 = vdwg.mxu0
        %v1391 = vsel %vm661, %v1388, -inf
        %1392 = vmax.xlane.f32.xlu0 %v1391
        %v1393 = vpop.xlane.xlu0 %1392
        %v1394 = vsub.f32 %v1388, %v1393
        %v1395 = vmul.f32 %v1394, 1.442695
        %v1396 = vpow.pop %v1395
        %v1397 = vsel %vm661, %v1396, 0.0
        %1398 = vadd.xlane.f32.xlu0 %v1397
        %v1399 = vpop.xlane.xlu0 %1398
        %v1400 = vrcp.pop %v1399
        %v1401 = vmul.f32 %v1396, %v1400
        %1402 = vrot.lane.b32.xlu0 %v509, 80
        %v1403 = vpop.permute.xlu0 %1402
        %v1406 = vsel %vm661, %v1401, 0
        %1408 = vmatprep.subr.mxu0 0.0
        %1409 = vmatpush1.msra.mxu0 %v1403
        %1410 = vmatprep.subr.mxu0 0.0
        %1411 = vmatpush1.msra.mxu0 0.0
        %1412 = vmatprep.subr.mxu0 0.0
        %1413 = vmatpush1.msra.mxu0 0.0
        %1414 = vmatprep.subr.mxu0 0.0
        %1415 = vmatpush1.msra.mxu0 0.0
        %1416 = vmatprep.subr.mxu0 0.0
        %1417 = vmatpush1.msra.mxu0 0.0
        %1418 = vmatprep.subr.mxu0 0.0
        %1419 = vmatpush1.msra.mxu0 0.0
        %1420 = vmatprep.subr.mxu0 0.0
        %1421 = vmatpush1.msra.mxu0 0.0
        %1422 = vmatprep.subr.mxu0 0.0
        %1423 = vmatpush1.msra.mxu0 0.0
        %1424 = vmatprep.subr.mxu0 0.0
        %1425 = vmatpush1.msra.mxu0 0.0
        %1426 = vmatprep.subr.mxu0 0.0
        %1427 = vmatpush1.msra.mxu0 0.0
        %1428 = vmatprep.subr.mxu0 0.0
        %1429 = vmatpush1.msra.mxu0 0.0
        %1430 = vmatprep.subr.mxu0 0.0
        %1431 = vmatpush1.msra.mxu0 0.0
        %1432 = vmatprep.subr.mxu0 0.0
        %1433 = vmatpush1.msra.mxu0 0.0
        %1434 = vmatprep.subr.mxu0 0.0
        %1435 = vmatpush1.msra.mxu0 0.0
        %1436 = vmatprep.subr.mxu0 0.0
        %1437 = vmatpush1.msra.mxu0 0.0
        %1438 = vmatprep.subr.mxu0 0.0
        %1439 = vmatpush1.msra.mxu0 0.0
        %1440 = vmatprep.subr.mxu0 0.0
        %1441 = vmatpush1.msra.mxu0 0.0
        %1442 = vmatprep.subr.mxu0 0.0
        %1443 = vmatpush1.msra.mxu0 0.0
        %1444 = vmatprep.subr.mxu0 0.0
        %1445 = vmatpush1.msra.mxu0 0.0
        %1446 = vmatprep.subr.mxu0 0.0
        %1447 = vmatpush1.msra.mxu0 0.0
        %1448 = vmatprep.subr.mxu0 0.0
        %1449 = vmatpush1.msra.mxu0 0.0
        %1450 = vmatprep.subr.mxu0 0.0
        %1451 = vmatpush1.msra.mxu0 0.0
        %1452 = vmatprep.subr.mxu0 0.0
        %1453 = vmatpush1.msra.mxu0 0.0
        %1454 = vmatprep.subr.mxu0 0.0
        %1455 = vmatpush1.msra.mxu0 0.0
        %1456 = vmatprep.subr.mxu0 0.0
        %1457 = vmatpush1.msra.mxu0 0.0
        %1458 = vmatprep.subr.mxu0 0.0
        %1459 = vmatpush1.msra.mxu0 0.0
        %1460 = vmatprep.subr.mxu0 0.0
        %1461 = vmatpush1.msra.mxu0 0.0
        %1462 = vmatprep.subr.mxu0 0.0
        %1463 = vmatpush1.msra.mxu0 0.0
        %1464 = vmatprep.subr.mxu0 0.0
        %1465 = vmatpush1.msra.mxu0 0.0
        %1466 = vmatprep.subr.mxu0 0.0
        %1467 = vmatpush1.msra.mxu0 0.0
        %1468 = vmatprep.subr.mxu0 0.0
        %1469 = vmatpush1.msra.mxu0 0.0
        %1470 = vmatprep.subr.mxu0 0.0
        %1471 = vmatpush1.msra.mxu0 0.0
        %1472 = vmatprep.mubr.f32.mxu0 0.0
        %1473 = vmatmul.mubr.f32.gmra.mrb[0].mxu0 %v1406
        %v1474 = vpop.f32.mrb[0].mxu0
        %v1475 = vadd.f32 0.0, %v1474
        %v1476 = vpop.f32.mrb[0].mxu0
        %1477 = vdwg.mxu0
        %v1478 = vld [vmem:[#allocation7 + $0x60] sm:$0xff]
        %v1479 = vld [vmem:[#allocation7 + $0x68] sm:$0xff]
        %v1480 = vld [vmem:[#allocation7 + $0x70] sm:$0xff]
        %v1481 = vld [vmem:[#allocation7 + $0x78] sm:$0xff]
        %v1483 = vsel %vm585, %v1475, 0
        %1485 = vmatprep.subr.mxu0 %v1479
        %1486 = vmatpush1.msra.mxu0 %v1478
        %1487 = vmatprep.subr.mxu0 %v1481
        %1488 = vmatpush1.msra.mxu0 %v1480
        %1489 = vmatprep.subr.mxu0 0.0
        %1490 = vmatpush1.msra.mxu0 0.0
        %1491 = vmatprep.subr.mxu0 0.0
        %1492 = vmatpush1.msra.mxu0 0.0
        %1493 = vmatprep.subr.mxu0 0.0
        %1494 = vmatpush1.msra.mxu0 0.0
        %1495 = vmatprep.subr.mxu0 0.0
        %1496 = vmatpush1.msra.mxu0 0.0
        %1497 = vmatprep.subr.mxu0 0.0
        %1498 = vmatpush1.msra.mxu0 0.0
        %1499 = vmatprep.subr.mxu0 0.0
        %1500 = vmatpush1.msra.mxu0 0.0
        %1501 = vmatprep.subr.mxu0 0.0
        %1502 = vmatpush1.msra.mxu0 0.0
        %1503 = vmatprep.subr.mxu0 0.0
        %1504 = vmatpush1.msra.mxu0 0.0
        %1505 = vmatprep.subr.mxu0 0.0
        %1506 = vmatpush1.msra.mxu0 0.0
        %1507 = vmatprep.subr.mxu0 0.0
        %1508 = vmatpush1.msra.mxu0 0.0
        %1509 = vmatprep.subr.mxu0 0.0
        %1510 = vmatpush1.msra.mxu0 0.0
        %1511 = vmatprep.subr.mxu0 0.0
        %1512 = vmatpush1.msra.mxu0 0.0
        %1513 = vmatprep.subr.mxu0 0.0
        %1514 = vmatpush1.msra.mxu0 0.0
        %1515 = vmatprep.subr.mxu0 0.0
        %1516 = vmatpush1.msra.mxu0 0.0
        %1517 = vmatprep.subr.mxu0 0.0
        %1518 = vmatpush1.msra.mxu0 0.0
        %1519 = vmatprep.subr.mxu0 0.0
        %1520 = vmatpush1.msra.mxu0 0.0
        %1521 = vmatprep.subr.mxu0 0.0
        %1522 = vmatpush1.msra.mxu0 0.0
        %1523 = vmatprep.subr.mxu0 0.0
        %1524 = vmatpush1.msra.mxu0 0.0
        %1525 = vmatprep.subr.mxu0 0.0
        %1526 = vmatpush1.msra.mxu0 0.0
        %1527 = vmatprep.subr.mxu0 0.0
        %1528 = vmatpush1.msra.mxu0 0.0
        %1529 = vmatprep.subr.mxu0 0.0
        %1530 = vmatpush1.msra.mxu0 0.0
        %1531 = vmatprep.subr.mxu0 0.0
        %1532 = vmatpush1.msra.mxu0 0.0
        %1533 = vmatprep.subr.mxu0 0.0
        %1534 = vmatpush1.msra.mxu0 0.0
        %1535 = vmatprep.subr.mxu0 0.0
        %1536 = vmatpush1.msra.mxu0 0.0
        %1537 = vmatprep.subr.mxu0 0.0
        %1538 = vmatpush1.msra.mxu0 0.0
        %1539 = vmatprep.subr.mxu0 0.0
        %1540 = vmatpush1.msra.mxu0 0.0
        %1541 = vmatprep.subr.mxu0 0.0
        %1542 = vmatpush1.msra.mxu0 0.0
        %1543 = vmatprep.subr.mxu0 0.0
        %1544 = vmatpush1.msra.mxu0 0.0
        %1545 = vmatprep.subr.mxu0 0.0
        %1546 = vmatpush1.msra.mxu0 0.0
        %1547 = vmatprep.subr.mxu0 0.0
        %1548 = vmatpush1.msra.mxu0 0.0
        %1549 = vmatprep.mubr.f32.mxu0 0.0
        %1550 = vmatmul.mubr.f32.gmra.mrb[0].mxu0 %v1483
        %v1551 = vpop.f32.mrb[0].mxu0
        %v1552 = vadd.f32 0.0, %v1551
        %v1553 = vpop.f32.mrb[0].mxu0
        %v1554 = vadd.f32 0.0, %v1553
        %1555 = vdwg.mxu0
        %v1556 = vadd.f32 %v1311, %v1552
        %v1557 = vadd.f32 %v1312, %v1554
        %1558 = vrot.lane.b32.xlu0 %v581, 64
        %v1559 = vpop.permute.xlu0 %1558
        %v1560 = vsel %vm585, %v1559, 0
        %v1563 = vsel %vm585, %v507, 0
        %1565 = vmatprep.subr.mxu0 0.0
        %1566 = vmatpush1.xpose.msra.mxu0 %v1563
        %1567 = vmatprep.subr.mxu0 0.0
        %1568 = vmatpush1.xpose.msra.mxu0 0.0
        %1569 = vmatprep.subr.mxu0 0.0
        %1570 = vmatpush1.xpose.msra.mxu0 0.0
        %1571 = vmatprep.subr.mxu0 0.0
        %1572 = vmatpush1.xpose.msra.mxu0 0.0
        %1573 = vmatprep.subr.mxu0 0.0
        %1574 = vmatpush1.xpose.msra.mxu0 0.0
        %1575 = vmatprep.subr.mxu0 0.0
        %1576 = vmatpush1.xpose.msra.mxu0 0.0
        %1577 = vmatprep.subr.mxu0 0.0
        %1578 = vmatpush1.xpose.msra.mxu0 0.0
        %1579 = vmatprep.subr.mxu0 0.0
        %1580 = vmatpush1.xpose.msra.mxu0 0.0
        %1581 = vmatprep.subr.mxu0 0.0
        %1582 = vmatpush1.xpose.msra.mxu0 0.0
        %1583 = vmatprep.subr.mxu0 0.0
        %1584 = vmatpush1.xpose.msra.mxu0 0.0
        %1585 = vmatprep.subr.mxu0 0.0
        %1586 = vmatpush1.xpose.msra.mxu0 0.0
        %1587 = vmatprep.subr.mxu0 0.0
        %1588 = vmatpush1.xpose.msra.mxu0 0.0
        %1589 = vmatprep.subr.mxu0 0.0
        %1590 = vmatpush1.xpose.msra.mxu0 0.0
        %1591 = vmatprep.subr.mxu0 0.0
        %1592 = vmatpush1.xpose.msra.mxu0 0.0
        %1593 = vmatprep.subr.mxu0 0.0
        %1594 = vmatpush1.xpose.msra.mxu0 0.0
        %1595 = vmatprep.subr.mxu0 0.0
        %1596 = vmatpush1.xpose.msra.mxu0 0.0
        %1597 = vmatprep.subr.mxu0 0.0
        %1598 = vmatpush1.xpose.msra.mxu0 0.0
        %1599 = vmatprep.subr.mxu0 0.0
        %1600 = vmatpush1.xpose.msra.mxu0 0.0
        %1601 = vmatprep.subr.mxu0 0.0
        %1602 = vmatpush1.xpose.msra.mxu0 0.0
        %1603 = vmatprep.subr.mxu0 0.0
        %1604 = vmatpush1.xpose.msra.mxu0 0.0
        %1605 = vmatprep.subr.mxu0 0.0
        %1606 = vmatpush1.xpose.msra.mxu0 0.0
        %1607 = vmatprep.subr.mxu0 0.0
        %1608 = vmatpush1.xpose.msra.mxu0 0.0
        %1609 = vmatprep.subr.mxu0 0.0
        %1610 = vmatpush1.xpose.msra.mxu0 0.0
        %1611 = vmatprep.subr.mxu0 0.0
        %1612 = vmatpush1.xpose.msra.mxu0 0.0
        %1613 = vmatprep.subr.mxu0 0.0
        %1614 = vmatpush1.xpose.msra.mxu0 0.0
        %1615 = vmatprep.subr.mxu0 0.0
        %1616 = vmatpush1.xpose.msra.mxu0 0.0
        %1617 = vmatprep.subr.mxu0 0.0
        %1618 = vmatpush1.xpose.msra.mxu0 0.0
        %1619 = vmatprep.subr.mxu0 0.0
        %1620 = vmatpush1.xpose.msra.mxu0 0.0
        %1621 = vmatprep.subr.mxu0 0.0
        %1622 = vmatpush1.xpose.msra.mxu0 0.0
        %1623 = vmatprep.subr.mxu0 0.0
        %1624 = vmatpush1.xpose.msra.mxu0 0.0
        %1625 = vmatprep.subr.mxu0 0.0
        %1626 = vmatpush1.xpose.msra.mxu0 0.0
        %1627 = vmatprep.subr.mxu0 0.0
        %1628 = vmatpush1.xpose.msra.mxu0 0.0
        %1629 = vmatprep.mubr.f32.mxu0 0.0
        %1630 = vmatmul.mubr.f32.gmra.mrb[0].mxu0 %v1560
        %v1631 = vpop.f32.mrb[0].mxu0
        %v1632 = vadd.f32 0.0, %v1631
        %v1633 = vpop.f32.mrb[0].mxu0
        %1634 = vdwg.mxu0
        %v1635 = vsel %vm661, %v1632, -inf
        %1636 = vmax.xlane.f32.xlu0 %v1635
        %v1637 = vpop.xlane.xlu0 %1636
        %v1638 = vsub.f32 %v1632, %v1637
        %v1639 = vmul.f32 %v1638, 1.442695
        %v1640 = vpow.pop %v1639
        %v1641 = vsel %vm661, %v1640, 0.0
        %1642 = vadd.xlane.f32.xlu0 %v1641
        %v1643 = vpop.xlane.xlu0 %1642
        %v1644 = vrcp.pop %v1643
        %v1645 = vmul.f32 %v1640, %v1644
        %1646 = vrot.lane.b32.xlu0 %v509, 64
        %v1647 = vpop.permute.xlu0 %1646
        %v1650 = vsel %vm661, %v1645, 0
        %1652 = vmatprep.subr.mxu0 0.0
        %1653 = vmatpush1.msra.mxu0 %v1647
        %1654 = vmatprep.subr.mxu0 0.0
        %1655 = vmatpush1.msra.mxu0 0.0
        %1656 = vmatprep.subr.mxu0 0.0
        %1657 = vmatpush1.msra.mxu0 0.0
        %1658 = vmatprep.subr.mxu0 0.0
        %1659 = vmatpush1.msra.mxu0 0.0
        %1660 = vmatprep.subr.mxu0 0.0
        %1661 = vmatpush1.msra.mxu0 0.0
        %1662 = vmatprep.subr.mxu0 0.0
        %1663 = vmatpush1.msra.mxu0 0.0
        %1664 = vmatprep.subr.mxu0 0.0
        %1665 = vmatpush1.msra.mxu0 0.0
        %1666 = vmatprep.subr.mxu0 0.0
        %1667 = vmatpush1.msra.mxu0 0.0
        %1668 = vmatprep.subr.mxu0 0.0
        %1669 = vmatpush1.msra.mxu0 0.0
        %1670 = vmatprep.subr.mxu0 0.0
        %1671 = vmatpush1.msra.mxu0 0.0
        %1672 = vmatprep.subr.mxu0 0.0
        %1673 = vmatpush1.msra.mxu0 0.0
        %1674 = vmatprep.subr.mxu0 0.0
        %1675 = vmatpush1.msra.mxu0 0.0
        %1676 = vmatprep.subr.mxu0 0.0
        %1677 = vmatpush1.msra.mxu0 0.0
        %1678 = vmatprep.subr.mxu0 0.0
        %1679 = vmatpush1.msra.mxu0 0.0
        %1680 = vmatprep.subr.mxu0 0.0
        %1681 = vmatpush1.msra.mxu0 0.0
        %1682 = vmatprep.subr.mxu0 0.0
        %1683 = vmatpush1.msra.mxu0 0.0
        %1684 = vmatprep.subr.mxu0 0.0
        %1685 = vmatpush1.msra.mxu0 0.0
        %1686 = vmatprep.subr.mxu0 0.0
        %1687 = vmatpush1.msra.mxu0 0.0
        %1688 = vmatprep.subr.mxu0 0.0
        %1689 = vmatpush1.msra.mxu0 0.0
        %1690 = vmatprep.subr.mxu0 0.0
        %1691 = vmatpush1.msra.mxu0 0.0
        %1692 = vmatprep.subr.mxu0 0.0
        %1693 = vmatpush1.msra.mxu0 0.0
        %1694 = vmatprep.subr.mxu0 0.0
        %1695 = vmatpush1.msra.mxu0 0.0
        %1696 = vmatprep.subr.mxu0 0.0
        %1697 = vmatpush1.msra.mxu0 0.0
        %1698 = vmatprep.subr.mxu0 0.0
        %1699 = vmatpush1.msra.mxu0 0.0
        %1700 = vmatprep.subr.mxu0 0.0
        %1701 = vmatpush1.msra.mxu0 0.0
        %1702 = vmatprep.subr.mxu0 0.0
        %1703 = vmatpush1.msra.mxu0 0.0
        %1704 = vmatprep.subr.mxu0 0.0
        %1705 = vmatpush1.msra.mxu0 0.0
        %1706 = vmatprep.subr.mxu0 0.0
        %1707 = vmatpush1.msra.mxu0 0.0
        %1708 = vmatprep.subr.mxu0 0.0
        %1709 = vmatpush1.msra.mxu0 0.0
        %1710 = vmatprep.subr.mxu0 0.0
        %1711 = vmatpush1.msra.mxu0 0.0
        %1712 = vmatprep.subr.mxu0 0.0
        %1713 = vmatpush1.msra.mxu0 0.0
        %1714 = vmatprep.subr.mxu0 0.0
        %1715 = vmatpush1.msra.mxu0 0.0
        %1716 = vmatprep.mubr.f32.mxu0 0.0
        %1717 = vmatmul.mubr.f32.gmra.mrb[0].mxu0 %v1650
        %v1718 = vpop.f32.mrb[0].mxu0
        %v1719 = vadd.f32 0.0, %v1718
        %v1720 = vpop.f32.mrb[0].mxu0
        %1721 = vdwg.mxu0
        %v1722 = vld [vmem:[#allocation7 + $0x80] sm:$0xff]
        %v1723 = vld [vmem:[#allocation7 + $0x88] sm:$0xff]
        %v1724 = vld [vmem:[#allocation7 + $0x90] sm:$0xff]
        %v1725 = vld [vmem:[#allocation7 + $0x98] sm:$0xff]
        %v1727 = vsel %vm585, %v1719, 0
        %1729 = vmatprep.subr.mxu0 %v1723
        %1730 = vmatpush1.msra.mxu0 %v1722
        %1731 = vmatprep.subr.mxu0 %v1725
        %1732 = vmatpush1.msra.mxu0 %v1724
        %1733 = vmatprep.subr.mxu0 0.0
        %1734 = vmatpush1.msra.mxu0 0.0
        %1735 = vmatprep.subr.mxu0 0.0
        %1736 = vmatpush1.msra.mxu0 0.0
        %1737 = vmatprep.subr.mxu0 0.0
        %1738 = vmatpush1.msra.mxu0 0.0
        %1739 = vmatprep.subr.mxu0 0.0
        %1740 = vmatpush1.msra.mxu0 0.0
        %1741 = vmatprep.subr.mxu0 0.0
        %1742 = vmatpush1.msra.mxu0 0.0
        %1743 = vmatprep.subr.mxu0 0.0
        %1744 = vmatpush1.msra.mxu0 0.0
        %1745 = vmatprep.subr.mxu0 0.0
        %1746 = vmatpush1.msra.mxu0 0.0
        %1747 = vmatprep.subr.mxu0 0.0
        %1748 = vmatpush1.msra.mxu0 0.0
        %1749 = vmatprep.subr.mxu0 0.0
        %1750 = vmatpush1.msra.mxu0 0.0
        %1751 = vmatprep.subr.mxu0 0.0
        %1752 = vmatpush1.msra.mxu0 0.0
        %1753 = vmatprep.subr.mxu0 0.0
        %1754 = vmatpush1.msra.mxu0 0.0
        %1755 = vmatprep.subr.mxu0 0.0
        %1756 = vmatpush1.msra.mxu0 0.0
        %1757 = vmatprep.subr.mxu0 0.0
        %1758 = vmatpush1.msra.mxu0 0.0
        %1759 = vmatprep.subr.mxu0 0.0
        %1760 = vmatpush1.msra.mxu0 0.0
        %1761 = vmatprep.subr.mxu0 0.0
        %1762 = vmatpush1.msra.mxu0 0.0
        %1763 = vmatprep.subr.mxu0 0.0
        %1764 = vmatpush1.msra.mxu0 0.0
        %1765 = vmatprep.subr.mxu0 0.0
        %1766 = vmatpush1.msra.mxu0 0.0
        %1767 = vmatprep.subr.mxu0 0.0
        %1768 = vmatpush1.msra.mxu0 0.0
        %1769 = vmatprep.subr.mxu0 0.0
        %1770 = vmatpush1.msra.mxu0 0.0
        %1771 = vmatprep.subr.mxu0 0.0
        %1772 = vmatpush1.msra.mxu0 0.0
        %1773 = vmatprep.subr.mxu0 0.0
        %1774 = vmatpush1.msra.mxu0 0.0
        %1775 = vmatprep.subr.mxu0 0.0
        %1776 = vmatpush1.msra.mxu0 0.0
        %1777 = vmatprep.subr.mxu0 0.0
        %1778 = vmatpush1.msra.mxu0 0.0
        %1779 = vmatprep.subr.mxu0 0.0
        %1780 = vmatpush1.msra.mxu0 0.0
        %1781 = vmatprep.subr.mxu0 0.0
        %1782 = vmatpush1.msra.mxu0 0.0
        %1783 = vmatprep.subr.mxu0 0.0
        %1784 = vmatpush1.msra.mxu0 0.0
        %1785 = vmatprep.subr.mxu0 0.0
        %1786 = vmatpush1.msra.mxu0 0.0
        %1787 = vmatprep.subr.mxu0 0.0
        %1788 = vmatpush1.msra.mxu0 0.0
        %1789 = vmatprep.subr.mxu0 0.0
        %1790 = vmatpush1.msra.mxu0 0.0
        %1791 = vmatprep.subr.mxu0 0.0
        %1792 = vmatpush1.msra.mxu0 0.0
        %1793 = vmatprep.mubr.f32.mxu0 0.0
        %1794 = vmatmul.mubr.f32.gmra.mrb[0].mxu0 %v1727
        %v1795 = vpop.f32.mrb[0].mxu0
        %v1796 = vadd.f32 0.0, %v1795
        %v1797 = vpop.f32.mrb[0].mxu0
        %v1798 = vadd.f32 0.0, %v1797
        %1799 = vdwg.mxu0
        %v1800 = vadd.f32 %v1556, %v1796
        %v1801 = vadd.f32 %v1557, %v1798
        %1802 = vrot.lane.b32.xlu0 %v581, 48
        %v1803 = vpop.permute.xlu0 %1802
        %1804 = vrot.lane.b32.xlu0 %v507, 112
        %v1805 = vpop.permute.xlu0 %1804
        %v1806 = vsel %vm585, %v1803, 0
        %v1808 = vsel %vm585, %v1805, 0
        %1810 = vmatprep.subr.mxu0 0.0
        %1811 = vmatpush1.xpose.msra.mxu0 %v1808
        %1812 = vmatprep.subr.mxu0 0.0
        %1813 = vmatpush1.xpose.msra.mxu0 0.0
        %1814 = vmatprep.subr.mxu0 0.0
        %1815 = vmatpush1.xpose.msra.mxu0 0.0
        %1816 = vmatprep.subr.mxu0 0.0
        %1817 = vmatpush1.xpose.msra.mxu0 0.0
        %1818 = vmatprep.subr.mxu0 0.0
        %1819 = vmatpush1.xpose.msra.mxu0 0.0
        %1820 = vmatprep.subr.mxu0 0.0
        %1821 = vmatpush1.xpose.msra.mxu0 0.0
        %1822 = vmatprep.subr.mxu0 0.0
        %1823 = vmatpush1.xpose.msra.mxu0 0.0
        %1824 = vmatprep.subr.mxu0 0.0
        %1825 = vmatpush1.xpose.msra.mxu0 0.0
        %1826 = vmatprep.subr.mxu0 0.0
        %1827 = vmatpush1.xpose.msra.mxu0 0.0
        %1828 = vmatprep.subr.mxu0 0.0
        %1829 = vmatpush1.xpose.msra.mxu0 0.0
        %1830 = vmatprep.subr.mxu0 0.0
        %1831 = vmatpush1.xpose.msra.mxu0 0.0
        %1832 = vmatprep.subr.mxu0 0.0
        %1833 = vmatpush1.xpose.msra.mxu0 0.0
        %1834 = vmatprep.subr.mxu0 0.0
        %1835 = vmatpush1.xpose.msra.mxu0 0.0
        %1836 = vmatprep.subr.mxu0 0.0
        %1837 = vmatpush1.xpose.msra.mxu0 0.0
        %1838 = vmatprep.subr.mxu0 0.0
        %1839 = vmatpush1.xpose.msra.mxu0 0.0
        %1840 = vmatprep.subr.mxu0 0.0
        %1841 = vmatpush1.xpose.msra.mxu0 0.0
        %1842 = vmatprep.subr.mxu0 0.0
        %1843 = vmatpush1.xpose.msra.mxu0 0.0
        %1844 = vmatprep.subr.mxu0 0.0
        %1845 = vmatpush1.xpose.msra.mxu0 0.0
        %1846 = vmatprep.subr.mxu0 0.0
        %1847 = vmatpush1.xpose.msra.mxu0 0.0
        %1848 = vmatprep.subr.mxu0 0.0
        %1849 = vmatpush1.xpose.msra.mxu0 0.0
        %1850 = vmatprep.subr.mxu0 0.0
        %1851 = vmatpush1.xpose.msra.mxu0 0.0
        %1852 = vmatprep.subr.mxu0 0.0
        %1853 = vmatpush1.xpose.msra.mxu0 0.0
        %1854 = vmatprep.subr.mxu0 0.0
        %1855 = vmatpush1.xpose.msra.mxu0 0.0
        %1856 = vmatprep.subr.mxu0 0.0
        %1857 = vmatpush1.xpose.msra.mxu0 0.0
        %1858 = vmatprep.subr.mxu0 0.0
        %1859 = vmatpush1.xpose.msra.mxu0 0.0
        %1860 = vmatprep.subr.mxu0 0.0
        %1861 = vmatpush1.xpose.msra.mxu0 0.0
        %1862 = vmatprep.subr.mxu0 0.0
        %1863 = vmatpush1.xpose.msra.mxu0 0.0
        %1864 = vmatprep.subr.mxu0 0.0
        %1865 = vmatpush1.xpose.msra.mxu0 0.0
        %1866 = vmatprep.subr.mxu0 0.0
        %1867 = vmatpush1.xpose.msra.mxu0 0.0
        %1868 = vmatprep.subr.mxu0 0.0
        %1869 = vmatpush1.xpose.msra.mxu0 0.0
        %1870 = vmatprep.subr.mxu0 0.0
        %1871 = vmatpush1.xpose.msra.mxu0 0.0
        %1872 = vmatprep.subr.mxu0 0.0
        %1873 = vmatpush1.xpose.msra.mxu0 0.0
        %1874 = vmatprep.mubr.f32.mxu0 0.0
        %1875 = vmatmul.mubr.f32.gmra.mrb[0].mxu0 %v1806
        %v1876 = vpop.f32.mrb[0].mxu0
        %v1877 = vadd.f32 0.0, %v1876
        %v1878 = vpop.f32.mrb[0].mxu0
        %1879 = vdwg.mxu0
        %v1880 = vsel %vm661, %v1877, -inf
        %1881 = vmax.xlane.f32.xlu0 %v1880
        %v1882 = vpop.xlane.xlu0 %1881
        %v1883 = vsub.f32 %v1877, %v1882
        %v1884 = vmul.f32 %v1883, 1.442695
        %v1885 = vpow.pop %v1884
        %v1886 = vsel %vm661, %v1885, 0.0
        %1887 = vadd.xlane.f32.xlu0 %v1886
        %v1888 = vpop.xlane.xlu0 %1887
        %v1889 = vrcp.pop %v1888
        %v1890 = vmul.f32 %v1885, %v1889
        %1891 = vrot.lane.b32.xlu0 %v509, 48
        %v1892 = vpop.permute.xlu0 %1891
        %v1895 = vsel %vm661, %v1890, 0
        %1897 = vmatprep.subr.mxu0 0.0
        %1898 = vmatpush1.msra.mxu0 %v1892
        %1899 = vmatprep.subr.mxu0 0.0
        %1900 = vmatpush1.msra.mxu0 0.0
        %1901 = vmatprep.subr.mxu0 0.0
        %1902 = vmatpush1.msra.mxu0 0.0
        %1903 = vmatprep.subr.mxu0 0.0
        %1904 = vmatpush1.msra.mxu0 0.0
        %1905 = vmatprep.subr.mxu0 0.0
        %1906 = vmatpush1.msra.mxu0 0.0
        %1907 = vmatprep.subr.mxu0 0.0
        %1908 = vmatpush1.msra.mxu0 0.0
        %1909 = vmatprep.subr.mxu0 0.0
        %1910 = vmatpush1.msra.mxu0 0.0
        %1911 = vmatprep.subr.mxu0 0.0
        %1912 = vmatpush1.msra.mxu0 0.0
        %1913 = vmatprep.subr.mxu0 0.0
        %1914 = vmatpush1.msra.mxu0 0.0
        %1915 = vmatprep.subr.mxu0 0.0
        %1916 = vmatpush1.msra.mxu0 0.0
        %1917 = vmatprep.subr.mxu0 0.0
        %1918 = vmatpush1.msra.mxu0 0.0
        %1919 = vmatprep.subr.mxu0 0.0
        %1920 = vmatpush1.msra.mxu0 0.0
        %1921 = vmatprep.subr.mxu0 0.0
        %1922 = vmatpush1.msra.mxu0 0.0
        %1923 = vmatprep.subr.mxu0 0.0
        %1924 = vmatpush1.msra.mxu0 0.0
        %1925 = vmatprep.subr.mxu0 0.0
        %1926 = vmatpush1.msra.mxu0 0.0
        %1927 = vmatprep.subr.mxu0 0.0
        %1928 = vmatpush1.msra.mxu0 0.0
        %1929 = vmatprep.subr.mxu0 0.0
        %1930 = vmatpush1.msra.mxu0 0.0
        %1931 = vmatprep.subr.mxu0 0.0
        %1932 = vmatpush1.msra.mxu0 0.0
        %1933 = vmatprep.subr.mxu0 0.0
        %1934 = vmatpush1.msra.mxu0 0.0
        %1935 = vmatprep.subr.mxu0 0.0
        %1936 = vmatpush1.msra.mxu0 0.0
        %1937 = vmatprep.subr.mxu0 0.0
        %1938 = vmatpush1.msra.mxu0 0.0
        %1939 = vmatprep.subr.mxu0 0.0
        %1940 = vmatpush1.msra.mxu0 0.0
        %1941 = vmatprep.subr.mxu0 0.0
        %1942 = vmatpush1.msra.mxu0 0.0
        %1943 = vmatprep.subr.mxu0 0.0
        %1944 = vmatpush1.msra.mxu0 0.0
        %1945 = vmatprep.subr.mxu0 0.0
        %1946 = vmatpush1.msra.mxu0 0.0
        %1947 = vmatprep.subr.mxu0 0.0
        %1948 = vmatpush1.msra.mxu0 0.0
        %1949 = vmatprep.subr.mxu0 0.0
        %1950 = vmatpush1.msra.mxu0 0.0
        %1951 = vmatprep.subr.mxu0 0.0
        %1952 = vmatpush1.msra.mxu0 0.0
        %1953 = vmatprep.subr.mxu0 0.0
        %1954 = vmatpush1.msra.mxu0 0.0
        %1955 = vmatprep.subr.mxu0 0.0
        %1956 = vmatpush1.msra.mxu0 0.0
        %1957 = vmatprep.subr.mxu0 0.0
        %1958 = vmatpush1.msra.mxu0 0.0
        %1959 = vmatprep.subr.mxu0 0.0
        %1960 = vmatpush1.msra.mxu0 0.0
        %1961 = vmatprep.mubr.f32.mxu0 0.0
        %1962 = vmatmul.mubr.f32.gmra.mrb[0].mxu0 %v1895
        %v1963 = vpop.f32.mrb[0].mxu0
        %v1964 = vadd.f32 0.0, %v1963
        %v1965 = vpop.f32.mrb[0].mxu0
        %1966 = vdwg.mxu0
        %v1967 = vld [vmem:[#allocation7 + $0xa0] sm:$0xff]
        %v1968 = vld [vmem:[#allocation7 + $0xa8] sm:$0xff]
        %v1969 = vld [vmem:[#allocation7 + $0xb0] sm:$0xff]
        %v1970 = vld [vmem:[#allocation7 + $0xb8] sm:$0xff]
        %v1972 = vsel %vm585, %v1964, 0
        %1974 = vmatprep.subr.mxu0 %v1968
        %1975 = vmatpush1.msra.mxu0 %v1967
        %1976 = vmatprep.subr.mxu0 %v1970
        %1977 = vmatpush1.msra.mxu0 %v1969
        %1978 = vmatprep.subr.mxu0 0.0
        %1979 = vmatpush1.msra.mxu0 0.0
        %1980 = vmatprep.subr.mxu0 0.0
        %1981 = vmatpush1.msra.mxu0 0.0
        %1982 = vmatprep.subr.mxu0 0.0
        %1983 = vmatpush1.msra.mxu0 0.0
        %1984 = vmatprep.subr.mxu0 0.0
        %1985 = vmatpush1.msra.mxu0 0.0
        %1986 = vmatprep.subr.mxu0 0.0
        %1987 = vmatpush1.msra.mxu0 0.0
        %1988 = vmatprep.subr.mxu0 0.0
        %1989 = vmatpush1.msra.mxu0 0.0
        %1990 = vmatprep.subr.mxu0 0.0
        %1991 = vmatpush1.msra.mxu0 0.0
        %1992 = vmatprep.subr.mxu0 0.0
        %1993 = vmatpush1.msra.mxu0 0.0
        %1994 = vmatprep.subr.mxu0 0.0
        %1995 = vmatpush1.msra.mxu0 0.0
        %1996 = vmatprep.subr.mxu0 0.0
        %1997 = vmatpush1.msra.mxu0 0.0
        %1998 = vmatprep.subr.mxu0 0.0
        %1999 = vmatpush1.msra.mxu0 0.0
        %2000 = vmatprep.subr.mxu0 0.0
        %2001 = vmatpush1.msra.mxu0 0.0
        %2002 = vmatprep.subr.mxu0 0.0
        %2003 = vmatpush1.msra.mxu0 0.0
        %2004 = vmatprep.subr.mxu0 0.0
        %2005 = vmatpush1.msra.mxu0 0.0
        %2006 = vmatprep.subr.mxu0 0.0
        %2007 = vmatpush1.msra.mxu0 0.0
        %2008 = vmatprep.subr.mxu0 0.0
        %2009 = vmatpush1.msra.mxu0 0.0
        %2010 = vmatprep.subr.mxu0 0.0
        %2011 = vmatpush1.msra.mxu0 0.0
        %2012 = vmatprep.subr.mxu0 0.0
        %2013 = vmatpush1.msra.mxu0 0.0
        %2014 = vmatprep.subr.mxu0 0.0
        %2015 = vmatpush1.msra.mxu0 0.0
        %2016 = vmatprep.subr.mxu0 0.0
        %2017 = vmatpush1.msra.mxu0 0.0
        %2018 = vmatprep.subr.mxu0 0.0
        %2019 = vmatpush1.msra.mxu0 0.0
        %2020 = vmatprep.subr.mxu0 0.0
        %2021 = vmatpush1.msra.mxu0 0.0
        %2022 = vmatprep.subr.mxu0 0.0
        %2023 = vmatpush1.msra.mxu0 0.0
        %2024 = vmatprep.subr.mxu0 0.0
        %2025 = vmatpush1.msra.mxu0 0.0
        %2026 = vmatprep.subr.mxu0 0.0
        %2027 = vmatpush1.msra.mxu0 0.0
        %2028 = vmatprep.subr.mxu0 0.0
        %2029 = vmatpush1.msra.mxu0 0.0
        %2030 = vmatprep.subr.mxu0 0.0
        %2031 = vmatpush1.msra.mxu0 0.0
        %2032 = vmatprep.subr.mxu0 0.0
        %2033 = vmatpush1.msra.mxu0 0.0
        %2034 = vmatprep.subr.mxu0 0.0
        %2035 = vmatpush1.msra.mxu0 0.0
        %2036 = vmatprep.subr.mxu0 0.0
        %2037 = vmatpush1.msra.mxu0 0.0
        %2038 = vmatprep.mubr.f32.mxu0 0.0
        %2039 = vmatmul.mubr.f32.gmra.mrb[0].mxu0 %v1972
        %v2040 = vpop.f32.mrb[0].mxu0
        %v2041 = vadd.f32 0.0, %v2040
        %v2042 = vpop.f32.mrb[0].mxu0
        %v2043 = vadd.f32 0.0, %v2042
        %2044 = vdwg.mxu0
        %v2045 = vadd.f32 %v1800, %v2041
        %v2046 = vadd.f32 %v1801, %v2043
        %2047 = vrot.lane.b32.xlu0 %v581, 32
        %v2048 = vpop.permute.xlu0 %2047
        %2049 = vrot.lane.b32.xlu0 %v507, 96
        %v2050 = vpop.permute.xlu0 %2049
        %v2051 = vsel %vm585, %v2048, 0
        %v2053 = vsel %vm585, %v2050, 0
        %2055 = vmatprep.subr.mxu0 0.0
        %2056 = vmatpush1.xpose.msra.mxu0 %v2053
        %2057 = vmatprep.subr.mxu0 0.0
        %2058 = vmatpush1.xpose.msra.mxu0 0.0
        %2059 = vmatprep.subr.mxu0 0.0
        %2060 = vmatpush1.xpose.msra.mxu0 0.0
        %2061 = vmatprep.subr.mxu0 0.0
        %2062 = vmatpush1.xpose.msra.mxu0 0.0
        %2063 = vmatprep.subr.mxu0 0.0
        %2064 = vmatpush1.xpose.msra.mxu0 0.0
        %2065 = vmatprep.subr.mxu0 0.0
        %2066 = vmatpush1.xpose.msra.mxu0 0.0
        %2067 = vmatprep.subr.mxu0 0.0
        %2068 = vmatpush1.xpose.msra.mxu0 0.0
        %2069 = vmatprep.subr.mxu0 0.0
        %2070 = vmatpush1.xpose.msra.mxu0 0.0
        %2071 = vmatprep.subr.mxu0 0.0
        %2072 = vmatpush1.xpose.msra.mxu0 0.0
        %2073 = vmatprep.subr.mxu0 0.0
        %2074 = vmatpush1.xpose.msra.mxu0 0.0
        %2075 = vmatprep.subr.mxu0 0.0
        %2076 = vmatpush1.xpose.msra.mxu0 0.0
        %2077 = vmatprep.subr.mxu0 0.0
        %2078 = vmatpush1.xpose.msra.mxu0 0.0
        %2079 = vmatprep.subr.mxu0 0.0
        %2080 = vmatpush1.xpose.msra.mxu0 0.0
        %2081 = vmatprep.subr.mxu0 0.0
        %2082 = vmatpush1.xpose.msra.mxu0 0.0
        %2083 = vmatprep.subr.mxu0 0.0
        %2084 = vmatpush1.xpose.msra.mxu0 0.0
        %2085 = vmatprep.subr.mxu0 0.0
        %2086 = vmatpush1.xpose.msra.mxu0 0.0
        %2087 = vmatprep.subr.mxu0 0.0
        %2088 = vmatpush1.xpose.msra.mxu0 0.0
        %2089 = vmatprep.subr.mxu0 0.0
        %2090 = vmatpush1.xpose.msra.mxu0 0.0
        %2091 = vmatprep.subr.mxu0 0.0
        %2092 = vmatpush1.xpose.msra.mxu0 0.0
        %2093 = vmatprep.subr.mxu0 0.0
        %2094 = vmatpush1.xpose.msra.mxu0 0.0
        %2095 = vmatprep.subr.mxu0 0.0
        %2096 = vmatpush1.xpose.msra.mxu0 0.0
        %2097 = vmatprep.subr.mxu0 0.0
        %2098 = vmatpush1.xpose.msra.mxu0 0.0
        %2099 = vmatprep.subr.mxu0 0.0
        %2100 = vmatpush1.xpose.msra.mxu0 0.0
        %2101 = vmatprep.subr.mxu0 0.0
        %2102 = vmatpush1.xpose.msra.mxu0 0.0
        %2103 = vmatprep.subr.mxu0 0.0
        %2104 = vmatpush1.xpose.msra.mxu0 0.0
        %2105 = vmatprep.subr.mxu0 0.0
        %2106 = vmatpush1.xpose.msra.mxu0 0.0
        %2107 = vmatprep.subr.mxu0 0.0
        %2108 = vmatpush1.xpose.msra.mxu0 0.0
        %2109 = vmatprep.subr.mxu0 0.0
        %2110 = vmatpush1.xpose.msra.mxu0 0.0
        %2111 = vmatprep.subr.mxu0 0.0
        %2112 = vmatpush1.xpose.msra.mxu0 0.0
        %2113 = vmatprep.subr.mxu0 0.0
        %2114 = vmatpush1.xpose.msra.mxu0 0.0
        %2115 = vmatprep.subr.mxu0 0.0
        %2116 = vmatpush1.xpose.msra.mxu0 0.0
        %2117 = vmatprep.subr.mxu0 0.0
        %2118 = vmatpush1.xpose.msra.mxu0 0.0
        %2119 = vmatprep.mubr.f32.mxu0 0.0
        %2120 = vmatmul.mubr.f32.gmra.mrb[0].mxu0 %v2051
        %v2121 = vpop.f32.mrb[0].mxu0
        %v2122 = vadd.f32 0.0, %v2121
        %v2123 = vpop.f32.mrb[0].mxu0
        %2124 = vdwg.mxu0
        %v2125 = vsel %vm661, %v2122, -inf
        %2126 = vmax.xlane.f32.xlu0 %v2125
        %v2127 = vpop.xlane.xlu0 %2126
        %v2128 = vsub.f32 %v2122, %v2127
        %v2129 = vmul.f32 %v2128, 1.442695
        %v2130 = vpow.pop %v2129
        %v2131 = vsel %vm661, %v2130, 0.0
        %2132 = vadd.xlane.f32.xlu0 %v2131
        %v2133 = vpop.xlane.xlu0 %2132
        %v2134 = vrcp.pop %v2133
        %v2135 = vmul.f32 %v2130, %v2134
        %2136 = vrot.lane.b32.xlu0 %v509, 32
        %v2137 = vpop.permute.xlu0 %2136
        %v2140 = vsel %vm661, %v2135, 0
        %2142 = vmatprep.subr.mxu0 0.0
        %2143 = vmatpush1.msra.mxu0 %v2137
        %2144 = vmatprep.subr.mxu0 0.0
        %2145 = vmatpush1.msra.mxu0 0.0
        %2146 = vmatprep.subr.mxu0 0.0
        %2147 = vmatpush1.msra.mxu0 0.0
        %2148 = vmatprep.subr.mxu0 0.0
        %2149 = vmatpush1.msra.mxu0 0.0
        %2150 = vmatprep.subr.mxu0 0.0
        %2151 = vmatpush1.msra.mxu0 0.0
        %2152 = vmatprep.subr.mxu0 0.0
        %2153 = vmatpush1.msra.mxu0 0.0
        %2154 = vmatprep.subr.mxu0 0.0
        %2155 = vmatpush1.msra.mxu0 0.0
        %2156 = vmatprep.subr.mxu0 0.0
        %2157 = vmatpush1.msra.mxu0 0.0
        %2158 = vmatprep.subr.mxu0 0.0
        %2159 = vmatpush1.msra.mxu0 0.0
        %2160 = vmatprep.subr.mxu0 0.0
        %2161 = vmatpush1.msra.mxu0 0.0
        %2162 = vmatprep.subr.mxu0 0.0
        %2163 = vmatpush1.msra.mxu0 0.0
        %2164 = vmatprep.subr.mxu0 0.0
        %2165 = vmatpush1.msra.mxu0 0.0
        %2166 = vmatprep.subr.mxu0 0.0
        %2167 = vmatpush1.msra.mxu0 0.0
        %2168 = vmatprep.subr.mxu0 0.0
        %2169 = vmatpush1.msra.mxu0 0.0
        %2170 = vmatprep.subr.mxu0 0.0
        %2171 = vmatpush1.msra.mxu0 0.0
        %2172 = vmatprep.subr.mxu0 0.0
        %2173 = vmatpush1.msra.mxu0 0.0
        %2174 = vmatprep.subr.mxu0 0.0
        %2175 = vmatpush1.msra.mxu0 0.0
        %2176 = vmatprep.subr.mxu0 0.0
        %2177 = vmatpush1.msra.mxu0 0.0
        %2178 = vmatprep.subr.mxu0 0.0
        %2179 = vmatpush1.msra.mxu0 0.0
        %2180 = vmatprep.subr.mxu0 0.0
        %2181 = vmatpush1.msra.mxu0 0.0
        %2182 = vmatprep.subr.mxu0 0.0
        %2183 = vmatpush1.msra.mxu0 0.0
        %2184 = vmatprep.subr.mxu0 0.0
        %2185 = vmatpush1.msra.mxu0 0.0
        %2186 = vmatprep.subr.mxu0 0.0
        %2187 = vmatpush1.msra.mxu0 0.0
        %2188 = vmatprep.subr.mxu0 0.0
        %2189 = vmatpush1.msra.mxu0 0.0
        %2190 = vmatprep.subr.mxu0 0.0
        %2191 = vmatpush1.msra.mxu0 0.0
        %2192 = vmatprep.subr.mxu0 0.0
        %2193 = vmatpush1.msra.mxu0 0.0
        %2194 = vmatprep.subr.mxu0 0.0
        %2195 = vmatpush1.msra.mxu0 0.0
        %2196 = vmatprep.subr.mxu0 0.0
        %2197 = vmatpush1.msra.mxu0 0.0
        %2198 = vmatprep.subr.mxu0 0.0
        %2199 = vmatpush1.msra.mxu0 0.0
        %2200 = vmatprep.subr.mxu0 0.0
        %2201 = vmatpush1.msra.mxu0 0.0
        %2202 = vmatprep.subr.mxu0 0.0
        %2203 = vmatpush1.msra.mxu0 0.0
        %2204 = vmatprep.subr.mxu0 0.0
        %2205 = vmatpush1.msra.mxu0 0.0
        %2206 = vmatprep.mubr.f32.mxu0 0.0
        %2207 = vmatmul.mubr.f32.gmra.mrb[0].mxu0 %v2140
        %v2208 = vpop.f32.mrb[0].mxu0
        %v2209 = vadd.f32 0.0, %v2208
        %v2210 = vpop.f32.mrb[0].mxu0
        %2211 = vdwg.mxu0
        %v2212 = vld [vmem:[#allocation7 + $0xc0] sm:$0xff]
        %v2213 = vld [vmem:[#allocation7 + $0xc8] sm:$0xff]
        %v2214 = vld [vmem:[#allocation7 + $0xd0] sm:$0xff]
        %v2215 = vld [vmem:[#allocation7 + $0xd8] sm:$0xff]
        %v2217 = vsel %vm585, %v2209, 0
        %2219 = vmatprep.subr.mxu0 %v2213
        %2220 = vmatpush1.msra.mxu0 %v2212
        %2221 = vmatprep.subr.mxu0 %v2215
        %2222 = vmatpush1.msra.mxu0 %v2214
        %2223 = vmatprep.subr.mxu0 0.0
        %2224 = vmatpush1.msra.mxu0 0.0
        %2225 = vmatprep.subr.mxu0 0.0
        %2226 = vmatpush1.msra.mxu0 0.0
        %2227 = vmatprep.subr.mxu0 0.0
        %2228 = vmatpush1.msra.mxu0 0.0
        %2229 = vmatprep.subr.mxu0 0.0
        %2230 = vmatpush1.msra.mxu0 0.0
        %2231 = vmatprep.subr.mxu0 0.0
        %2232 = vmatpush1.msra.mxu0 0.0
        %2233 = vmatprep.subr.mxu0 0.0
        %2234 = vmatpush1.msra.mxu0 0.0
        %2235 = vmatprep.subr.mxu0 0.0
        %2236 = vmatpush1.msra.mxu0 0.0
        %2237 = vmatprep.subr.mxu0 0.0
        %2238 = vmatpush1.msra.mxu0 0.0
        %2239 = vmatprep.subr.mxu0 0.0
        %2240 = vmatpush1.msra.mxu0 0.0
        %2241 = vmatprep.subr.mxu0 0.0
        %2242 = vmatpush1.msra.mxu0 0.0
        %2243 = vmatprep.subr.mxu0 0.0
        %2244 = vmatpush1.msra.mxu0 0.0
        %2245 = vmatprep.subr.mxu0 0.0
        %2246 = vmatpush1.msra.mxu0 0.0
        %2247 = vmatprep.subr.mxu0 0.0
        %2248 = vmatpush1.msra.mxu0 0.0
        %2249 = vmatprep.subr.mxu0 0.0
        %2250 = vmatpush1.msra.mxu0 0.0
        %2251 = vmatprep.subr.mxu0 0.0
        %2252 = vmatpush1.msra.mxu0 0.0
        %2253 = vmatprep.subr.mxu0 0.0
        %2254 = vmatpush1.msra.mxu0 0.0
        %2255 = vmatprep.subr.mxu0 0.0
        %2256 = vmatpush1.msra.mxu0 0.0
        %2257 = vmatprep.subr.mxu0 0.0
        %2258 = vmatpush1.msra.mxu0 0.0
        %2259 = vmatprep.subr.mxu0 0.0
        %2260 = vmatpush1.msra.mxu0 0.0
        %2261 = vmatprep.subr.mxu0 0.0
        %2262 = vmatpush1.msra.mxu0 0.0
        %2263 = vmatprep.subr.mxu0 0.0
        %2264 = vmatpush1.msra.mxu0 0.0
        %2265 = vmatprep.subr.mxu0 0.0
        %2266 = vmatpush1.msra.mxu0 0.0
        %2267 = vmatprep.subr.mxu0 0.0
        %2268 = vmatpush1.msra.mxu0 0.0
        %2269 = vmatprep.subr.mxu0 0.0
        %2270 = vmatpush1.msra.mxu0 0.0
        %2271 = vmatprep.subr.mxu0 0.0
        %2272 = vmatpush1.msra.mxu0 0.0
        %2273 = vmatprep.subr.mxu0 0.0
        %2274 = vmatpush1.msra.mxu0 0.0
        %2275 = vmatprep.subr.mxu0 0.0
        %2276 = vmatpush1.msra.mxu0 0.0
        %2277 = vmatprep.subr.mxu0 0.0
        %2278 = vmatpush1.msra.mxu0 0.0
        %2279 = vmatprep.subr.mxu0 0.0
        %2280 = vmatpush1.msra.mxu0 0.0
        %2281 = vmatprep.subr.mxu0 0.0
        %2282 = vmatpush1.msra.mxu0 0.0
        %2283 = vmatprep.mubr.f32.mxu0 0.0
        %2284 = vmatmul.mubr.f32.gmra.mrb[0].mxu0 %v2217
        %v2285 = vpop.f32.mrb[0].mxu0
        %v2286 = vadd.f32 0.0, %v2285
        %v2287 = vpop.f32.mrb[0].mxu0
        %v2288 = vadd.f32 0.0, %v2287
        %2289 = vdwg.mxu0
        %v2290 = vadd.f32 %v2045, %v2286
        %v2291 = vadd.f32 %v2046, %v2288
        %2292 = vrot.lane.b32.xlu0 %v581, 16
        %v2293 = vpop.permute.xlu0 %2292
        %2294 = vrot.lane.b32.xlu0 %v507, 80
        %v2295 = vpop.permute.xlu0 %2294
        %v2296 = vsel %vm585, %v2293, 0
        %v2298 = vsel %vm585, %v2295, 0
        %2300 = vmatprep.subr.mxu0 0.0
        %2301 = vmatpush1.xpose.msra.mxu0 %v2298
        %2302 = vmatprep.subr.mxu0 0.0
        %2303 = vmatpush1.xpose.msra.mxu0 0.0
        %2304 = vmatprep.subr.mxu0 0.0
        %2305 = vmatpush1.xpose.msra.mxu0 0.0
        %2306 = vmatprep.subr.mxu0 0.0
        %2307 = vmatpush1.xpose.msra.mxu0 0.0
        %2308 = vmatprep.subr.mxu0 0.0
        %2309 = vmatpush1.xpose.msra.mxu0 0.0
        %2310 = vmatprep.subr.mxu0 0.0
        %2311 = vmatpush1.xpose.msra.mxu0 0.0
        %2312 = vmatprep.subr.mxu0 0.0
        %2313 = vmatpush1.xpose.msra.mxu0 0.0
        %2314 = vmatprep.subr.mxu0 0.0
        %2315 = vmatpush1.xpose.msra.mxu0 0.0
        %2316 = vmatprep.subr.mxu0 0.0
        %2317 = vmatpush1.xpose.msra.mxu0 0.0
        %2318 = vmatprep.subr.mxu0 0.0
        %2319 = vmatpush1.xpose.msra.mxu0 0.0
        %2320 = vmatprep.subr.mxu0 0.0
        %2321 = vmatpush1.xpose.msra.mxu0 0.0
        %2322 = vmatprep.subr.mxu0 0.0
        %2323 = vmatpush1.xpose.msra.mxu0 0.0
        %2324 = vmatprep.subr.mxu0 0.0
        %2325 = vmatpush1.xpose.msra.mxu0 0.0
        %2326 = vmatprep.subr.mxu0 0.0
        %2327 = vmatpush1.xpose.msra.mxu0 0.0
        %2328 = vmatprep.subr.mxu0 0.0
        %2329 = vmatpush1.xpose.msra.mxu0 0.0
        %2330 = vmatprep.subr.mxu0 0.0
        %2331 = vmatpush1.xpose.msra.mxu0 0.0
        %2332 = vmatprep.subr.mxu0 0.0
        %2333 = vmatpush1.xpose.msra.mxu0 0.0
        %2334 = vmatprep.subr.mxu0 0.0
        %2335 = vmatpush1.xpose.msra.mxu0 0.0
        %2336 = vmatprep.subr.mxu0 0.0
        %2337 = vmatpush1.xpose.msra.mxu0 0.0
        %2338 = vmatprep.subr.mxu0 0.0
        %2339 = vmatpush1.xpose.msra.mxu0 0.0
        %2340 = vmatprep.subr.mxu0 0.0
        %2341 = vmatpush1.xpose.msra.mxu0 0.0
        %2342 = vmatprep.subr.mxu0 0.0
        %2343 = vmatpush1.xpose.msra.mxu0 0.0
        %2344 = vmatprep.subr.mxu0 0.0
        %2345 = vmatpush1.xpose.msra.mxu0 0.0
        %2346 = vmatprep.subr.mxu0 0.0
        %2347 = vmatpush1.xpose.msra.mxu0 0.0
        %2348 = vmatprep.subr.mxu0 0.0
        %2349 = vmatpush1.xpose.msra.mxu0 0.0
        %2350 = vmatprep.subr.mxu0 0.0
        %2351 = vmatpush1.xpose.msra.mxu0 0.0
        %2352 = vmatprep.subr.mxu0 0.0
        %2353 = vmatpush1.xpose.msra.mxu0 0.0
        %2354 = vmatprep.subr.mxu0 0.0
        %2355 = vmatpush1.xpose.msra.mxu0 0.0
        %2356 = vmatprep.subr.mxu0 0.0
        %2357 = vmatpush1.xpose.msra.mxu0 0.0
        %2358 = vmatprep.subr.mxu0 0.0
        %2359 = vmatpush1.xpose.msra.mxu0 0.0
        %2360 = vmatprep.subr.mxu0 0.0
        %2361 = vmatpush1.xpose.msra.mxu0 0.0
        %2362 = vmatprep.subr.mxu0 0.0
        %2363 = vmatpush1.xpose.msra.mxu0 0.0
        %2364 = vmatprep.mubr.f32.mxu0 0.0
        %2365 = vmatmul.mubr.f32.gmra.mrb[0].mxu0 %v2296
        %v2366 = vpop.f32.mrb[0].mxu0
        %v2367 = vadd.f32 0.0, %v2366
        %v2368 = vpop.f32.mrb[0].mxu0
        %2369 = vdwg.mxu0
        %v2370 = vsel %vm661, %v2367, -inf
        %2371 = vmax.xlane.f32.xlu0 %v2370
        %v2372 = vpop.xlane.xlu0 %2371
        %v2373 = vsub.f32 %v2367, %v2372
        %v2374 = vmul.f32 %v2373, 1.442695
        %v2375 = vpow.pop %v2374
        %v2376 = vsel %vm661, %v2375, 0.0
        %2377 = vadd.xlane.f32.xlu0 %v2376
        %v2378 = vpop.xlane.xlu0 %2377
        %v2379 = vrcp.pop %v2378
        %v2380 = vmul.f32 %v2375, %v2379
        %2381 = vrot.lane.b32.xlu0 %v509, 16
        %v2382 = vpop.permute.xlu0 %2381
        %v2385 = vsel %vm661, %v2380, 0
        %2387 = vmatprep.subr.mxu0 0.0
        %2388 = vmatpush1.msra.mxu0 %v2382
        %2389 = vmatprep.subr.mxu0 0.0
        %2390 = vmatpush1.msra.mxu0 0.0
        %2391 = vmatprep.subr.mxu0 0.0
        %2392 = vmatpush1.msra.mxu0 0.0
        %2393 = vmatprep.subr.mxu0 0.0
        %2394 = vmatpush1.msra.mxu0 0.0
        %2395 = vmatprep.subr.mxu0 0.0
        %2396 = vmatpush1.msra.mxu0 0.0
        %2397 = vmatprep.subr.mxu0 0.0
        %2398 = vmatpush1.msra.mxu0 0.0
        %2399 = vmatprep.subr.mxu0 0.0
        %2400 = vmatpush1.msra.mxu0 0.0
        %2401 = vmatprep.subr.mxu0 0.0
        %2402 = vmatpush1.msra.mxu0 0.0
        %2403 = vmatprep.subr.mxu0 0.0
        %2404 = vmatpush1.msra.mxu0 0.0
        %2405 = vmatprep.subr.mxu0 0.0
        %2406 = vmatpush1.msra.mxu0 0.0
        %2407 = vmatprep.subr.mxu0 0.0
        %2408 = vmatpush1.msra.mxu0 0.0
        %2409 = vmatprep.subr.mxu0 0.0
        %2410 = vmatpush1.msra.mxu0 0.0
        %2411 = vmatprep.subr.mxu0 0.0
        %2412 = vmatpush1.msra.mxu0 0.0
        %2413 = vmatprep.subr.mxu0 0.0
        %2414 = vmatpush1.msra.mxu0 0.0
        %2415 = vmatprep.subr.mxu0 0.0
        %2416 = vmatpush1.msra.mxu0 0.0
        %2417 = vmatprep.subr.mxu0 0.0
        %2418 = vmatpush1.msra.mxu0 0.0
        %2419 = vmatprep.subr.mxu0 0.0
        %2420 = vmatpush1.msra.mxu0 0.0
        %2421 = vmatprep.subr.mxu0 0.0
        %2422 = vmatpush1.msra.mxu0 0.0
        %2423 = vmatprep.subr.mxu0 0.0
        %2424 = vmatpush1.msra.mxu0 0.0
        %2425 = vmatprep.subr.mxu0 0.0
        %2426 = vmatpush1.msra.mxu0 0.0
        %2427 = vmatprep.subr.mxu0 0.0
        %2428 = vmatpush1.msra.mxu0 0.0
        %2429 = vmatprep.subr.mxu0 0.0
        %2430 = vmatpush1.msra.mxu0 0.0
        %2431 = vmatprep.subr.mxu0 0.0
        %2432 = vmatpush1.msra.mxu0 0.0
        %2433 = vmatprep.subr.mxu0 0.0
        %2434 = vmatpush1.msra.mxu0 0.0
        %2435 = vmatprep.subr.mxu0 0.0
        %2436 = vmatpush1.msra.mxu0 0.0
        %2437 = vmatprep.subr.mxu0 0.0
        %2438 = vmatpush1.msra.mxu0 0.0
        %2439 = vmatprep.subr.mxu0 0.0
        %2440 = vmatpush1.msra.mxu0 0.0
        %2441 = vmatprep.subr.mxu0 0.0
        %2442 = vmatpush1.msra.mxu0 0.0
        %2443 = vmatprep.subr.mxu0 0.0
        %2444 = vmatpush1.msra.mxu0 0.0
        %2445 = vmatprep.subr.mxu0 0.0
        %2446 = vmatpush1.msra.mxu0 0.0
        %2447 = vmatprep.subr.mxu0 0.0
        %2448 = vmatpush1.msra.mxu0 0.0
        %2449 = vmatprep.subr.mxu0 0.0
        %2450 = vmatpush1.msra.mxu0 0.0
        %2451 = vmatprep.mubr.f32.mxu0 0.0
        %2452 = vmatmul.mubr.f32.gmra.mrb[0].mxu0 %v2385
        %v2453 = vpop.f32.mrb[0].mxu0
        %v2454 = vadd.f32 0.0, %v2453
        %v2455 = vpop.f32.mrb[0].mxu0
        %2456 = vdwg.mxu0
        %v2457 = vld [vmem:[#allocation7 + $0xe0] sm:$0xff]
        %v2458 = vld [vmem:[#allocation7 + $0xe8] sm:$0xff]
        %v2459 = vld [vmem:[#allocation7 + $0xf0] sm:$0xff]
        %v2460 = vld [vmem:[#allocation7 + $0xf8] sm:$0xff]
        %v2462 = vsel %vm585, %v2454, 0
        %2464 = vmatprep.subr.mxu0 %v2458
        %2465 = vmatpush1.msra.mxu0 %v2457
        %2466 = vmatprep.subr.mxu0 %v2460
        %2467 = vmatpush1.msra.mxu0 %v2459
        %2468 = vmatprep.subr.mxu0 0.0
        %2469 = vmatpush1.msra.mxu0 0.0
        %2470 = vmatprep.subr.mxu0 0.0
        %2471 = vmatpush1.msra.mxu0 0.0
        %2472 = vmatprep.subr.mxu0 0.0
        %2473 = vmatpush1.msra.mxu0 0.0
        %2474 = vmatprep.subr.mxu0 0.0
        %2475 = vmatpush1.msra.mxu0 0.0
        %2476 = vmatprep.subr.mxu0 0.0
        %2477 = vmatpush1.msra.mxu0 0.0
        %2478 = vmatprep.subr.mxu0 0.0
        %2479 = vmatpush1.msra.mxu0 0.0
        %2480 = vmatprep.subr.mxu0 0.0
        %2481 = vmatpush1.msra.mxu0 0.0
        %2482 = vmatprep.subr.mxu0 0.0
        %2483 = vmatpush1.msra.mxu0 0.0
        %2484 = vmatprep.subr.mxu0 0.0
        %2485 = vmatpush1.msra.mxu0 0.0
        %2486 = vmatprep.subr.mxu0 0.0
        %2487 = vmatpush1.msra.mxu0 0.0
        %2488 = vmatprep.subr.mxu0 0.0
        %2489 = vmatpush1.msra.mxu0 0.0
        %2490 = vmatprep.subr.mxu0 0.0
        %2491 = vmatpush1.msra.mxu0 0.0
        %2492 = vmatprep.subr.mxu0 0.0
        %2493 = vmatpush1.msra.mxu0 0.0
        %2494 = vmatprep.subr.mxu0 0.0
        %2495 = vmatpush1.msra.mxu0 0.0
        %2496 = vmatprep.subr.mxu0 0.0
        %2497 = vmatpush1.msra.mxu0 0.0
        %2498 = vmatprep.subr.mxu0 0.0
        %2499 = vmatpush1.msra.mxu0 0.0
        %2500 = vmatprep.subr.mxu0 0.0
        %2501 = vmatpush1.msra.mxu0 0.0
        %2502 = vmatprep.subr.mxu0 0.0
        %2503 = vmatpush1.msra.mxu0 0.0
        %2504 = vmatprep.subr.mxu0 0.0
        %2505 = vmatpush1.msra.mxu0 0.0
        %2506 = vmatprep.subr.mxu0 0.0
        %2507 = vmatpush1.msra.mxu0 0.0
        %2508 = vmatprep.subr.mxu0 0.0
        %2509 = vmatpush1.msra.mxu0 0.0
        %2510 = vmatprep.subr.mxu0 0.0
        %2511 = vmatpush1.msra.mxu0 0.0
        %2512 = vmatprep.subr.mxu0 0.0
        %2513 = vmatpush1.msra.mxu0 0.0
        %2514 = vmatprep.subr.mxu0 0.0
        %2515 = vmatpush1.msra.mxu0 0.0
        %2516 = vmatprep.subr.mxu0 0.0
        %2517 = vmatpush1.msra.mxu0 0.0
        %2518 = vmatprep.subr.mxu0 0.0
        %2519 = vmatpush1.msra.mxu0 0.0
        %2520 = vmatprep.subr.mxu0 0.0
        %2521 = vmatpush1.msra.mxu0 0.0
        %2522 = vmatprep.subr.mxu0 0.0
        %2523 = vmatpush1.msra.mxu0 0.0
        %2524 = vmatprep.subr.mxu0 0.0
        %2525 = vmatpush1.msra.mxu0 0.0
        %2526 = vmatprep.subr.mxu0 0.0
        %2527 = vmatpush1.msra.mxu0 0.0
        %2528 = vmatprep.mubr.f32.mxu0 0.0
        %2529 = vmatmul.mubr.f32.gmra.mrb[0].mxu0 %v2462
        %v2530 = vpop.f32.mrb[0].mxu0
        %v2531 = vadd.f32 0.0, %v2530
        %v2532 = vpop.f32.mrb[0].mxu0
        %v2533 = vadd.f32 0.0, %v2532
        %2534 = vdwg.mxu0
        %v2535 = vadd.f32 %v2290, %v2531
        %v2536 = vadd.f32 %v2291, %v2533
        %v2537 = vmul.f32 %v438, 0.25
        %2538 = vrot.lane.b32.xlu0 %v507, 64
        %v2539 = vpop.permute.xlu0 %2538
        %v2541 = vsel %vm585, %v2537, 0
        %v2543 = vsel %vm585, %v2539, 0
        %2545 = vmatprep.subr.mxu0 0.0
        %2546 = vmatpush1.xpose.msra.mxu0 %v2543
        %2547 = vmatprep.subr.mxu0 0.0
        %2548 = vmatpush1.xpose.msra.mxu0 0.0
        %2549 = vmatprep.subr.mxu0 0.0
        %2550 = vmatpush1.xpose.msra.mxu0 0.0
        %2551 = vmatprep.subr.mxu0 0.0
        %2552 = vmatpush1.xpose.msra.mxu0 0.0
        %2553 = vmatprep.subr.mxu0 0.0
        %2554 = vmatpush1.xpose.msra.mxu0 0.0
        %2555 = vmatprep.subr.mxu0 0.0
        %2556 = vmatpush1.xpose.msra.mxu0 0.0
        %2557 = vmatprep.subr.mxu0 0.0
        %2558 = vmatpush1.xpose.msra.mxu0 0.0
        %2559 = vmatprep.subr.mxu0 0.0
        %2560 = vmatpush1.xpose.msra.mxu0 0.0
        %2561 = vmatprep.subr.mxu0 0.0
        %2562 = vmatpush1.xpose.msra.mxu0 0.0
        %2563 = vmatprep.subr.mxu0 0.0
        %2564 = vmatpush1.xpose.msra.mxu0 0.0
        %2565 = vmatprep.subr.mxu0 0.0
        %2566 = vmatpush1.xpose.msra.mxu0 0.0
        %2567 = vmatprep.subr.mxu0 0.0
        %2568 = vmatpush1.xpose.msra.mxu0 0.0
        %2569 = vmatprep.subr.mxu0 0.0
        %2570 = vmatpush1.xpose.msra.mxu0 0.0
        %2571 = vmatprep.subr.mxu0 0.0
        %2572 = vmatpush1.xpose.msra.mxu0 0.0
        %2573 = vmatprep.subr.mxu0 0.0
        %2574 = vmatpush1.xpose.msra.mxu0 0.0
        %2575 = vmatprep.subr.mxu0 0.0
        %2576 = vmatpush1.xpose.msra.mxu0 0.0
        %2577 = vmatprep.subr.mxu0 0.0
        %2578 = vmatpush1.xpose.msra.mxu0 0.0
        %2579 = vmatprep.subr.mxu0 0.0
        %2580 = vmatpush1.xpose.msra.mxu0 0.0
        %2581 = vmatprep.subr.mxu0 0.0
        %2582 = vmatpush1.xpose.msra.mxu0 0.0
        %2583 = vmatprep.subr.mxu0 0.0
        %2584 = vmatpush1.xpose.msra.mxu0 0.0
        %2585 = vmatprep.subr.mxu0 0.0
        %2586 = vmatpush1.xpose.msra.mxu0 0.0
        %2587 = vmatprep.subr.mxu0 0.0
        %2588 = vmatpush1.xpose.msra.mxu0 0.0
        %2589 = vmatprep.subr.mxu0 0.0
        %2590 = vmatpush1.xpose.msra.mxu0 0.0
        %2591 = vmatprep.subr.mxu0 0.0
        %2592 = vmatpush1.xpose.msra.mxu0 0.0
        %2593 = vmatprep.subr.mxu0 0.0
        %2594 = vmatpush1.xpose.msra.mxu0 0.0
        %2595 = vmatprep.subr.mxu0 0.0
        %2596 = vmatpush1.xpose.msra.mxu0 0.0
        %2597 = vmatprep.subr.mxu0 0.0
        %2598 = vmatpush1.xpose.msra.mxu0 0.0
        %2599 = vmatprep.subr.mxu0 0.0
        %2600 = vmatpush1.xpose.msra.mxu0 0.0
        %2601 = vmatprep.subr.mxu0 0.0
        %2602 = vmatpush1.xpose.msra.mxu0 0.0
        %2603 = vmatprep.subr.mxu0 0.0
        %2604 = vmatpush1.xpose.msra.mxu0 0.0
        %2605 = vmatprep.subr.mxu0 0.0
        %2606 = vmatpush1.xpose.msra.mxu0 0.0
        %2607 = vmatprep.subr.mxu0 0.0
        %2608 = vmatpush1.xpose.msra.mxu0 0.0
        %2609 = vmatprep.mubr.f32.mxu0 0.0
        %2610 = vmatmul.mubr.f32.gmra.mrb[0].mxu0 %v2541
        %v2611 = vpop.f32.mrb[0].mxu0
        %v2612 = vadd.f32 0.0, %v2611
        %v2613 = vpop.f32.mrb[0].mxu0
        %2614 = vdwg.mxu0
        %v2615 = vsel %vm661, %v2612, -inf
        %2616 = vmax.xlane.f32.xlu0 %v2615
        %v2617 = vpop.xlane.xlu0 %2616
        %v2618 = vsub.f32 %v2612, %v2617
        %v2619 = vmul.f32 %v2618, 1.442695
        %v2620 = vpow.pop %v2619
        %v2621 = vsel %vm661, %v2620, 0.0
        %2622 = vadd.xlane.f32.xlu0 %v2621
        %v2623 = vpop.xlane.xlu0 %2622
        %v2624 = vrcp.pop %v2623
        %v2625 = vmul.f32 %v2620, %v2624
        %v2627 = vsel %vm661, %v2625, 0
        %2629 = vmatprep.subr.mxu0 0.0
        %2630 = vmatpush1.msra.mxu0 %v578
        %2631 = vmatprep.subr.mxu0 0.0
        %2632 = vmatpush1.msra.mxu0 0.0
        %2633 = vmatprep.subr.mxu0 0.0
        %2634 = vmatpush1.msra.mxu0 0.0
        %2635 = vmatprep.subr.mxu0 0.0
        %2636 = vmatpush1.msra.mxu0 0.0
        %2637 = vmatprep.subr.mxu0 0.0
        %2638 = vmatpush1.msra.mxu0 0.0
        %2639 = vmatprep.subr.mxu0 0.0
        %2640 = vmatpush1.msra.mxu0 0.0
        %2641 = vmatprep.subr.mxu0 0.0
        %2642 = vmatpush1.msra.mxu0 0.0
        %2643 = vmatprep.subr.mxu0 0.0
        %2644 = vmatpush1.msra.mxu0 0.0
        %2645 = vmatprep.subr.mxu0 0.0
        %2646 = vmatpush1.msra.mxu0 0.0
        %2647 = vmatprep.subr.mxu0 0.0
        %2648 = vmatpush1.msra.mxu0 0.0
        %2649 = vmatprep.subr.mxu0 0.0
        %2650 = vmatpush1.msra.mxu0 0.0
        %2651 = vmatprep.subr.mxu0 0.0
        %2652 = vmatpush1.msra.mxu0 0.0
        %2653 = vmatprep.subr.mxu0 0.0
        %2654 = vmatpush1.msra.mxu0 0.0
        %2655 = vmatprep.subr.mxu0 0.0
        %2656 = vmatpush1.msra.mxu0 0.0
        %2657 = vmatprep.subr.mxu0 0.0
        %2658 = vmatpush1.msra.mxu0 0.0
        %2659 = vmatprep.subr.mxu0 0.0
        %2660 = vmatpush1.msra.mxu0 0.0
        %2661 = vmatprep.subr.mxu0 0.0
        %2662 = vmatpush1.msra.mxu0 0.0
        %2663 = vmatprep.subr.mxu0 0.0
        %2664 = vmatpush1.msra.mxu0 0.0
        %2665 = vmatprep.subr.mxu0 0.0
        %2666 = vmatpush1.msra.mxu0 0.0
        %2667 = vmatprep.subr.mxu0 0.0
        %2668 = vmatpush1.msra.mxu0 0.0
        %2669 = vmatprep.subr.mxu0 0.0
        %2670 = vmatpush1.msra.mxu0 0.0
        %2671 = vmatprep.subr.mxu0 0.0
        %2672 = vmatpush1.msra.mxu0 0.0
        %2673 = vmatprep.subr.mxu0 0.0
        %2674 = vmatpush1.msra.mxu0 0.0
        %2675 = vmatprep.subr.mxu0 0.0
        %2676 = vmatpush1.msra.mxu0 0.0
        %2677 = vmatprep.subr.mxu0 0.0
        %2678 = vmatpush1.msra.mxu0 0.0
        %2679 = vmatprep.subr.mxu0 0.0
        %2680 = vmatpush1.msra.mxu0 0.0
        %2681 = vmatprep.subr.mxu0 0.0
        %2682 = vmatpush1.msra.mxu0 0.0
        %2683 = vmatprep.subr.mxu0 0.0
        %2684 = vmatpush1.msra.mxu0 0.0
        %2685 = vmatprep.subr.mxu0 0.0
        %2686 = vmatpush1.msra.mxu0 0.0
        %2687 = vmatprep.subr.mxu0 0.0
        %2688 = vmatpush1.msra.mxu0 0.0
        %2689 = vmatprep.subr.mxu0 0.0
        %2690 = vmatpush1.msra.mxu0 0.0
        %2691 = vmatprep.subr.mxu0 0.0
        %2692 = vmatpush1.msra.mxu0 0.0
        %2693 = vmatprep.mubr.f32.mxu0 0.0
        %2694 = vmatmul.mubr.f32.gmra.mrb[0].mxu0 %v2627
        %v2695 = vpop.f32.mrb[0].mxu0
        %v2696 = vadd.f32 0.0, %v2695
        %v2697 = vpop.f32.mrb[0].mxu0
        %2698 = vdwg.mxu0
        %v2699 = vld [vmem:[#allocation7 + $0x100] sm:$0xff]
        %v2700 = vld [vmem:[#allocation7 + $0x108] sm:$0xff]
        %v2701 = vld [vmem:[#allocation7 + $0x110] sm:$0xff]
        %v2702 = vld [vmem:[#allocation7 + $0x118] sm:$0xff]
        %v2704 = vsel %vm585, %v2696, 0
        %2706 = vmatprep.subr.mxu0 %v2700
        %2707 = vmatpush1.msra.mxu0 %v2699
        %2708 = vmatprep.subr.mxu0 %v2702
        %2709 = vmatpush1.msra.mxu0 %v2701
        %2710 = vmatprep.subr.mxu0 0.0
        %2711 = vmatpush1.msra.mxu0 0.0
        %2712 = vmatprep.subr.mxu0 0.0
        %2713 = vmatpush1.msra.mxu0 0.0
        %2714 = vmatprep.subr.mxu0 0.0
        %2715 = vmatpush1.msra.mxu0 0.0
        %2716 = vmatprep.subr.mxu0 0.0
        %2717 = vmatpush1.msra.mxu0 0.0
        %2718 = vmatprep.subr.mxu0 0.0
        %2719 = vmatpush1.msra.mxu0 0.0
        %2720 = vmatprep.subr.mxu0 0.0
        %2721 = vmatpush1.msra.mxu0 0.0
        %2722 = vmatprep.subr.mxu0 0.0
        %2723 = vmatpush1.msra.mxu0 0.0
        %2724 = vmatprep.subr.mxu0 0.0
        %2725 = vmatpush1.msra.mxu0 0.0
        %2726 = vmatprep.subr.mxu0 0.0
        %2727 = vmatpush1.msra.mxu0 0.0
        %2728 = vmatprep.subr.mxu0 0.0
        %2729 = vmatpush1.msra.mxu0 0.0
        %2730 = vmatprep.subr.mxu0 0.0
        %2731 = vmatpush1.msra.mxu0 0.0
        %2732 = vmatprep.subr.mxu0 0.0
        %2733 = vmatpush1.msra.mxu0 0.0
        %2734 = vmatprep.subr.mxu0 0.0
        %2735 = vmatpush1.msra.mxu0 0.0
        %2736 = vmatprep.subr.mxu0 0.0
        %2737 = vmatpush1.msra.mxu0 0.0
        %2738 = vmatprep.subr.mxu0 0.0
        %2739 = vmatpush1.msra.mxu0 0.0
        %2740 = vmatprep.subr.mxu0 0.0
        %2741 = vmatpush1.msra.mxu0 0.0
        %2742 = vmatprep.subr.mxu0 0.0
        %2743 = vmatpush1.msra.mxu0 0.0
        %2744 = vmatprep.subr.mxu0 0.0
        %2745 = vmatpush1.msra.mxu0 0.0
        %2746 = vmatprep.subr.mxu0 0.0
        %2747 = vmatpush1.msra.mxu0 0.0
        %2748 = vmatprep.subr.mxu0 0.0
        %2749 = vmatpush1.msra.mxu0 0.0
        %2750 = vmatprep.subr.mxu0 0.0
        %2751 = vmatpush1.msra.mxu0 0.0
        %2752 = vmatprep.subr.mxu0 0.0
        %2753 = vmatpush1.msra.mxu0 0.0
        %2754 = vmatprep.subr.mxu0 0.0
        %2755 = vmatpush1.msra.mxu0 0.0
        %2756 = vmatprep.subr.mxu0 0.0
        %2757 = vmatpush1.msra.mxu0 0.0
        %2758 = vmatprep.subr.mxu0 0.0
        %2759 = vmatpush1.msra.mxu0 0.0
        %2760 = vmatprep.subr.mxu0 0.0
        %2761 = vmatpush1.msra.mxu0 0.0
        %2762 = vmatprep.subr.mxu0 0.0
        %2763 = vmatpush1.msra.mxu0 0.0
        %2764 = vmatprep.subr.mxu0 0.0
        %2765 = vmatpush1.msra.mxu0 0.0
        %2766 = vmatprep.subr.mxu0 0.0
        %2767 = vmatpush1.msra.mxu0 0.0
        %2768 = vmatprep.subr.mxu0 0.0
        %2769 = vmatpush1.msra.mxu0 0.0
        %2770 = vmatprep.mubr.f32.mxu0 0.0
        %2771 = vmatmul.mubr.f32.gmra.mrb[0].mxu0 %v2704
        %v2772 = vpop.f32.mrb[0].mxu0
        %v2773 = vadd.f32 0.0, %v2772
        %v2774 = vpop.f32.mrb[0].mxu0
        %v2775 = vadd.f32 0.0, %v2774
        %2776 = vdwg.mxu0
        %v2777 = vadd.f32 %v2535, %v2773
        %v2778 = vadd.f32 %v2536, %v2775
        %2779 = vrot.lane.b32.xlu0 %v2537, 112
        %v2780 = vpop.permute.xlu0 %2779
        %2781 = vrot.lane.b32.xlu0 %v507, 48
        %v2782 = vpop.permute.xlu0 %2781
        %v2783 = vsel %vm585, %v2780, 0
        %v2785 = vsel %vm585, %v2782, 0
        %2787 = vmatprep.subr.mxu0 0.0
        %2788 = vmatpush1.xpose.msra.mxu0 %v2785
        %2789 = vmatprep.subr.mxu0 0.0
        %2790 = vmatpush1.xpose.msra.mxu0 0.0
        %2791 = vmatprep.subr.mxu0 0.0
        %2792 = vmatpush1.xpose.msra.mxu0 0.0
        %2793 = vmatprep.subr.mxu0 0.0
        %2794 = vmatpush1.xpose.msra.mxu0 0.0
        %2795 = vmatprep.subr.mxu0 0.0
        %2796 = vmatpush1.xpose.msra.mxu0 0.0
        %2797 = vmatprep.subr.mxu0 0.0
        %2798 = vmatpush1.xpose.msra.mxu0 0.0
        %2799 = vmatprep.subr.mxu0 0.0
        %2800 = vmatpush1.xpose.msra.mxu0 0.0
        %2801 = vmatprep.subr.mxu0 0.0
        %2802 = vmatpush1.xpose.msra.mxu0 0.0
        %2803 = vmatprep.subr.mxu0 0.0
        %2804 = vmatpush1.xpose.msra.mxu0 0.0
        %2805 = vmatprep.subr.mxu0 0.0
        %2806 = vmatpush1.xpose.msra.mxu0 0.0
        %2807 = vmatprep.subr.mxu0 0.0
        %2808 = vmatpush1.xpose.msra.mxu0 0.0
        %2809 = vmatprep.subr.mxu0 0.0
        %2810 = vmatpush1.xpose.msra.mxu0 0.0
        %2811 = vmatprep.subr.mxu0 0.0
        %2812 = vmatpush1.xpose.msra.mxu0 0.0
        %2813 = vmatprep.subr.mxu0 0.0
        %2814 = vmatpush1.xpose.msra.mxu0 0.0
        %2815 = vmatprep.subr.mxu0 0.0
        %2816 = vmatpush1.xpose.msra.mxu0 0.0
        %2817 = vmatprep.subr.mxu0 0.0
        %2818 = vmatpush1.xpose.msra.mxu0 0.0
        %2819 = vmatprep.subr.mxu0 0.0
        %2820 = vmatpush1.xpose.msra.mxu0 0.0
        %2821 = vmatprep.subr.mxu0 0.0
        %2822 = vmatpush1.xpose.msra.mxu0 0.0
        %2823 = vmatprep.subr.mxu0 0.0
        %2824 = vmatpush1.xpose.msra.mxu0 0.0
        %2825 = vmatprep.subr.mxu0 0.0
        %2826 = vmatpush1.xpose.msra.mxu0 0.0
        %2827 = vmatprep.subr.mxu0 0.0
        %2828 = vmatpush1.xpose.msra.mxu0 0.0
        %2829 = vmatprep.subr.mxu0 0.0
        %2830 = vmatpush1.xpose.msra.mxu0 0.0
        %2831 = vmatprep.subr.mxu0 0.0
        %2832 = vmatpush1.xpose.msra.mxu0 0.0
        %2833 = vmatprep.subr.mxu0 0.0
        %2834 = vmatpush1.xpose.msra.mxu0 0.0
        %2835 = vmatprep.subr.mxu0 0.0
        %2836 = vmatpush1.xpose.msra.mxu0 0.0
        %2837 = vmatprep.subr.mxu0 0.0
        %2838 = vmatpush1.xpose.msra.mxu0 0.0
        %2839 = vmatprep.subr.mxu0 0.0
        %2840 = vmatpush1.xpose.msra.mxu0 0.0
        %2841 = vmatprep.subr.mxu0 0.0
        %2842 = vmatpush1.xpose.msra.mxu0 0.0
        %2843 = vmatprep.subr.mxu0 0.0
        %2844 = vmatpush1.xpose.msra.mxu0 0.0
        %2845 = vmatprep.subr.mxu0 0.0
        %2846 = vmatpush1.xpose.msra.mxu0 0.0
        %2847 = vmatprep.subr.mxu0 0.0
        %2848 = vmatpush1.xpose.msra.mxu0 0.0
        %2849 = vmatprep.subr.mxu0 0.0
        %2850 = vmatpush1.xpose.msra.mxu0 0.0
        %2851 = vmatprep.mubr.f32.mxu0 0.0
        %2852 = vmatmul.mubr.f32.gmra.mrb[0].mxu0 %v2783
        %v2853 = vpop.f32.mrb[0].mxu0
        %v2854 = vadd.f32 0.0, %v2853
        %v2855 = vpop.f32.mrb[0].mxu0
        %2856 = vdwg.mxu0
        %v2857 = vsel %vm661, %v2854, -inf
        %2858 = vmax.xlane.f32.xlu0 %v2857
        %v2859 = vpop.xlane.xlu0 %2858
        %v2860 = vsub.f32 %v2854, %v2859
        %v2861 = vmul.f32 %v2860, 1.442695
        %v2862 = vpow.pop %v2861
        %v2863 = vsel %vm661, %v2862, 0.0
        %2864 = vadd.xlane.f32.xlu0 %v2863
        %v2865 = vpop.xlane.xlu0 %2864
        %v2866 = vrcp.pop %v2865
        %v2867 = vmul.f32 %v2862, %v2866
        %2869 = vrot.lane.b32.xlu0 %v578, 112
        %v2870 = vpop.permute.xlu0 %2869
        %v2873 = vsel %vm661, %v2867, 0
        %2875 = vmatprep.subr.mxu0 0.0
        %2876 = vmatpush1.msra.mxu0 %v2870
        %2877 = vmatprep.subr.mxu0 0.0
        %2878 = vmatpush1.msra.mxu0 0.0
        %2879 = vmatprep.subr.mxu0 0.0
        %2880 = vmatpush1.msra.mxu0 0.0
        %2881 = vmatprep.subr.mxu0 0.0
        %2882 = vmatpush1.msra.mxu0 0.0
        %2883 = vmatprep.subr.mxu0 0.0
        %2884 = vmatpush1.msra.mxu0 0.0
        %2885 = vmatprep.subr.mxu0 0.0
        %2886 = vmatpush1.msra.mxu0 0.0
        %2887 = vmatprep.subr.mxu0 0.0
        %2888 = vmatpush1.msra.mxu0 0.0
        %2889 = vmatprep.subr.mxu0 0.0
        %2890 = vmatpush1.msra.mxu0 0.0
        %2891 = vmatprep.subr.mxu0 0.0
        %2892 = vmatpush1.msra.mxu0 0.0
        %2893 = vmatprep.subr.mxu0 0.0
        %2894 = vmatpush1.msra.mxu0 0.0
        %2895 = vmatprep.subr.mxu0 0.0
        %2896 = vmatpush1.msra.mxu0 0.0
        %2897 = vmatprep.subr.mxu0 0.0
        %2898 = vmatpush1.msra.mxu0 0.0
        %2899 = vmatprep.subr.mxu0 0.0
        %2900 = vmatpush1.msra.mxu0 0.0
        %2901 = vmatprep.subr.mxu0 0.0
        %2902 = vmatpush1.msra.mxu0 0.0
        %2903 = vmatprep.subr.mxu0 0.0
        %2904 = vmatpush1.msra.mxu0 0.0
        %2905 = vmatprep.subr.mxu0 0.0
        %2906 = vmatpush1.msra.mxu0 0.0
        %2907 = vmatprep.subr.mxu0 0.0
        %2908 = vmatpush1.msra.mxu0 0.0
        %2909 = vmatprep.subr.mxu0 0.0
        %2910 = vmatpush1.msra.mxu0 0.0
        %2911 = vmatprep.subr.mxu0 0.0
        %2912 = vmatpush1.msra.mxu0 0.0
        %2913 = vmatprep.subr.mxu0 0.0
        %2914 = vmatpush1.msra.mxu0 0.0
        %2915 = vmatprep.subr.mxu0 0.0
        %2916 = vmatpush1.msra.mxu0 0.0
        %2917 = vmatprep.subr.mxu0 0.0
        %2918 = vmatpush1.msra.mxu0 0.0
        %2919 = vmatprep.subr.mxu0 0.0
        %2920 = vmatpush1.msra.mxu0 0.0
        %2921 = vmatprep.subr.mxu0 0.0
        %2922 = vmatpush1.msra.mxu0 0.0
        %2923 = vmatprep.subr.mxu0 0.0
        %2924 = vmatpush1.msra.mxu0 0.0
        %2925 = vmatprep.subr.mxu0 0.0
        %2926 = vmatpush1.msra.mxu0 0.0
        %2927 = vmatprep.subr.mxu0 0.0
        %2928 = vmatpush1.msra.mxu0 0.0
        %2929 = vmatprep.subr.mxu0 0.0
        %2930 = vmatpush1.msra.mxu0 0.0
        %2931 = vmatprep.subr.mxu0 0.0
        %2932 = vmatpush1.msra.mxu0 0.0
        %2933 = vmatprep.subr.mxu0 0.0
        %2934 = vmatpush1.msra.mxu0 0.0
        %2935 = vmatprep.subr.mxu0 0.0
        %2936 = vmatpush1.msra.mxu0 0.0
        %2937 = vmatprep.subr.mxu0 0.0
        %2938 = vmatpush1.msra.mxu0 0.0
        %2939 = vmatprep.mubr.f32.mxu0 0.0
        %2940 = vmatmul.mubr.f32.gmra.mrb[0].mxu0 %v2873
        %v2941 = vpop.f32.mrb[0].mxu0
        %v2942 = vadd.f32 0.0, %v2941
        %v2943 = vpop.f32.mrb[0].mxu0
        %2944 = vdwg.mxu0
        %v2945 = vld [vmem:[#allocation7 + $0x120] sm:$0xff]
        %v2946 = vld [vmem:[#allocation7 + $0x128] sm:$0xff]
        %v2947 = vld [vmem:[#allocation7 + $0x130] sm:$0xff]
        %v2948 = vld [vmem:[#allocation7 + $0x138] sm:$0xff]
        %v2950 = vsel %vm585, %v2942, 0
        %2952 = vmatprep.subr.mxu0 %v2946
        %2953 = vmatpush1.msra.mxu0 %v2945
        %2954 = vmatprep.subr.mxu0 %v2948
        %2955 = vmatpush1.msra.mxu0 %v2947
        %2956 = vmatprep.subr.mxu0 0.0
        %2957 = vmatpush1.msra.mxu0 0.0
        %2958 = vmatprep.subr.mxu0 0.0
        %2959 = vmatpush1.msra.mxu0 0.0
        %2960 = vmatprep.subr.mxu0 0.0
        %2961 = vmatpush1.msra.mxu0 0.0
        %2962 = vmatprep.subr.mxu0 0.0
        %2963 = vmatpush1.msra.mxu0 0.0
        %2964 = vmatprep.subr.mxu0 0.0
        %2965 = vmatpush1.msra.mxu0 0.0
        %2966 = vmatprep.subr.mxu0 0.0
        %2967 = vmatpush1.msra.mxu0 0.0
        %2968 = vmatprep.subr.mxu0 0.0
        %2969 = vmatpush1.msra.mxu0 0.0
        %2970 = vmatprep.subr.mxu0 0.0
        %2971 = vmatpush1.msra.mxu0 0.0
        %2972 = vmatprep.subr.mxu0 0.0
        %2973 = vmatpush1.msra.mxu0 0.0
        %2974 = vmatprep.subr.mxu0 0.0
        %2975 = vmatpush1.msra.mxu0 0.0
        %2976 = vmatprep.subr.mxu0 0.0
        %2977 = vmatpush1.msra.mxu0 0.0
        %2978 = vmatprep.subr.mxu0 0.0
        %2979 = vmatpush1.msra.mxu0 0.0
        %2980 = vmatprep.subr.mxu0 0.0
        %2981 = vmatpush1.msra.mxu0 0.0
        %2982 = vmatprep.subr.mxu0 0.0
        %2983 = vmatpush1.msra.mxu0 0.0
        %2984 = vmatprep.subr.mxu0 0.0
        %2985 = vmatpush1.msra.mxu0 0.0
        %2986 = vmatprep.subr.mxu0 0.0
        %2987 = vmatpush1.msra.mxu0 0.0
        %2988 = vmatprep.subr.mxu0 0.0
        %2989 = vmatpush1.msra.mxu0 0.0
        %2990 = vmatprep.subr.mxu0 0.0
        %2991 = vmatpush1.msra.mxu0 0.0
        %2992 = vmatprep.subr.mxu0 0.0
        %2993 = vmatpush1.msra.mxu0 0.0
        %2994 = vmatprep.subr.mxu0 0.0
        %2995 = vmatpush1.msra.mxu0 0.0
        %2996 = vmatprep.subr.mxu0 0.0
        %2997 = vmatpush1.msra.mxu0 0.0
        %2998 = vmatprep.subr.mxu0 0.0
        %2999 = vmatpush1.msra.mxu0 0.0
        %3000 = vmatprep.subr.mxu0 0.0
        %3001 = vmatpush1.msra.mxu0 0.0
        %3002 = vmatprep.subr.mxu0 0.0
        %3003 = vmatpush1.msra.mxu0 0.0
        %3004 = vmatprep.subr.mxu0 0.0
        %3005 = vmatpush1.msra.mxu0 0.0
        %3006 = vmatprep.subr.mxu0 0.0
        %3007 = vmatpush1.msra.mxu0 0.0
        %3008 = vmatprep.subr.mxu0 0.0
        %3009 = vmatpush1.msra.mxu0 0.0
        %3010 = vmatprep.subr.mxu0 0.0
        %3011 = vmatpush1.msra.mxu0 0.0
        %3012 = vmatprep.subr.mxu0 0.0
        %3013 = vmatpush1.msra.mxu0 0.0
        %3014 = vmatprep.subr.mxu0 0.0
        %3015 = vmatpush1.msra.mxu0 0.0
        %3016 = vmatprep.mubr.f32.mxu0 0.0
        %3017 = vmatmul.mubr.f32.gmra.mrb[0].mxu0 %v2950
        %v3018 = vpop.f32.mrb[0].mxu0
        %v3019 = vadd.f32 0.0, %v3018
        %v3020 = vpop.f32.mrb[0].mxu0
        %v3021 = vadd.f32 0.0, %v3020
        %3022 = vdwg.mxu0
        %v3023 = vadd.f32 %v2777, %v3019
        %v3024 = vadd.f32 %v2778, %v3021
        %3025 = vrot.lane.b32.xlu0 %v2537, 96
        %v3026 = vpop.permute.xlu0 %3025
        %3027 = vrot.lane.b32.xlu0 %v507, 32
        %v3028 = vpop.permute.xlu0 %3027
        %v3029 = vsel %vm585, %v3026, 0
        %v3031 = vsel %vm585, %v3028, 0
        %3033 = vmatprep.subr.mxu0 0.0
        %3034 = vmatpush1.xpose.msra.mxu0 %v3031
        %3035 = vmatprep.subr.mxu0 0.0
        %3036 = vmatpush1.xpose.msra.mxu0 0.0
        %3037 = vmatprep.subr.mxu0 0.0
        %3038 = vmatpush1.xpose.msra.mxu0 0.0
        %3039 = vmatprep.subr.mxu0 0.0
        %3040 = vmatpush1.xpose.msra.mxu0 0.0
        %3041 = vmatprep.subr.mxu0 0.0
        %3042 = vmatpush1.xpose.msra.mxu0 0.0
        %3043 = vmatprep.subr.mxu0 0.0
        %3044 = vmatpush1.xpose.msra.mxu0 0.0
        %3045 = vmatprep.subr.mxu0 0.0
        %3046 = vmatpush1.xpose.msra.mxu0 0.0
        %3047 = vmatprep.subr.mxu0 0.0
        %3048 = vmatpush1.xpose.msra.mxu0 0.0
        %3049 = vmatprep.subr.mxu0 0.0
        %3050 = vmatpush1.xpose.msra.mxu0 0.0
        %3051 = vmatprep.subr.mxu0 0.0
        %3052 = vmatpush1.xpose.msra.mxu0 0.0
        %3053 = vmatprep.subr.mxu0 0.0
        %3054 = vmatpush1.xpose.msra.mxu0 0.0
        %3055 = vmatprep.subr.mxu0 0.0
        %3056 = vmatpush1.xpose.msra.mxu0 0.0
        %3057 = vmatprep.subr.mxu0 0.0
        %3058 = vmatpush1.xpose.msra.mxu0 0.0
        %3059 = vmatprep.subr.mxu0 0.0
        %3060 = vmatpush1.xpose.msra.mxu0 0.0
        %3061 = vmatprep.subr.mxu0 0.0
        %3062 = vmatpush1.xpose.msra.mxu0 0.0
        %3063 = vmatprep.subr.mxu0 0.0
        %3064 = vmatpush1.xpose.msra.mxu0 0.0
        %3065 = vmatprep.subr.mxu0 0.0
        %3066 = vmatpush1.xpose.msra.mxu0 0.0
        %3067 = vmatprep.subr.mxu0 0.0
        %3068 = vmatpush1.xpose.msra.mxu0 0.0
        %3069 = vmatprep.subr.mxu0 0.0
        %3070 = vmatpush1.xpose.msra.mxu0 0.0
        %3071 = vmatprep.subr.mxu0 0.0
        %3072 = vmatpush1.xpose.msra.mxu0 0.0
        %3073 = vmatprep.subr.mxu0 0.0
        %3074 = vmatpush1.xpose.msra.mxu0 0.0
        %3075 = vmatprep.subr.mxu0 0.0
        %3076 = vmatpush1.xpose.msra.mxu0 0.0
        %3077 = vmatprep.subr.mxu0 0.0
        %3078 = vmatpush1.xpose.msra.mxu0 0.0
        %3079 = vmatprep.subr.mxu0 0.0
        %3080 = vmatpush1.xpose.msra.mxu0 0.0
        %3081 = vmatprep.subr.mxu0 0.0
        %3082 = vmatpush1.xpose.msra.mxu0 0.0
        %3083 = vmatprep.subr.mxu0 0.0
        %3084 = vmatpush1.xpose.msra.mxu0 0.0
        %3085 = vmatprep.subr.mxu0 0.0
        %3086 = vmatpush1.xpose.msra.mxu0 0.0
        %3087 = vmatprep.subr.mxu0 0.0
        %3088 = vmatpush1.xpose.msra.mxu0 0.0
        %3089 = vmatprep.subr.mxu0 0.0
        %3090 = vmatpush1.xpose.msra.mxu0 0.0
        %3091 = vmatprep.subr.mxu0 0.0
        %3092 = vmatpush1.xpose.msra.mxu0 0.0
        %3093 = vmatprep.subr.mxu0 0.0
        %3094 = vmatpush1.xpose.msra.mxu0 0.0
        %3095 = vmatprep.subr.mxu0 0.0
        %3096 = vmatpush1.xpose.msra.mxu0 0.0
        %3097 = vmatprep.mubr.f32.mxu0 0.0
        %3098 = vmatmul.mubr.f32.gmra.mrb[0].mxu0 %v3029
        %v3099 = vpop.f32.mrb[0].mxu0
        %v3100 = vadd.f32 0.0, %v3099
        %v3101 = vpop.f32.mrb[0].mxu0
        %3102 = vdwg.mxu0
        %v3103 = vsel %vm661, %v3100, -inf
        %3104 = vmax.xlane.f32.xlu0 %v3103
        %v3105 = vpop.xlane.xlu0 %3104
        %v3106 = vsub.f32 %v3100, %v3105
        %v3107 = vmul.f32 %v3106, 1.442695
        %v3108 = vpow.pop %v3107
        %v3109 = vsel %vm661, %v3108, 0.0
        %3110 = vadd.xlane.f32.xlu0 %v3109
        %v3111 = vpop.xlane.xlu0 %3110
        %v3112 = vrcp.pop %v3111
        %v3113 = vmul.f32 %v3108, %v3112
        %3114 = vrot.lane.b32.xlu0 %v578, 96
        %v3115 = vpop.permute.xlu0 %3114
        %v3118 = vsel %vm661, %v3113, 0
        %3120 = vmatprep.subr.mxu0 0.0
        %3121 = vmatpush1.msra.mxu0 %v3115
        %3122 = vmatprep.subr.mxu0 0.0
        %3123 = vmatpush1.msra.mxu0 0.0
        %3124 = vmatprep.subr.mxu0 0.0
        %3125 = vmatpush1.msra.mxu0 0.0
        %3126 = vmatprep.subr.mxu0 0.0
        %3127 = vmatpush1.msra.mxu0 0.0
        %3128 = vmatprep.subr.mxu0 0.0
        %3129 = vmatpush1.msra.mxu0 0.0
        %3130 = vmatprep.subr.mxu0 0.0
        %3131 = vmatpush1.msra.mxu0 0.0
        %3132 = vmatprep.subr.mxu0 0.0
        %3133 = vmatpush1.msra.mxu0 0.0
        %3134 = vmatprep.subr.mxu0 0.0
        %3135 = vmatpush1.msra.mxu0 0.0
        %3136 = vmatprep.subr.mxu0 0.0
        %3137 = vmatpush1.msra.mxu0 0.0
        %3138 = vmatprep.subr.mxu0 0.0
        %3139 = vmatpush1.msra.mxu0 0.0
        %3140 = vmatprep.subr.mxu0 0.0
        %3141 = vmatpush1.msra.mxu0 0.0
        %3142 = vmatprep.subr.mxu0 0.0
        %3143 = vmatpush1.msra.mxu0 0.0
        %3144 = vmatprep.subr.mxu0 0.0
        %3145 = vmatpush1.msra.mxu0 0.0
        %3146 = vmatprep.subr.mxu0 0.0
        %3147 = vmatpush1.msra.mxu0 0.0
        %3148 = vmatprep.subr.mxu0 0.0
        %3149 = vmatpush1.msra.mxu0 0.0
        %3150 = vmatprep.subr.mxu0 0.0
        %3151 = vmatpush1.msra.mxu0 0.0
        %3152 = vmatprep.subr.mxu0 0.0
        %3153 = vmatpush1.msra.mxu0 0.0
        %3154 = vmatprep.subr.mxu0 0.0
        %3155 = vmatpush1.msra.mxu0 0.0
        %3156 = vmatprep.subr.mxu0 0.0
        %3157 = vmatpush1.msra.mxu0 0.0
        %3158 = vmatprep.subr.mxu0 0.0
        %3159 = vmatpush1.msra.mxu0 0.0
        %3160 = vmatprep.subr.mxu0 0.0
        %3161 = vmatpush1.msra.mxu0 0.0
        %3162 = vmatprep.subr.mxu0 0.0
        %3163 = vmatpush1.msra.mxu0 0.0
        %3164 = vmatprep.subr.mxu0 0.0
        %3165 = vmatpush1.msra.mxu0 0.0
        %3166 = vmatprep.subr.mxu0 0.0
        %3167 = vmatpush1.msra.mxu0 0.0
        %3168 = vmatprep.subr.mxu0 0.0
        %3169 = vmatpush1.msra.mxu0 0.0
        %3170 = vmatprep.subr.mxu0 0.0
        %3171 = vmatpush1.msra.mxu0 0.0
        %3172 = vmatprep.subr.mxu0 0.0
        %3173 = vmatpush1.msra.mxu0 0.0
        %3174 = vmatprep.subr.mxu0 0.0
        %3175 = vmatpush1.msra.mxu0 0.0
        %3176 = vmatprep.subr.mxu0 0.0
        %3177 = vmatpush1.msra.mxu0 0.0
        %3178 = vmatprep.subr.mxu0 0.0
        %3179 = vmatpush1.msra.mxu0 0.0
        %3180 = vmatprep.subr.mxu0 0.0
        %3181 = vmatpush1.msra.mxu0 0.0
        %3182 = vmatprep.subr.mxu0 0.0
        %3183 = vmatpush1.msra.mxu0 0.0
        %3184 = vmatprep.mubr.f32.mxu0 0.0
        %3185 = vmatmul.mubr.f32.gmra.mrb[0].mxu0 %v3118
        %v3186 = vpop.f32.mrb[0].mxu0
        %v3187 = vadd.f32 0.0, %v3186
        %v3188 = vpop.f32.mrb[0].mxu0
        %3189 = vdwg.mxu0
        %v3190 = vld [vmem:[#allocation7 + $0x140] sm:$0xff]
        %v3191 = vld [vmem:[#allocation7 + $0x148] sm:$0xff]
        %v3192 = vld [vmem:[#allocation7 + $0x150] sm:$0xff]
        %v3193 = vld [vmem:[#allocation7 + $0x158] sm:$0xff]
        %v3195 = vsel %vm585, %v3187, 0
        %3197 = vmatprep.subr.mxu0 %v3191
        %3198 = vmatpush1.msra.mxu0 %v3190
        %3199 = vmatprep.subr.mxu0 %v3193
        %3200 = vmatpush1.msra.mxu0 %v3192
        %3201 = vmatprep.subr.mxu0 0.0
        %3202 = vmatpush1.msra.mxu0 0.0
        %3203 = vmatprep.subr.mxu0 0.0
        %3204 = vmatpush1.msra.mxu0 0.0
        %3205 = vmatprep.subr.mxu0 0.0
        %3206 = vmatpush1.msra.mxu0 0.0
        %3207 = vmatprep.subr.mxu0 0.0
        %3208 = vmatpush1.msra.mxu0 0.0
        %3209 = vmatprep.subr.mxu0 0.0
        %3210 = vmatpush1.msra.mxu0 0.0
        %3211 = vmatprep.subr.mxu0 0.0
        %3212 = vmatpush1.msra.mxu0 0.0
        %3213 = vmatprep.subr.mxu0 0.0
        %3214 = vmatpush1.msra.mxu0 0.0
        %3215 = vmatprep.subr.mxu0 0.0
        %3216 = vmatpush1.msra.mxu0 0.0
        %3217 = vmatprep.subr.mxu0 0.0
        %3218 = vmatpush1.msra.mxu0 0.0
        %3219 = vmatprep.subr.mxu0 0.0
        %3220 = vmatpush1.msra.mxu0 0.0
        %3221 = vmatprep.subr.mxu0 0.0
        %3222 = vmatpush1.msra.mxu0 0.0
        %3223 = vmatprep.subr.mxu0 0.0
        %3224 = vmatpush1.msra.mxu0 0.0
        %3225 = vmatprep.subr.mxu0 0.0
        %3226 = vmatpush1.msra.mxu0 0.0
        %3227 = vmatprep.subr.mxu0 0.0
        %3228 = vmatpush1.msra.mxu0 0.0
        %3229 = vmatprep.subr.mxu0 0.0
        %3230 = vmatpush1.msra.mxu0 0.0
        %3231 = vmatprep.subr.mxu0 0.0
        %3232 = vmatpush1.msra.mxu0 0.0
        %3233 = vmatprep.subr.mxu0 0.0
        %3234 = vmatpush1.msra.mxu0 0.0
        %3235 = vmatprep.subr.mxu0 0.0
        %3236 = vmatpush1.msra.mxu0 0.0
        %3237 = vmatprep.subr.mxu0 0.0
        %3238 = vmatpush1.msra.mxu0 0.0
        %3239 = vmatprep.subr.mxu0 0.0
        %3240 = vmatpush1.msra.mxu0 0.0
        %3241 = vmatprep.subr.mxu0 0.0
        %3242 = vmatpush1.msra.mxu0 0.0
        %3243 = vmatprep.subr.mxu0 0.0
        %3244 = vmatpush1.msra.mxu0 0.0
        %3245 = vmatprep.subr.mxu0 0.0
        %3246 = vmatpush1.msra.mxu0 0.0
        %3247 = vmatprep.subr.mxu0 0.0
        %3248 = vmatpush1.msra.mxu0 0.0
        %3249 = vmatprep.subr.mxu0 0.0
        %3250 = vmatpush1.msra.mxu0 0.0
        %3251 = vmatprep.subr.mxu0 0.0
        %3252 = vmatpush1.msra.mxu0 0.0
        %3253 = vmatprep.subr.mxu0 0.0
        %3254 = vmatpush1.msra.mxu0 0.0
        %3255 = vmatprep.subr.mxu0 0.0
        %3256 = vmatpush1.msra.mxu0 0.0
        %3257 = vmatprep.subr.mxu0 0.0
        %3258 = vmatpush1.msra.mxu0 0.0
        %3259 = vmatprep.subr.mxu0 0.0
        %3260 = vmatpush1.msra.mxu0 0.0
        %3261 = vmatprep.mubr.f32.mxu0 0.0
        %3262 = vmatmul.mubr.f32.gmra.mrb[0].mxu0 %v3195
        %v3263 = vpop.f32.mrb[0].mxu0
        %v3264 = vadd.f32 0.0, %v3263
        %v3265 = vpop.f32.mrb[0].mxu0
        %v3266 = vadd.f32 0.0, %v3265
        %3267 = vdwg.mxu0
        %v3268 = vadd.f32 %v3023, %v3264
        %v3269 = vadd.f32 %v3024, %v3266
        %3270 = vrot.lane.b32.xlu0 %v2537, 80
        %v3271 = vpop.permute.xlu0 %3270
        %3272 = vrot.lane.b32.xlu0 %v507, 16
        %v3273 = vpop.permute.xlu0 %3272
        %v3274 = vsel %vm585, %v3271, 0
        %v3276 = vsel %vm585, %v3273, 0
        %3278 = vmatprep.subr.mxu0 0.0
        %3279 = vmatpush1.xpose.msra.mxu0 %v3276
        %3280 = vmatprep.subr.mxu0 0.0
        %3281 = vmatpush1.xpose.msra.mxu0 0.0
        %3282 = vmatprep.subr.mxu0 0.0
        %3283 = vmatpush1.xpose.msra.mxu0 0.0
        %3284 = vmatprep.subr.mxu0 0.0
        %3285 = vmatpush1.xpose.msra.mxu0 0.0
        %3286 = vmatprep.subr.mxu0 0.0
        %3287 = vmatpush1.xpose.msra.mxu0 0.0
        %3288 = vmatprep.subr.mxu0 0.0
        %3289 = vmatpush1.xpose.msra.mxu0 0.0
        %3290 = vmatprep.subr.mxu0 0.0
        %3291 = vmatpush1.xpose.msra.mxu0 0.0
        %3292 = vmatprep.subr.mxu0 0.0
        %3293 = vmatpush1.xpose.msra.mxu0 0.0
        %3294 = vmatprep.subr.mxu0 0.0
        %3295 = vmatpush1.xpose.msra.mxu0 0.0
        %3296 = vmatprep.subr.mxu0 0.0
        %3297 = vmatpush1.xpose.msra.mxu0 0.0
        %3298 = vmatprep.subr.mxu0 0.0
        %3299 = vmatpush1.xpose.msra.mxu0 0.0
        %3300 = vmatprep.subr.mxu0 0.0
        %3301 = vmatpush1.xpose.msra.mxu0 0.0
        %3302 = vmatprep.subr.mxu0 0.0
        %3303 = vmatpush1.xpose.msra.mxu0 0.0
        %3304 = vmatprep.subr.mxu0 0.0
        %3305 = vmatpush1.xpose.msra.mxu0 0.0
        %3306 = vmatprep.subr.mxu0 0.0
        %3307 = vmatpush1.xpose.msra.mxu0 0.0
        %3308 = vmatprep.subr.mxu0 0.0
        %3309 = vmatpush1.xpose.msra.mxu0 0.0
        %3310 = vmatprep.subr.mxu0 0.0
        %3311 = vmatpush1.xpose.msra.mxu0 0.0
        %3312 = vmatprep.subr.mxu0 0.0
        %3313 = vmatpush1.xpose.msra.mxu0 0.0
        %3314 = vmatprep.subr.mxu0 0.0
        %3315 = vmatpush1.xpose.msra.mxu0 0.0
        %3316 = vmatprep.subr.mxu0 0.0
        %3317 = vmatpush1.xpose.msra.mxu0 0.0
        %3318 = vmatprep.subr.mxu0 0.0
        %3319 = vmatpush1.xpose.msra.mxu0 0.0
        %3320 = vmatprep.subr.mxu0 0.0
        %3321 = vmatpush1.xpose.msra.mxu0 0.0
        %3322 = vmatprep.subr.mxu0 0.0
        %3323 = vmatpush1.xpose.msra.mxu0 0.0
        %3324 = vmatprep.subr.mxu0 0.0
        %3325 = vmatpush1.xpose.msra.mxu0 0.0
        %3326 = vmatprep.subr.mxu0 0.0
        %3327 = vmatpush1.xpose.msra.mxu0 0.0
        %3328 = vmatprep.subr.mxu0 0.0
        %3329 = vmatpush1.xpose.msra.mxu0 0.0
        %3330 = vmatprep.subr.mxu0 0.0
        %3331 = vmatpush1.xpose.msra.mxu0 0.0
        %3332 = vmatprep.subr.mxu0 0.0
        %3333 = vmatpush1.xpose.msra.mxu0 0.0
        %3334 = vmatprep.subr.mxu0 0.0
        %3335 = vmatpush1.xpose.msra.mxu0 0.0
        %3336 = vmatprep.subr.mxu0 0.0
        %3337 = vmatpush1.xpose.msra.mxu0 0.0
        %3338 = vmatprep.subr.mxu0 0.0
        %3339 = vmatpush1.xpose.msra.mxu0 0.0
        %3340 = vmatprep.subr.mxu0 0.0
        %3341 = vmatpush1.xpose.msra.mxu0 0.0
        %3342 = vmatprep.mubr.f32.mxu0 0.0
        %3343 = vmatmul.mubr.f32.gmra.mrb[0].mxu0 %v3274
        %v3344 = vpop.f32.mrb[0].mxu0
        %v3345 = vadd.f32 0.0, %v3344
        %v3346 = vpop.f32.mrb[0].mxu0
        %3347 = vdwg.mxu0
        %v3348 = vsel %vm661, %v3345, -inf
        %3349 = vmax.xlane.f32.xlu0 %v3348
        %v3350 = vpop.xlane.xlu0 %3349
        %v3351 = vsub.f32 %v3345, %v3350
        %v3352 = vmul.f32 %v3351, 1.442695
        %v3353 = vpow.pop %v3352
        %v3354 = vsel %vm661, %v3353, 0.0
        %3355 = vadd.xlane.f32.xlu0 %v3354
        %v3356 = vpop.xlane.xlu0 %3355
        %v3357 = vrcp.pop %v3356
        %v3358 = vmul.f32 %v3353, %v3357
        %3359 = vrot.lane.b32.xlu0 %v578, 80
        %v3360 = vpop.permute.xlu0 %3359
        %v3363 = vsel %vm661, %v3358, 0
        %3365 = vmatprep.subr.mxu0 0.0
        %3366 = vmatpush1.msra.mxu0 %v3360
        %3367 = vmatprep.subr.mxu0 0.0
        %3368 = vmatpush1.msra.mxu0 0.0
        %3369 = vmatprep.subr.mxu0 0.0
        %3370 = vmatpush1.msra.mxu0 0.0
        %3371 = vmatprep.subr.mxu0 0.0
        %3372 = vmatpush1.msra.mxu0 0.0
        %3373 = vmatprep.subr.mxu0 0.0
        %3374 = vmatpush1.msra.mxu0 0.0
        %3375 = vmatprep.subr.mxu0 0.0
        %3376 = vmatpush1.msra.mxu0 0.0
        %3377 = vmatprep.subr.mxu0 0.0
        %3378 = vmatpush1.msra.mxu0 0.0
        %3379 = vmatprep.subr.mxu0 0.0
        %3380 = vmatpush1.msra.mxu0 0.0
        %3381 = vmatprep.subr.mxu0 0.0
        %3382 = vmatpush1.msra.mxu0 0.0
        %3383 = vmatprep.subr.mxu0 0.0
        %3384 = vmatpush1.msra.mxu0 0.0
        %3385 = vmatprep.subr.mxu0 0.0
        %3386 = vmatpush1.msra.mxu0 0.0
        %3387 = vmatprep.subr.mxu0 0.0
        %3388 = vmatpush1.msra.mxu0 0.0
        %3389 = vmatprep.subr.mxu0 0.0
        %3390 = vmatpush1.msra.mxu0 0.0
        %3391 = vmatprep.subr.mxu0 0.0
        %3392 = vmatpush1.msra.mxu0 0.0
        %3393 = vmatprep.subr.mxu0 0.0
        %3394 = vmatpush1.msra.mxu0 0.0
        %3395 = vmatprep.subr.mxu0 0.0
        %3396 = vmatpush1.msra.mxu0 0.0
        %3397 = vmatprep.subr.mxu0 0.0
        %3398 = vmatpush1.msra.mxu0 0.0
        %3399 = vmatprep.subr.mxu0 0.0
        %3400 = vmatpush1.msra.mxu0 0.0
        %3401 = vmatprep.subr.mxu0 0.0
        %3402 = vmatpush1.msra.mxu0 0.0
        %3403 = vmatprep.subr.mxu0 0.0
        %3404 = vmatpush1.msra.mxu0 0.0
        %3405 = vmatprep.subr.mxu0 0.0
        %3406 = vmatpush1.msra.mxu0 0.0
        %3407 = vmatprep.subr.mxu0 0.0
        %3408 = vmatpush1.msra.mxu0 0.0
        %3409 = vmatprep.subr.mxu0 0.0
        %3410 = vmatpush1.msra.mxu0 0.0
        %3411 = vmatprep.subr.mxu0 0.0
        %3412 = vmatpush1.msra.mxu0 0.0
        %3413 = vmatprep.subr.mxu0 0.0
        %3414 = vmatpush1.msra.mxu0 0.0
        %3415 = vmatprep.subr.mxu0 0.0
        %3416 = vmatpush1.msra.mxu0 0.0
        %3417 = vmatprep.subr.mxu0 0.0
        %3418 = vmatpush1.msra.mxu0 0.0
        %3419 = vmatprep.subr.mxu0 0.0
        %3420 = vmatpush1.msra.mxu0 0.0
        %3421 = vmatprep.subr.mxu0 0.0
        %3422 = vmatpush1.msra.mxu0 0.0
        %3423 = vmatprep.subr.mxu0 0.0
        %3424 = vmatpush1.msra.mxu0 0.0
        %3425 = vmatprep.subr.mxu0 0.0
        %3426 = vmatpush1.msra.mxu0 0.0
        %3427 = vmatprep.subr.mxu0 0.0
        %3428 = vmatpush1.msra.mxu0 0.0
        %3429 = vmatprep.mubr.f32.mxu0 0.0
        %3430 = vmatmul.mubr.f32.gmra.mrb[0].mxu0 %v3363
        %v3431 = vpop.f32.mrb[0].mxu0
        %v3432 = vadd.f32 0.0, %v3431
        %v3433 = vpop.f32.mrb[0].mxu0
        %3434 = vdwg.mxu0
        %v3435 = vld [vmem:[#allocation7 + $0x160] sm:$0xff]
        %v3436 = vld [vmem:[#allocation7 + $0x168] sm:$0xff]
        %v3437 = vld [vmem:[#allocation7 + $0x170] sm:$0xff]
        %v3438 = vld [vmem:[#allocation7 + $0x178] sm:$0xff]
        %v3440 = vsel %vm585, %v3432, 0
        %3442 = vmatprep.subr.mxu0 %v3436
        %3443 = vmatpush1.msra.mxu0 %v3435
        %3444 = vmatprep.subr.mxu0 %v3438
        %3445 = vmatpush1.msra.mxu0 %v3437
        %3446 = vmatprep.subr.mxu0 0.0
        %3447 = vmatpush1.msra.mxu0 0.0
        %3448 = vmatprep.subr.mxu0 0.0
        %3449 = vmatpush1.msra.mxu0 0.0
        %3450 = vmatprep.subr.mxu0 0.0
        %3451 = vmatpush1.msra.mxu0 0.0
        %3452 = vmatprep.subr.mxu0 0.0
        %3453 = vmatpush1.msra.mxu0 0.0
        %3454 = vmatprep.subr.mxu0 0.0
        %3455 = vmatpush1.msra.mxu0 0.0
        %3456 = vmatprep.subr.mxu0 0.0
        %3457 = vmatpush1.msra.mxu0 0.0
        %3458 = vmatprep.subr.mxu0 0.0
        %3459 = vmatpush1.msra.mxu0 0.0
        %3460 = vmatprep.subr.mxu0 0.0
        %3461 = vmatpush1.msra.mxu0 0.0
        %3462 = vmatprep.subr.mxu0 0.0
        %3463 = vmatpush1.msra.mxu0 0.0
        %3464 = vmatprep.subr.mxu0 0.0
        %3465 = vmatpush1.msra.mxu0 0.0
        %3466 = vmatprep.subr.mxu0 0.0
        %3467 = vmatpush1.msra.mxu0 0.0
        %3468 = vmatprep.subr.mxu0 0.0
        %3469 = vmatpush1.msra.mxu0 0.0
        %3470 = vmatprep.subr.mxu0 0.0
        %3471 = vmatpush1.msra.mxu0 0.0
        %3472 = vmatprep.subr.mxu0 0.0
        %3473 = vmatpush1.msra.mxu0 0.0
        %3474 = vmatprep.subr.mxu0 0.0
        %3475 = vmatpush1.msra.mxu0 0.0
        %3476 = vmatprep.subr.mxu0 0.0
        %3477 = vmatpush1.msra.mxu0 0.0
        %3478 = vmatprep.subr.mxu0 0.0
        %3479 = vmatpush1.msra.mxu0 0.0
        %3480 = vmatprep.subr.mxu0 0.0
        %3481 = vmatpush1.msra.mxu0 0.0
        %3482 = vmatprep.subr.mxu0 0.0
        %3483 = vmatpush1.msra.mxu0 0.0
        %3484 = vmatprep.subr.mxu0 0.0
        %3485 = vmatpush1.msra.mxu0 0.0
        %3486 = vmatprep.subr.mxu0 0.0
        %3487 = vmatpush1.msra.mxu0 0.0
        %3488 = vmatprep.subr.mxu0 0.0
        %3489 = vmatpush1.msra.mxu0 0.0
        %3490 = vmatprep.subr.mxu0 0.0
        %3491 = vmatpush1.msra.mxu0 0.0
        %3492 = vmatprep.subr.mxu0 0.0
        %3493 = vmatpush1.msra.mxu0 0.0
        %3494 = vmatprep.subr.mxu0 0.0
        %3495 = vmatpush1.msra.mxu0 0.0
        %3496 = vmatprep.subr.mxu0 0.0
        %3497 = vmatpush1.msra.mxu0 0.0
        %3498 = vmatprep.subr.mxu0 0.0
        %3499 = vmatpush1.msra.mxu0 0.0
        %3500 = vmatprep.subr.mxu0 0.0
        %3501 = vmatpush1.msra.mxu0 0.0
        %3502 = vmatprep.subr.mxu0 0.0
        %3503 = vmatpush1.msra.mxu0 0.0
        %3504 = vmatprep.subr.mxu0 0.0
        %3505 = vmatpush1.msra.mxu0 0.0
        %3506 = vmatprep.mubr.f32.mxu0 0.0
        %3507 = vmatmul.mubr.f32.gmra.mrb[0].mxu0 %v3440
        %v3508 = vpop.f32.mrb[0].mxu0
        %v3509 = vadd.f32 0.0, %v3508
        %v3510 = vpop.f32.mrb[0].mxu0
        %v3511 = vadd.f32 0.0, %v3510
        %3512 = vdwg.mxu0
        %v3513 = vadd.f32 %v3268, %v3509
        %v3514 = vadd.f32 %v3269, %v3511
        %v3515 = vld [vmem:[%s3] sm:$0x3]
        %v3517 = vlaneseq
        %v3518 = vshrl.u32 %v3517, 7
        %v3519 = vsub.s32 0, %v3518
        %v3520 = vrot.slane %v3515, %v3519
        %v3521 = vlaneseq
        %v3522 = vshrl.u32 %v3521, 7
        %v3523 = vsub.s32 1, %v3522
        %v3524 = vrot.slane %v3515, %v3523
        %v3527 = vadd.f32 %v3513, %v3520
        %v3528 = vadd.f32 %v3514, %v3524
        %3529 = vst [vmem:[%s242] sm:$0xff] %v3527
        %3530 = vst.msk [vmem:[%s242 + $0x8] sm:$0xff] %vm365, %v3528
        %s3531 = sand.u32 %s119, 1
        %s3532 = scalar_lea.sflag [#allocation4], %s3531
        %s3533 = sand.u32 %s119, 1
        %s3534 = smul.addr %s3533, 16
        %s3535 = scalar_lea.vmem [#allocation8], %s3534
        // Predicated region
        $region49: #{msa_forward.1} parent=35 // pred_check
          %p3536 = pneg %p129
        $region50: #{msa_forward.1} parent=35 // pred_check_branch
          %3538 = sbr.rel (%p3536) target = $region52
        $region51: #{msa_forward.1} parent=35 // pred_region
          %s3540 = ssub.s32 256, 256
          %3541 = vsyncadd %s3532, %s3540
          %s3542 = smul.addr %s22, 2
          %s3543 = smul.addr %s3542, 128
          %s3544 = scalar_lea.hbm %s4, %s3543
          %s3546 = sshll.u32 %s3535, 4
          %s3547 = int_to_ptr.vmem [resolvable:$true] %s3546
          %3549 = dma.vmem_to_hbm [thread:$0]  %s3547, 256, %s3544, %s3532
        $region52: #{msa_forward.1} parent=35 // pred_fallthru
          _
      $region36: #{msa_forward.1} parent=5 // pred_fallthru
        _
      %p3550 = scmp.le.s32.totalorder 2, %s17
      // Predicated region
      $region53: #{msa_forward.1} parent=5 // pred_check
        %p3551 = pneg %p3550
      $region54: #{msa_forward.1} parent=5 // pred_check_branch
        %3553 = sbr.rel (%p3551) target = $region56
      $region55: #{msa_forward.1} parent=5 // pred_region
        %s3554 = ssub.s32 %s17, 2
        // Predicated region
        $region57: #{msa_forward.1} parent=55 // pred_check
          %p3555 = pneg %p135
        $region58: #{msa_forward.1} parent=55 // pred_check_branch
          %3557 = sbr.rel (%p3555) target = $region60
        $region59: #{msa_forward.1} parent=55 // pred_region
          %s3558 = sand.u32 %s120, 1
          %s3559 = scalar_lea.sflag [#allocation4], %s3558
          %s3560 = sand.u32 %s120, 1
          %s3561 = smul.addr %s3560, 16
          %s3562 = scalar_lea.vmem [#allocation8], %s3561
          %3563 = dma.done %s3559, 256
        $region60: #{msa_forward.1} parent=55 // pred_fallthru
          _
      $region56: #{msa_forward.1} parent=5 // pred_fallthru
        _
    $region6: #{msa_forward.1} parent=1 // loop_footer
      %s21 = sadd.s32 1, %s17
    $region7: #{msa_forward.1} parent=1 // loop_footer_branch
      %16 = sbr.rel target = $region3
    $region8: #{msa_forward.1} parent=1 // loop_exit
      _
    %3564 = vsyncpa [#allocation3], 1
    %s3565 = scalar_lea.sflag [#allocation3], 1
    %3566 = vsyncpa %s3565, 1
    %3567 = vsyncpa [#allocation6], 1
    %3568 = vsyncpa [#allocation4], 1
    %s3569 = scalar_lea.sflag [#allocation4], 1
    %3570 = vsyncpa %s3569, 1

</llo_original>
